<compile_context>
chip_gen: v6e
topology: v6e:2x2x1
jax: 0.10.0
libtpu: 0.0.40
codegen_flags: <defaults>
</compile_context>

<pallas_src>
from functools import partial

import numpy as np
import jax
import jax.numpy as jnp
from jax.experimental import pallas as pl
from jax.experimental.pallas import tpu as pltpu

_BN_EPS = 1e-5
_LANE = 128


def _round_up(x, m):
    return ((x + m - 1) // m) * m


# ---------------------------------------------------------------------------
# Fused Pallas kernel: conv1+bn1+relu -> (VMEM scratch) -> conv2+bn2 + shortcut + relu
# ---------------------------------------------------------------------------
def _basic_block_kernel(xph_ref, w1_ref, b1_ref, w2_ref, b2_ref, rsel_ref,
                        o_ref, mid_ref, *, stride, Ho, Wo):
    # xph_ref : (s*s, B, Hq, Wq, cin)  bf16 stride-phase planes of the spatially padded input
    # w1_ref  : (9, cin, cpad)         bf16, BN1 scale folded into output channels
    # b1_ref  : (1, cpad)              f32 folded BN1 bias
    # w2_ref  : (9*cpad, cpad)         bf16, taps folded into contraction dim, BN2 folded
    # b2_ref  : (1, cpad)              f32 folded BN2 bias
    # rsel_ref: (cin, cpad)            bf16 0/1 selection matrix -> shortcut channel placement
    # o_ref   : (B, Ho, Wo, cpad)      bf16 final block output (lane padded)
    # mid_ref : (B, Ho+2, Wo+2, cpad)  bf16 VMEM scratch: haloed conv1 output
    s = stride
    B = xph_ref.shape[1]
    cin = xph_ref.shape[-1]
    cpad = w2_ref.shape[-1]
    m = B * Ho * Wo

    # ---- conv1 + bn1 + relu : 9 accumulating MXU dots (static tap offsets) ----
    acc1 = jnp.zeros((m, cpad), jnp.float32)
    for kh in range(3):
        for kw in range(3):
            ph, oh = kh % s, kh // s
            pw, ow = kw % s, kw // s
            xt = xph_ref[ph * s + pw, :, pl.ds(oh, Ho), pl.ds(ow, Wo), :]
            acc1 = acc1 + jnp.dot(xt.reshape(m, cin), w1_ref[kh * 3 + kw],
                                  preferred_element_type=jnp.float32)
    acc1 = jnp.maximum(acc1 + b1_ref[...], 0.0)

    # Haloed bf16 intermediate stays in VMEM (never touches HBM).  Only zero the four
    # 1-pixel border strips (the zero border == conv2's spatial padding), then one
    # interior store of the conv1 result.
    zrow = jnp.zeros((B, 1, Wo + 2, cpad), mid_ref.dtype)
    zcol = jnp.zeros((B, Ho, 1, cpad), mid_ref.dtype)
    mid_ref[:, pl.ds(0, 1), :, :] = zrow
    mid_ref[:, pl.ds(Ho + 1, 1), :, :] = zrow
    mid_ref[:, pl.ds(1, Ho), pl.ds(0, 1), :] = zcol
    mid_ref[:, pl.ds(1, Ho), pl.ds(Wo + 1, 1), :] = zcol
    mid_ref[:, pl.ds(1, Ho), pl.ds(1, Wo), :] = (
        acc1.reshape(B, Ho, Wo, cpad).astype(mid_ref.dtype))

    # ---- conv2 + bn2 : fold the 9 taps into the contraction dim -> ONE dot, K = 9*cpad ----
    lhs2 = jnp.concatenate(
        [mid_ref[:, pl.ds(kh, Ho), pl.ds(kw, Wo), :]
         for kh in range(3) for kw in range(3)],
        axis=-1).reshape(m, 9 * cpad)
    acc2 = jnp.dot(lhs2, w2_ref[...], preferred_element_type=jnp.float32) + b2_ref[...]

    # ---- shortcut : its pixels are already inside the conv1 phase input (no extra HBM read)
    #   identity (s=1): x[i, j]   == phase 0 at spatial offset (1, 1)
    #   pad_func (s=2): x[2i, 2j] == phase 3 at spatial offset (0, 0)
    # Channel placement (pad_func zero padding) is an exact 0/1 selection matmul.
    rp = (1 % s) * s + (1 % s)
    ro = 1 // s
    res = xph_ref[rp, :, pl.ds(ro, Ho), pl.ds(ro, Wo), :].reshape(m, cin)
    acc2 = acc2 + jnp.dot(res, rsel_ref[...], preferred_element_type=jnp.float32)

    o_ref[...] = jnp.maximum(acc2, 0.0).reshape(B, Ho, Wo, cpad).astype(o_ref.dtype)


def _basic_block_pallas(xph, w1, b1, w2, b2, rsel, *, stride, Ho, Wo, bimg):
    s2, N, Hq, Wq, cin = xph.shape
    cpad = w2.shape[-1]

    kern = partial(_basic_block_kernel, stride=stride, Ho=Ho, Wo=Wo)

    return pl.pallas_call(
        kern,
        grid=(N // bimg,),
        in_specs=[
            pl.BlockSpec((s2, bimg, Hq, Wq, cin), lambda n: (0, n, 0, 0, 0)),  # images
            pl.BlockSpec((9, cin, cpad), lambda n: (0, 0, 0)),                 # w1 (resident)
            pl.BlockSpec((1, cpad), lambda n: (0, 0)),                         # b1
            pl.BlockSpec((9 * cpad, cpad), lambda n: (0, 0)),                  # w2 (resident)
            pl.BlockSpec((1, cpad), lambda n: (0, 0)),                         # b2
            pl.BlockSpec((cin, cpad), lambda n: (0, 0)),                       # shortcut sel
        ],
        out_specs=pl.BlockSpec((bimg, Ho, Wo, cpad), lambda n: (n, 0, 0, 0)),
        out_shape=jax.ShapeDtypeStruct((N, Ho, Wo, cpad), jnp.bfloat16),
        scratch_shapes=[pltpu.VMEM((bimg, Ho + 2, Wo + 2, cpad), jnp.bfloat16)],
        compiler_params=pltpu.CompilerParams(
            dimension_semantics=("parallel",),       # images independent -> megacore / 2 TCs
            vmem_limit_bytes=32 * 1024 * 1024,       # explicit; safe on v7x (64 MiB physical)
        ),
    )(xph, w1, b1, w2, b2, rsel)


# ---------------------------------------------------------------------------
# Wrapper glue (XLA): layout prep only — no im2col, no residual materialization
# ---------------------------------------------------------------------------
def _make_phases(x_nhwc, stride):
    """Pad spatially by 1 and split into stride x stride phase planes (bf16, phase-major).

    phases[(kh%s)*s + (kw%s), n, ho + kh//s, wo + kw//s, c] == x_pad[n, s*ho+kh, s*wo+kw, c]
    so every in-kernel tap (and the shortcut) is a static, stride-free window read.
    """
    N, H, W, C = x_nhwc.shape
    xp = jnp.pad(x_nhwc, ((0, 0), (1, 1), (1, 1), (0, 0)))
    if stride == 1:
        return xp[None].astype(jnp.bfloat16)                     # (1, N, H+2, W+2, C)
    Ho = (H - 1) // stride + 1
    Wo = (W - 1) // stride + 1
    Hq, Wq = Ho + 1, Wo + 1
    planes = []
    for ph in range(stride):
        for pw in range(stride):
            sl = xp[:, ph::stride, pw::stride, :][:, :Hq, :Wq, :]
            sl = jnp.pad(sl, ((0, 0), (0, Hq - sl.shape[1]),
                              (0, Wq - sl.shape[2]), (0, 0)))
            planes.append(sl)
    return jnp.stack(planes, axis=0).astype(jnp.bfloat16)        # (s*s, N, Hq, Wq, C)


def _fold_bn(gamma, beta, mean, var):
    scale = gamma / jnp.sqrt(var + _BN_EPS)
    bias = beta - mean * scale
    return scale, bias


def _prep_weight(w_oihw, bn_scale, *, cin_pad, cout_pad):
    """(Cout, Cin, 3, 3) OIHW -> (9, cin_pad, cout_pad) bf16, BN scale folded, tap-major."""
    cout, cin = w_oihw.shape[0], w_oihw.shape[1]
    w = w_oihw.astype(jnp.float32) * bn_scale[:, None, None, None]
    w = jnp.transpose(w, (2, 3, 1, 0)).reshape(9, cin, cout)      # [kh*3+kw, cin, cout]
    w = jnp.pad(w, ((0, 0), (0, cin_pad - cin), (0, cout_pad - cout)))
    return w.astype(jnp.bfloat16)


# ---------------------------------------------------------------------------
# BasicBlock forward (Pallas)
# ---------------------------------------------------------------------------
def basic_block_forward(x_nchw, params, *, in_planes, planes, stride, images_per_step=None):
    N, cin, H, W = x_nchw.shape
    assert cin == in_planes
    assert stride in (1, 2), "CIFAR BasicBlock only uses stride 1 or 2"
    Ho = (H - 1) // stride + 1
    Wo = (W - 1) // stride + 1
    cpad = _round_up(planes, _LANE)              # lane-dense output / contraction channels

    # Shortcut: identity or pad_func (::2 subsample + symmetric channel zero padding).
    if stride != 1 or in_planes != planes:
        pad = planes // 4
        assert in_planes + 2 * pad == planes, "pad_func channel arithmetic mismatch"
        assert stride == 2, "pad_func shortcut assumes the standard stride-2 CIFAR pattern"
        res_off = pad
    else:
        res_off = 0
    rsel = jnp.pad(jnp.eye(in_planes, dtype=jnp.bfloat16),
                   ((0, 0), (res_off, cpad - res_off - in_planes)))    # (cin, cpad)

    x = jnp.transpose(x_nchw, (0, 2, 3, 1))      # NCHW -> NHWC (f32)

    sc1, bias1 = _fold_bn(*params["bn1"])
    sc2, bias2 = _fold_bn(*params["bn2"])
    w1 = _prep_weight(params["w1"], sc1, cin_pad=in_planes, cout_pad=cpad)   # (9, cin, cpad)
    w2 = _prep_weight(params["w2"], sc2, cin_pad=cpad, cout_pad=cpad)
    w2 = w2.reshape(9 * cpad, cpad)                                          # taps folded in K
    b1p = jnp.pad(bias1, (0, cpad - planes)).reshape(1, cpad).astype(jnp.float32)
    b2p = jnp.pad(bias2, (0, cpad - planes)).reshape(1, cpad).astype(jnp.float32)

    xph = _make_phases(x, stride)                # (s*s, N, Hq, Wq, cin) bf16

    # Several images per grid step: amortize per-step overhead, fill the MXU M dimension,
    # while keeping the per-step VMEM footprint (im2col + accumulators) a few MB.
    if images_per_step is None:
        images_per_step = max(1, min(8, 4096 // (Ho * Wo)))
    bimg = min(images_per_step, N)
    Npad = _round_up(N, bimg)
    if Npad != N:
        xph = jnp.pad(xph, ((0, 0), (0, Npad - N), (0, 0), (0, 0), (0, 0)))

    out = _basic_block_pallas(xph, w1, b1p, w2, b2p, rsel,
                              stride=stride, Ho=Ho, Wo=Wo, bimg=bimg)   # (Npad,Ho,Wo,cpad) bf16

    out = out[:N, :, :, :planes].astype(jnp.float32)   # drop batch/lane padding
    return jnp.transpose(out, (0, 3, 1, 2))            # NHWC -> NCHW


# ---------------------------------------------------------------------------
# Pure-JAX reference (mirrors the PyTorch forward, eval-mode BN, f32)
# ---------------------------------------------------------------------------
def _ref_forward(x, params, *, in_planes, planes, stride):
    def conv(x, w, s):
        return jax.lax.conv_general_dilated(
            x, w, (s, s), ((1, 1), (1, 1)),
            dimension_numbers=("NCHW", "OIHW", "NCHW"))

    def bn(x, bn_params):
        gamma, beta, mean, var = bn_params
        s = gamma / jnp.sqrt(var + _BN_EPS)
        return x * s[None, :, None, None] + (beta - mean * s)[None, :, None, None]

    out = jax.nn.relu(bn(conv(x, params["w1"], stride), params["bn1"]))
    out = bn(conv(out, params["w2"], 1), params["bn2"])
    if stride != 1 or in_planes != planes:
        pad = planes // 4
        sc = jnp.pad(x[:, :, ::2, ::2], ((0, 0), (pad, pad), (0, 0), (0, 0)))
    else:
        sc = x
    return jax.nn.relu(out + sc)


# ---------------------------------------------------------------------------
def _make_params(key, in_planes, planes):
    ks = jax.random.split(key, 10)
    return {
        "w1": jax.random.normal(ks[0], (planes, in_planes, 3, 3), jnp.float32) * 0.1,
        "w2": jax.random.normal(ks[1], (planes, planes, 3, 3), jnp.float32) * 0.1,
        "bn1": (
            jax.random.uniform(ks[2], (planes,), jnp.float32, 0.5, 1.5),   # gamma
            jax.random.normal(ks[3], (planes,), jnp.float32) * 0.1,        # beta
            jax.random.normal(ks[4], (planes,), jnp.float32) * 0.1,        # running_mean
            jax.random.uniform(ks[5], (planes,), jnp.float32, 0.5, 1.5),   # running_var
        ),
        "bn2": (
            jax.random.uniform(ks[6], (planes,), jnp.float32, 0.5, 1.5),
            jax.random.normal(ks[7], (planes,), jnp.float32) * 0.1,
            jax.random.normal(ks[8], (planes,), jnp.float32) * 0.1,
            jax.random.uniform(ks[9], (planes,), jnp.float32, 0.5, 1.5),
        ),
    }


if __name__ == "__main__":
    key = jax.random.PRNGKey(0)
    k_x, k_p1, k_p2 = jax.random.split(key, 3)

    # Primary config: stride-2 pad_func shortcut.
    N, in_planes, H, W = 2, 4, 16, 16
    planes, stride = 8, 2
    x = jax.random.normal(k_x, (N, in_planes, H, W), jnp.float32)
    params = _make_params(k_p1, in_planes, planes)

    fwd = jax.jit(partial(basic_block_forward,
                          in_planes=in_planes, planes=planes, stride=stride))
    out = jax.block_until_ready(fwd(x, params))
    ref = jax.block_until_ready(
        _ref_forward(x, params, in_planes=in_planes, planes=planes, stride=stride))
    assert out.shape == (N, planes, H // stride, W // stride), out.shape
    # bf16 MXU operands + bf16 intermediate/output -> relaxed tolerance vs f32 reference
    np.testing.assert_allclose(np.asarray(out), np.asarray(ref), rtol=3e-2, atol=3e-2)

    # Secondary config: stride-1 identity shortcut.
    params_id = _make_params(k_p2, planes, planes)
    x2 = jax.random.normal(k_x, (N, planes, H, W), jnp.float32)
    fwd_id = jax.jit(partial(basic_block_forward,
                             in_planes=planes, planes=planes, stride=1))
    out2 = jax.block_until_ready(fwd_id(x2, params_id))
    ref2 = jax.block_until_ready(
        _ref_forward(x2, params_id, in_planes=planes, planes=planes, stride=1))
    assert out2.shape == (N, planes, H, W), out2.shape
    np.testing.assert_allclose(np.asarray(out2), np.asarray(ref2), rtol=3e-2, atol=3e-2)

    print("KERNEL_OK")
</pallas_src>

<mosaic_0001>
module attributes {stable_mosaic.version = 11 : i64} {
  func.func @_basic_block_kernel(%arg0: i32, %arg1: memref<4x2x9x9x4xbf16, #tpu.memory_space<vmem>>, %arg2: memref<9x4x128xbf16, #tpu.memory_space<vmem>>, %arg3: memref<1x128xf32, #tpu.memory_space<vmem>>, %arg4: memref<1152x128xbf16, #tpu.memory_space<vmem>>, %arg5: memref<1x128xf32, #tpu.memory_space<vmem>>, %arg6: memref<4x128xbf16, #tpu.memory_space<vmem>>, %arg7: memref<2x8x8x128xbf16, #tpu.memory_space<vmem>>, %arg8: memref<2x10x10x128xbf16, #tpu.memory_space<vmem>>) attributes {dimension_semantics = [#tpu.dimension_semantics<parallel>], iteration_bounds = array<i64: 1>, scalar_prefetch = 0 : i64, scratch_operands = 1 : i64, tpu.core_type = #tpu.core_type<tc>, window_params = [{transform_indices = @transform_0, window_bounds = array<i64: 4, 2, 9, 9, 4>}, {pipeline_mode = #tpu.pipeline_mode<synchronous>, transform_indices = @transform_1, window_bounds = array<i64: 9, 4, 128>}, {pipeline_mode = #tpu.pipeline_mode<synchronous>, transform_indices = @transform_2, window_bounds = array<i64: 1, 128>}, {pipeline_mode = #tpu.pipeline_mode<synchronous>, transform_indices = @transform_3, window_bounds = array<i64: 1152, 128>}, {pipeline_mode = #tpu.pipeline_mode<synchronous>, transform_indices = @transform_4, window_bounds = array<i64: 1, 128>}, {pipeline_mode = #tpu.pipeline_mode<synchronous>, transform_indices = @transform_5, window_bounds = array<i64: 4, 128>}, {transform_indices = @transform_6, window_bounds = array<i64: 2, 8, 8, 128>}]} {
    %cst = arith.constant 0.000000e+00 : f32
    %0 = vector.broadcast %cst : f32 to vector<128x128xf32>
    %c0 = arith.constant 0 : index
    %c0_0 = arith.constant 0 : index
    %c0_1 = arith.constant 0 : index
    %c0_2 = arith.constant 0 : index
    %c0_3 = arith.constant 0 : index
    %1 = vector.load %arg1[%c0, %c0_0, %c0_1, %c0_2, %c0_3] : memref<4x2x9x9x4xbf16, #tpu.memory_space<vmem>>, vector<1x2x8x8x4xbf16>
    %2 = vector.shape_cast %1 : vector<1x2x8x8x4xbf16> to vector<2x8x8x4xbf16>
    %3 = vector.shape_cast %2 : vector<2x8x8x4xbf16> to vector<128x4xbf16>
    %c0_4 = arith.constant 0 : index
    %c0_5 = arith.constant 0 : index
    %c0_6 = arith.constant 0 : index
    %4 = vector.load %arg2[%c0_4, %c0_5, %c0_6] : memref<9x4x128xbf16, #tpu.memory_space<vmem>>, vector<1x4x128xbf16>
    %5 = vector.shape_cast %4 : vector<1x4x128xbf16> to vector<4x128xbf16>
    %cst_7 = arith.constant dense<0.000000e+00> : vector<128x128xf32>
    %6 = tpu.matmul %3, %5, %cst_7 {dimension_numbers = #tpu.dot_dimension_numbers<[1], [0], [0], [1], [0, 0, 1, 1], [], []>} : vector<128x4xbf16>, vector<4x128xbf16>, vector<128x128xf32> -> vector<128x128xf32>
    %7 = arith.addf %0, %6 : vector<128x128xf32>
    %c1 = arith.constant 1 : index
    %c0_8 = arith.constant 0 : index
    %c0_9 = arith.constant 0 : index
    %c0_10 = arith.constant 0 : index
    %c0_11 = arith.constant 0 : index
    %8 = vector.load %arg1[%c1, %c0_8, %c0_9, %c0_10, %c0_11] : memref<4x2x9x9x4xbf16, #tpu.memory_space<vmem>>, vector<1x2x8x8x4xbf16>
    %9 = vector.shape_cast %8 : vector<1x2x8x8x4xbf16> to vector<2x8x8x4xbf16>
    %10 = vector.shape_cast %9 : vector<2x8x8x4xbf16> to vector<128x4xbf16>
    %c1_12 = arith.constant 1 : index
    %c0_13 = arith.constant 0 : index
    %c0_14 = arith.constant 0 : index
    %11 = vector.load %arg2[%c1_12, %c0_13, %c0_14] : memref<9x4x128xbf16, #tpu.memory_space<vmem>>, vector<1x4x128xbf16>
    %12 = vector.shape_cast %11 : vector<1x4x128xbf16> to vector<4x128xbf16>
    %cst_15 = arith.constant dense<0.000000e+00> : vector<128x128xf32>
    %13 = tpu.matmul %10, %12, %cst_15 {dimension_numbers = #tpu.dot_dimension_numbers<[1], [0], [0], [1], [0, 0, 1, 1], [], []>} : vector<128x4xbf16>, vector<4x128xbf16>, vector<128x128xf32> -> vector<128x128xf32>
    %14 = arith.addf %7, %13 : vector<128x128xf32>
    %c0_16 = arith.constant 0 : index
    %c0_17 = arith.constant 0 : index
    %c0_18 = arith.constant 0 : index
    %c1_19 = arith.constant 1 : index
    %c0_20 = arith.constant 0 : index
    %15 = vector.load %arg1[%c0_16, %c0_17, %c0_18, %c1_19, %c0_20] : memref<4x2x9x9x4xbf16, #tpu.memory_space<vmem>>, vector<1x2x8x8x4xbf16>
    %16 = vector.shape_cast %15 : vector<1x2x8x8x4xbf16> to vector<2x8x8x4xbf16>
    %17 = vector.shape_cast %16 : vector<2x8x8x4xbf16> to vector<128x4xbf16>
    %c2 = arith.constant 2 : index
    %c0_21 = arith.constant 0 : index
    %c0_22 = arith.constant 0 : index
    %18 = vector.load %arg2[%c2, %c0_21, %c0_22] : memref<9x4x128xbf16, #tpu.memory_space<vmem>>, vector<1x4x128xbf16>
    %19 = vector.shape_cast %18 : vector<1x4x128xbf16> to vector<4x128xbf16>
    %cst_23 = arith.constant dense<0.000000e+00> : vector<128x128xf32>
    %20 = tpu.matmul %17, %19, %cst_23 {dimension_numbers = #tpu.dot_dimension_numbers<[1], [0], [0], [1], [0, 0, 1, 1], [], []>} : vector<128x4xbf16>, vector<4x128xbf16>, vector<128x128xf32> -> vector<128x128xf32>
    %21 = arith.addf %14, %20 : vector<128x128xf32>
    %c2_24 = arith.constant 2 : index
    %c0_25 = arith.constant 0 : index
    %c0_26 = arith.constant 0 : index
    %c0_27 = arith.constant 0 : index
    %c0_28 = arith.constant 0 : index
    %22 = vector.load %arg1[%c2_24, %c0_25, %c0_26, %c0_27, %c0_28] : memref<4x2x9x9x4xbf16, #tpu.memory_space<vmem>>, vector<1x2x8x8x4xbf16>
    %23 = vector.shape_cast %22 : vector<1x2x8x8x4xbf16> to vector<2x8x8x4xbf16>
    %24 = vector.shape_cast %23 : vector<2x8x8x4xbf16> to vector<128x4xbf16>
    %c3 = arith.constant 3 : index
    %c0_29 = arith.constant 0 : index
    %c0_30 = arith.constant 0 : index
    %25 = vector.load %arg2[%c3, %c0_29, %c0_30] : memref<9x4x128xbf16, #tpu.memory_space<vmem>>, vector<1x4x128xbf16>
    %26 = vector.shape_cast %25 : vector<1x4x128xbf16> to vector<4x128xbf16>
    %cst_31 = arith.constant dense<0.000000e+00> : vector<128x128xf32>
    %27 = tpu.matmul %24, %26, %cst_31 {dimension_numbers = #tpu.dot_dimension_numbers<[1], [0], [0], [1], [0, 0, 1, 1], [], []>} : vector<128x4xbf16>, vector<4x128xbf16>, vector<128x128xf32> -> vector<128x128xf32>
    %28 = arith.addf %21, %27 : vector<128x128xf32>
    %c3_32 = arith.constant 3 : index
    %c0_33 = arith.constant 0 : index
    %c0_34 = arith.constant 0 : index
    %c0_35 = arith.constant 0 : index
    %c0_36 = arith.constant 0 : index
    %29 = vector.load %arg1[%c3_32, %c0_33, %c0_34, %c0_35, %c0_36] : memref<4x2x9x9x4xbf16, #tpu.memory_space<vmem>>, vector<1x2x8x8x4xbf16>
    %30 = vector.shape_cast %29 : vector<1x2x8x8x4xbf16> to vector<2x8x8x4xbf16>
    %31 = vector.shape_cast %30 : vector<2x8x8x4xbf16> to vector<128x4xbf16>
    %c4 = arith.constant 4 : index
    %c0_37 = arith.constant 0 : index
    %c0_38 = arith.constant 0 : index
    %32 = vector.load %arg2[%c4, %c0_37, %c0_38] : memref<9x4x128xbf16, #tpu.memory_space<vmem>>, vector<1x4x128xbf16>
    %33 = vector.shape_cast %32 : vector<1x4x128xbf16> to vector<4x128xbf16>
    %cst_39 = arith.constant dense<0.000000e+00> : vector<128x128xf32>
    %34 = tpu.matmul %31, %33, %cst_39 {dimension_numbers = #tpu.dot_dimension_numbers<[1], [0], [0], [1], [0, 0, 1, 1], [], []>} : vector<128x4xbf16>, vector<4x128xbf16>, vector<128x128xf32> -> vector<128x128xf32>
    %35 = arith.addf %28, %34 : vector<128x128xf32>
    %c2_40 = arith.constant 2 : index
    %c0_41 = arith.constant 0 : index
    %c0_42 = arith.constant 0 : index
    %c1_43 = arith.constant 1 : index
    %c0_44 = arith.constant 0 : index
    %36 = vector.load %arg1[%c2_40, %c0_41, %c0_42, %c1_43, %c0_44] : memref<4x2x9x9x4xbf16, #tpu.memory_space<vmem>>, vector<1x2x8x8x4xbf16>
    %37 = vector.shape_cast %36 : vector<1x2x8x8x4xbf16> to vector<2x8x8x4xbf16>
    %38 = vector.shape_cast %37 : vector<2x8x8x4xbf16> to vector<128x4xbf16>
    %c5 = arith.constant 5 : index
    %c0_45 = arith.constant 0 : index
    %c0_46 = arith.constant 0 : index
    %39 = vector.load %arg2[%c5, %c0_45, %c0_46] : memref<9x4x128xbf16, #tpu.memory_space<vmem>>, vector<1x4x128xbf16>
    %40 = vector.shape_cast %39 : vector<1x4x128xbf16> to vector<4x128xbf16>
    %cst_47 = arith.constant dense<0.000000e+00> : vector<128x128xf32>
    %41 = tpu.matmul %38, %40, %cst_47 {dimension_numbers = #tpu.dot_dimension_numbers<[1], [0], [0], [1], [0, 0, 1, 1], [], []>} : vector<128x4xbf16>, vector<4x128xbf16>, vector<128x128xf32> -> vector<128x128xf32>
    %42 = arith.addf %35, %41 : vector<128x128xf32>
    %c0_48 = arith.constant 0 : index
    %c0_49 = arith.constant 0 : index
    %c1_50 = arith.constant 1 : index
    %c0_51 = arith.constant 0 : index
    %c0_52 = arith.constant 0 : index
    %43 = vector.load %arg1[%c0_48, %c0_49, %c1_50, %c0_51, %c0_52] : memref<4x2x9x9x4xbf16, #tpu.memory_space<vmem>>, vector<1x2x8x8x4xbf16>
    %44 = vector.shape_cast %43 : vector<1x2x8x8x4xbf16> to vector<2x8x8x4xbf16>
    %45 = vector.shape_cast %44 : vector<2x8x8x4xbf16> to vector<128x4xbf16>
    %c6 = arith.constant 6 : index
    %c0_53 = arith.constant 0 : index
    %c0_54 = arith.constant 0 : index
    %46 = vector.load %arg2[%c6, %c0_53, %c0_54] : memref<9x4x128xbf16, #tpu.memory_space<vmem>>, vector<1x4x128xbf16>
    %47 = vector.shape_cast %46 : vector<1x4x128xbf16> to vector<4x128xbf16>
    %cst_55 = arith.constant dense<0.000000e+00> : vector<128x128xf32>
    %48 = tpu.matmul %45, %47, %cst_55 {dimension_numbers = #tpu.dot_dimension_numbers<[1], [0], [0], [1], [0, 0, 1, 1], [], []>} : vector<128x4xbf16>, vector<4x128xbf16>, vector<128x128xf32> -> vector<128x128xf32>
    %49 = arith.addf %42, %48 : vector<128x128xf32>
    %c1_56 = arith.constant 1 : index
    %c0_57 = arith.constant 0 : index
    %c1_58 = arith.constant 1 : index
    %c0_59 = arith.constant 0 : index
    %c0_60 = arith.constant 0 : index
    %50 = vector.load %arg1[%c1_56, %c0_57, %c1_58, %c0_59, %c0_60] : memref<4x2x9x9x4xbf16, #tpu.memory_space<vmem>>, vector<1x2x8x8x4xbf16>
    %51 = vector.shape_cast %50 : vector<1x2x8x8x4xbf16> to vector<2x8x8x4xbf16>
    %52 = vector.shape_cast %51 : vector<2x8x8x4xbf16> to vector<128x4xbf16>
    %c7 = arith.constant 7 : index
    %c0_61 = arith.constant 0 : index
    %c0_62 = arith.constant 0 : index
    %53 = vector.load %arg2[%c7, %c0_61, %c0_62] : memref<9x4x128xbf16, #tpu.memory_space<vmem>>, vector<1x4x128xbf16>
    %54 = vector.shape_cast %53 : vector<1x4x128xbf16> to vector<4x128xbf16>
    %cst_63 = arith.constant dense<0.000000e+00> : vector<128x128xf32>
    %55 = tpu.matmul %52, %54, %cst_63 {dimension_numbers = #tpu.dot_dimension_numbers<[1], [0], [0], [1], [0, 0, 1, 1], [], []>} : vector<128x4xbf16>, vector<4x128xbf16>, vector<128x128xf32> -> vector<128x128xf32>
    %56 = arith.addf %49, %55 : vector<128x128xf32>
    %c0_64 = arith.constant 0 : index
    %c0_65 = arith.constant 0 : index
    %c1_66 = arith.constant 1 : index
    %c1_67 = arith.constant 1 : index
    %c0_68 = arith.constant 0 : index
    %57 = vector.load %arg1[%c0_64, %c0_65, %c1_66, %c1_67, %c0_68] : memref<4x2x9x9x4xbf16, #tpu.memory_space<vmem>>, vector<1x2x8x8x4xbf16>
    %58 = vector.shape_cast %57 : vector<1x2x8x8x4xbf16> to vector<2x8x8x4xbf16>
    %59 = vector.shape_cast %58 : vector<2x8x8x4xbf16> to vector<128x4xbf16>
    %c8 = arith.constant 8 : index
    %c0_69 = arith.constant 0 : index
    %c0_70 = arith.constant 0 : index
    %60 = vector.load %arg2[%c8, %c0_69, %c0_70] : memref<9x4x128xbf16, #tpu.memory_space<vmem>>, vector<1x4x128xbf16>
    %61 = vector.shape_cast %60 : vector<1x4x128xbf16> to vector<4x128xbf16>
    %cst_71 = arith.constant dense<0.000000e+00> : vector<128x128xf32>
    %62 = tpu.matmul %59, %61, %cst_71 {dimension_numbers = #tpu.dot_dimension_numbers<[1], [0], [0], [1], [0, 0, 1, 1], [], []>} : vector<128x4xbf16>, vector<4x128xbf16>, vector<128x128xf32> -> vector<128x128xf32>
    %63 = arith.addf %56, %62 : vector<128x128xf32>
    %c0_72 = arith.constant 0 : index
    %c0_73 = arith.constant 0 : index
    %64 = vector.load %arg3[%c0_72, %c0_73] : memref<1x128xf32, #tpu.memory_space<vmem>>, vector<1x128xf32>
    %65 = vector.broadcast %64 : vector<1x128xf32> to vector<128x128xf32>
    %66 = arith.addf %63, %65 : vector<128x128xf32>
    %cst_74 = arith.constant 0.000000e+00 : f32
    %67 = vector.broadcast %cst_74 : f32 to vector<128x128xf32>
    %68 = arith.maximumf %66, %67 : vector<128x128xf32>
    %cst_75 = arith.constant 0.000000e+00 : bf16
    %69 = vector.broadcast %cst_75 : bf16 to vector<2x1x10x128xbf16>
    %cst_76 = arith.constant 0.000000e+00 : bf16
    %70 = vector.broadcast %cst_76 : bf16 to vector<2x8x1x128xbf16>
    %c0_77 = arith.constant 0 : index
    %c0_78 = arith.constant 0 : index
    %c0_79 = arith.constant 0 : index
    %c0_80 = arith.constant 0 : index
    %71 = vector.load %arg8[%c0_77, %c0_78, %c0_79, %c0_80] : memref<2x10x10x128xbf16, #tpu.memory_space<vmem>>, vector<2x1x10x128xbf16>
    tpu.vector_store %arg8[%c0_77, %c0_78, %c0_79, %c0_80], %69 {strides = array<i32>} : memref<2x10x10x128xbf16, #tpu.memory_space<vmem>>, vector<2x1x10x128xbf16>,
    %c0_81 = arith.constant 0 : index
    %c9 = arith.constant 9 : index
    %c0_82 = arith.constant 0 : index
    %c0_83 = arith.constant 0 : index
    %72 = vector.load %arg8[%c0_81, %c9, %c0_82, %c0_83] : memref<2x10x10x128xbf16, #tpu.memory_space<vmem>>, vector<2x1x10x128xbf16>
    tpu.vector_store %arg8[%c0_81, %c9, %c0_82, %c0_83], %69 {strides = array<i32>} : memref<2x10x10x128xbf16, #tpu.memory_space<vmem>>, vector<2x1x10x128xbf16>,
    %c0_84 = arith.constant 0 : index
    %c1_85 = arith.constant 1 : index
    %c0_86 = arith.constant 0 : index
    %c0_87 = arith.constant 0 : index
    %73 = vector.load %arg8[%c0_84, %c1_85, %c0_86, %c0_87] : memref<2x10x10x128xbf16, #tpu.memory_space<vmem>>, vector<2x8x1x128xbf16>
    tpu.vector_store %arg8[%c0_84, %c1_85, %c0_86, %c0_87], %70 {strides = array<i32>} : memref<2x10x10x128xbf16, #tpu.memory_space<vmem>>, vector<2x8x1x128xbf16>,
    %c0_88 = arith.constant 0 : index
    %c1_89 = arith.constant 1 : index
    %c9_90 = arith.constant 9 : index
    %c0_91 = arith.constant 0 : index
    %74 = vector.load %arg8[%c0_88, %c1_89, %c9_90, %c0_91] : memref<2x10x10x128xbf16, #tpu.memory_space<vmem>>, vector<2x8x1x128xbf16>
    tpu.vector_store %arg8[%c0_88, %c1_89, %c9_90, %c0_91], %70 {strides = array<i32>} : memref<2x10x10x128xbf16, #tpu.memory_space<vmem>>, vector<2x8x1x128xbf16>,
    %75 = vector.shape_cast %68 : vector<128x128xf32> to vector<2x8x8x128xf32>
    %76 = arith.truncf %75 : vector<2x8x8x128xf32> to vector<2x8x8x128xbf16>
    %c0_92 = arith.constant 0 : index
    %c1_93 = arith.constant 1 : index
    %c1_94 = arith.constant 1 : index
    %c0_95 = arith.constant 0 : index
    %77 = vector.load %arg8[%c0_92, %c1_93, %c1_94, %c0_95] : memref<2x10x10x128xbf16, #tpu.memory_space<vmem>>, vector<2x8x8x128xbf16>
    tpu.vector_store %arg8[%c0_92, %c1_93, %c1_94, %c0_95], %76 {strides = array<i32>} : memref<2x10x10x128xbf16, #tpu.memory_space<vmem>>, vector<2x8x8x128xbf16>,
    %c0_96 = arith.constant 0 : index
    %c0_97 = arith.constant 0 : index
    %c0_98 = arith.constant 0 : index
    %c0_99 = arith.constant 0 : index
    %78 = vector.load %arg8[%c0_96, %c0_97, %c0_98, %c0_99] : memref<2x10x10x128xbf16, #tpu.memory_space<vmem>>, vector<2x8x8x128xbf16>
    %c0_100 = arith.constant 0 : index
    %c0_101 = arith.constant 0 : index
    %c1_102 = arith.constant 1 : index
    %c0_103 = arith.constant 0 : index
    %79 = vector.load %arg8[%c0_100, %c0_101, %c1_102, %c0_103] : memref<2x10x10x128xbf16, #tpu.memory_space<vmem>>, vector<2x8x8x128xbf16>
    %c0_104 = arith.constant 0 : index
    %c0_105 = arith.constant 0 : index
    %c2_106 = arith.constant 2 : index
    %c0_107 = arith.constant 0 : index
    %80 = vector.load %arg8[%c0_104, %c0_105, %c2_106, %c0_107] : memref<2x10x10x128xbf16, #tpu.memory_space<vmem>>, vector<2x8x8x128xbf16>
    %c0_108 = arith.constant 0 : index
    %c1_109 = arith.constant 1 : index
    %c0_110 = arith.constant 0 : index
    %c0_111 = arith.constant 0 : index
    %81 = vector.load %arg8[%c0_108, %c1_109, %c0_110, %c0_111] : memref<2x10x10x128xbf16, #tpu.memory_space<vmem>>, vector<2x8x8x128xbf16>
    %c0_112 = arith.constant 0 : index
    %c1_113 = arith.constant 1 : index
    %c1_114 = arith.constant 1 : index
    %c0_115 = arith.constant 0 : index
    %82 = vector.load %arg8[%c0_112, %c1_113, %c1_114, %c0_115] : memref<2x10x10x128xbf16, #tpu.memory_space<vmem>>, vector<2x8x8x128xbf16>
    %c0_116 = arith.constant 0 : index
    %c1_117 = arith.constant 1 : index
    %c2_118 = arith.constant 2 : index
    %c0_119 = arith.constant 0 : index
    %83 = vector.load %arg8[%c0_116, %c1_117, %c2_118, %c0_119] : memref<2x10x10x128xbf16, #tpu.memory_space<vmem>>, vector<2x8x8x128xbf16>
    %c0_120 = arith.constant 0 : index
    %c2_121 = arith.constant 2 : index
    %c0_122 = arith.constant 0 : index
    %c0_123 = arith.constant 0 : index
    %84 = vector.load %arg8[%c0_120, %c2_121, %c0_122, %c0_123] : memref<2x10x10x128xbf16, #tpu.memory_space<vmem>>, vector<2x8x8x128xbf16>
    %c0_124 = arith.constant 0 : index
    %c2_125 = arith.constant 2 : index
    %c1_126 = arith.constant 1 : index
    %c0_127 = arith.constant 0 : index
    %85 = vector.load %arg8[%c0_124, %c2_125, %c1_126, %c0_127] : memref<2x10x10x128xbf16, #tpu.memory_space<vmem>>, vector<2x8x8x128xbf16>
    %c0_128 = arith.constant 0 : index
    %c2_129 = arith.constant 2 : index
    %c2_130 = arith.constant 2 : index
    %c0_131 = arith.constant 0 : index
    %86 = vector.load %arg8[%c0_128, %c2_129, %c2_130, %c0_131] : memref<2x10x10x128xbf16, #tpu.memory_space<vmem>>, vector<2x8x8x128xbf16>
    %87 = tpu.concatenate %78, %79, %80, %81, %82, %83, %84, %85, %86 in 3 : vector<2x8x8x128xbf16>, vector<2x8x8x128xbf16>, vector<2x8x8x128xbf16>, vector<2x8x8x128xbf16>, vector<2x8x8x128xbf16>, vector<2x8x8x128xbf16>, vector<2x8x8x128xbf16>, vector<2x8x8x128xbf16>, vector<2x8x8x128xbf16> -> vector<2x8x8x1152xbf16>
    %88 = vector.shape_cast %87 : vector<2x8x8x1152xbf16> to vector<128x1152xbf16>
    %c0_132 = arith.constant 0 : index
    %c0_133 = arith.constant 0 : index
    %89 = vector.load %arg4[%c0_132, %c0_133] : memref<1152x128xbf16, #tpu.memory_space<vmem>>, vector<1152x128xbf16>
    %cst_134 = arith.constant dense<0.000000e+00> : vector<128x128xf32>
    %90 = tpu.matmul %88, %89, %cst_134 {dimension_numbers = #tpu.dot_dimension_numbers<[1], [0], [0], [1], [0, 0, 1, 1], [], []>} : vector<128x1152xbf16>, vector<1152x128xbf16>, vector<128x128xf32> -> vector<128x128xf32>
    %c0_135 = arith.constant 0 : index
    %c0_136 = arith.constant 0 : index
    %91 = vector.load %arg5[%c0_135, %c0_136] : memref<1x128xf32, #tpu.memory_space<vmem>>, vector<1x128xf32>
    %92 = vector.broadcast %91 : vector<1x128xf32> to vector<128x128xf32>
    %93 = arith.addf %90, %92 : vector<128x128xf32>
    %c3_137 = arith.constant 3 : index
    %c0_138 = arith.constant 0 : index
    %c0_139 = arith.constant 0 : index
    %c0_140 = arith.constant 0 : index
    %c0_141 = arith.constant 0 : index
    %94 = vector.load %arg1[%c3_137, %c0_138, %c0_139, %c0_140, %c0_141] : memref<4x2x9x9x4xbf16, #tpu.memory_space<vmem>>, vector<1x2x8x8x4xbf16>
    %95 = vector.shape_cast %94 : vector<1x2x8x8x4xbf16> to vector<2x8x8x4xbf16>
    %96 = vector.shape_cast %95 : vector<2x8x8x4xbf16> to vector<128x4xbf16>
    %c0_142 = arith.constant 0 : index
    %c0_143 = arith.constant 0 : index
    %97 = vector.load %arg6[%c0_142, %c0_143] : memref<4x128xbf16, #tpu.memory_space<vmem>>, vector<4x128xbf16>
    %cst_144 = arith.constant dense<0.000000e+00> : vector<128x128xf32>
    %98 = tpu.matmul %96, %97, %cst_144 {dimension_numbers = #tpu.dot_dimension_numbers<[1], [0], [0], [1], [0, 0, 1, 1], [], []>} : vector<128x4xbf16>, vector<4x128xbf16>, vector<128x128xf32> -> vector<128x128xf32>
    %99 = arith.addf %93, %98 : vector<128x128xf32>
    %cst_145 = arith.constant 0.000000e+00 : f32
    %100 = vector.broadcast %cst_145 : f32 to vector<128x128xf32>
    %101 = arith.maximumf %99, %100 : vector<128x128xf32>
    %102 = vector.shape_cast %101 : vector<128x128xf32> to vector<2x8x8x128xf32>
    %103 = arith.truncf %102 : vector<2x8x8x128xf32> to vector<2x8x8x128xbf16>
    %c0_146 = arith.constant 0 : index
    %c0_147 = arith.constant 0 : index
    %c0_148 = arith.constant 0 : index
    %c0_149 = arith.constant 0 : index
    %104 = vector.load %arg7[%c0_146, %c0_147, %c0_148, %c0_149] : memref<2x8x8x128xbf16, #tpu.memory_space<vmem>>, vector<2x8x8x128xbf16>
    tpu.vector_store %arg7[%c0_146, %c0_147, %c0_148, %c0_149], %103 {strides = array<i32>} : memref<2x8x8x128xbf16, #tpu.memory_space<vmem>>, vector<2x8x8x128xbf16>,
    return
  }
  func.func @transform_0(%arg0: i32) -> (i32, i32, i32, i32, i32) {
    %c0_i32 = arith.constant 0 : i32
    %c0_i32_0 = arith.constant 0 : i32
    %c0_i32_1 = arith.constant 0 : i32
    %c0_i32_2 = arith.constant 0 : i32
    %c0_i32_3 = arith.constant 0 : i32
    return %c0_i32, %arg0, %c0_i32_0, %c0_i32_1, %c0_i32_2 : i32, i32, i32, i32, i32
  }
  func.func @transform_1(%arg0: i32) -> (i32, i32, i32) {
    %c0_i32 = arith.constant 0 : i32
    %c0_i32_0 = arith.constant 0 : i32
    %c0_i32_1 = arith.constant 0 : i32
    %c0_i32_2 = arith.constant 0 : i32
    return %c0_i32, %c0_i32_0, %c0_i32_1 : i32, i32, i32
  }
  func.func @transform_2(%arg0: i32) -> (i32, i32) {
    %c0_i32 = arith.constant 0 : i32
    %c0_i32_0 = arith.constant 0 : i32
    %c0_i32_1 = arith.constant 0 : i32
    return %c0_i32, %c0_i32_0 : i32, i32
  }
  func.func @transform_3(%arg0: i32) -> (i32, i32) {
    %c0_i32 = arith.constant 0 : i32
    %c0_i32_0 = arith.constant 0 : i32
    %c0_i32_1 = arith.constant 0 : i32
    return %c0_i32, %c0_i32_0 : i32, i32
  }
  func.func @transform_4(%arg0: i32) -> (i32, i32) {
    %c0_i32 = arith.constant 0 : i32
    %c0_i32_0 = arith.constant 0 : i32
    %c0_i32_1 = arith.constant 0 : i32
    return %c0_i32, %c0_i32_0 : i32, i32
  }
  func.func @transform_5(%arg0: i32) -> (i32, i32) {
    %c0_i32 = arith.constant 0 : i32
    %c0_i32_0 = arith.constant 0 : i32
    %c0_i32_1 = arith.constant 0 : i32
    return %c0_i32, %c0_i32_0 : i32, i32
  }
  func.func @transform_6(%arg0: i32) -> (i32, i32, i32, i32) {
    %c0_i32 = arith.constant 0 : i32
    %c0_i32_0 = arith.constant 0 : i32
    %c0_i32_1 = arith.constant 0 : i32
    %c0_i32_2 = arith.constant 0 : i32
    return %arg0, %c0_i32, %c0_i32_0, %c0_i32_1 : i32, i32, i32, i32
  }
}

</mosaic_0001>

<llo_original>
// kernel: basic_block_forward.1
$region0: #{basic_block_forward.1}
  #allocation0 [shape = 'u32[]', space=smem, size = 0x4, offset = 0x4, fixed_abs, tag = 'smem constant byte address 0x4 - core index']
  #allocation1 [shape = 'u32[144,128]{1,0:T(1,128)}', space=vmem, size = 0x12000, scoped, tag = 'internal scratch']
  #allocation2 [shape = 'bf16[2,10,10,128]{3,2,1,0:T(8,128)(2,1)}', space=vmem, size = 0x14000, scoped, tag = 'scratch operand']
  %s0 = inlined_call_operand.vmem [shape: bf16[4,2,9,9,4], index: 0, kind: input, shape index: {}]
  %s1 = inlined_call_operand.vmem [shape: bf16[9,4,128], index: 1, kind: input, shape index: {}]
  %s2 = inlined_call_operand.vmem [shape: f32[1,128], index: 2, kind: input, shape index: {}]
  %s3 = inlined_call_operand.vmem [shape: bf16[1152,128], index: 3, kind: input, shape index: {}]
  %s4 = inlined_call_operand.vmem [shape: f32[1,128], index: 4, kind: input, shape index: {}]
  %s5 = inlined_call_operand.vmem [shape: bf16[4,128], index: 5, kind: input, shape index: {}]
  %s6 = inlined_call_operand.vmem [shape: bf16[2,8,8,128], index: 6, kind: output, shape index: {}]
  %s7 = sld [smem:[#allocation0]]
  $region34: #{basic_block_forward.1} parent=0
    _
  %s9 = ssub.s32 1, %s7
  %s10 = scalar_select 0, %s9, %s7
  // Predicated region
  $region2: #{basic_block_forward.1} parent=0 // pred_check
    _
  $region3: #{basic_block_forward.1} parent=0 // pred_check_branch
    %12 = sbr.rel (0) target = $region5
  $region4: #{basic_block_forward.1} parent=0 // pred_region
    _
  $region5: #{basic_block_forward.1} parent=0 // pred_fallthru
    _
  // Predicated region
  $region6: #{basic_block_forward.1} parent=0 // pred_check
    _
  $region7: #{basic_block_forward.1} parent=0 // pred_check_branch
    %14 = sbr.rel (0) target = $region9
  $region8: #{basic_block_forward.1} parent=0 // pred_region
    _
  $region9: #{basic_block_forward.1} parent=0 // pred_fallthru
    _
  // Predicated region
  $region10: #{basic_block_forward.1} parent=0 // pred_check
    _
  $region11: #{basic_block_forward.1} parent=0 // pred_check_branch
    %16 = sbr.rel (0) target = $region13
  $region12: #{basic_block_forward.1} parent=0 // pred_region
    _
  $region13: #{basic_block_forward.1} parent=0 // pred_fallthru
    _
  // Predicated region
  $region14: #{basic_block_forward.1} parent=0 // pred_check
    _
  $region15: #{basic_block_forward.1} parent=0 // pred_check_branch
    %18 = sbr.rel (0) target = $region17
  $region16: #{basic_block_forward.1} parent=0 // pred_region
    _
  $region17: #{basic_block_forward.1} parent=0 // pred_fallthru
    _
  // Predicated region
  $region18: #{basic_block_forward.1} parent=0 // pred_check
    _
  $region19: #{basic_block_forward.1} parent=0 // pred_check_branch
    %20 = sbr.rel (0) target = $region21
  $region20: #{basic_block_forward.1} parent=0 // pred_region
    _
  $region21: #{basic_block_forward.1} parent=0 // pred_fallthru
    _
  // Predicated region
  $region22: #{basic_block_forward.1} parent=0 // pred_check
    _
  $region23: #{basic_block_forward.1} parent=0 // pred_check_branch
    %22 = sbr.rel (0) target = $region25
  $region24: #{basic_block_forward.1} parent=0 // pred_region
    _
  $region25: #{basic_block_forward.1} parent=0 // pred_fallthru
    _
  %v24 = vld [vmem:[%s0] sm:$0xf]
  %v25 = vld [vmem:[%s0 + $0x8] sm:$0xf]
  %v26 = vld [vmem:[%s0 + $0x10] sm:$0xf]
  %v27 = vld [vmem:[%s0 + $0x18] sm:$0xf]
  %v28 = vld [vmem:[%s0 + $0x20] sm:$0xf]
  %v29 = vld [vmem:[%s0 + $0x28] sm:$0xf]
  %v30 = vld [vmem:[%s0 + $0x30] sm:$0xf]
  %v31 = vld [vmem:[%s0 + $0x38] sm:$0xf]
  %v32 = vld [vmem:[%s0 + $0x48] sm:$0xf]
  %v33 = vld [vmem:[%s0 + $0x50] sm:$0xf]
  %v34 = vld [vmem:[%s0 + $0x58] sm:$0xf]
  %v35 = vld [vmem:[%s0 + $0x60] sm:$0xf]
  %v36 = vld [vmem:[%s0 + $0x68] sm:$0xf]
  %v37 = vld [vmem:[%s0 + $0x70] sm:$0xf]
  %v38 = vld [vmem:[%s0 + $0x78] sm:$0xf]
  %v39 = vld [vmem:[%s0 + $0x80] sm:$0xf]
  %v40 = vld [vmem:[%s1] sm:$0x3]
  %s41 = scalar_lea.vmem %s0, 144
  %v42 = vld [vmem:[%s41] sm:$0xf]
  %v43 = vld [vmem:[%s41 + $0x8] sm:$0xf]
  %v44 = vld [vmem:[%s41 + $0x10] sm:$0xf]
  %v45 = vld [vmem:[%s41 + $0x18] sm:$0xf]
  %v46 = vld [vmem:[%s41 + $0x20] sm:$0xf]
  %v47 = vld [vmem:[%s41 + $0x28] sm:$0xf]
  %v48 = vld [vmem:[%s41 + $0x30] sm:$0xf]
  %v49 = vld [vmem:[%s41 + $0x38] sm:$0xf]
  %v50 = vld [vmem:[%s41 + $0x48] sm:$0xf]
  %v51 = vld [vmem:[%s41 + $0x50] sm:$0xf]
  %v52 = vld [vmem:[%s41 + $0x58] sm:$0xf]
  %v53 = vld [vmem:[%s41 + $0x60] sm:$0xf]
  %v54 = vld [vmem:[%s41 + $0x68] sm:$0xf]
  %v55 = vld [vmem:[%s41 + $0x70] sm:$0xf]
  %v56 = vld [vmem:[%s41 + $0x78] sm:$0xf]
  %v57 = vld [vmem:[%s41 + $0x80] sm:$0xf]
  %s58 = scalar_lea.vmem %s1, 2
  %v59 = vld [vmem:[%s58] sm:$0x3]
  %v76 = vunpack.c.l.b16 %v42
  %v77 = vunpack.c.l.b16 %v43
  %v78 = vunpack.c.l.b16 %v44
  %v79 = vunpack.c.l.b16 %v45
  %v80 = vunpack.c.l.b16 %v46
  %v81 = vunpack.c.l.b16 %v47
  %v82 = vunpack.c.l.b16 %v48
  %v83 = vunpack.c.l.b16 %v49
  %v84 = vunpack.c.l.b16 %v50
  %v85 = vunpack.c.l.b16 %v51
  %v86 = vunpack.c.l.b16 %v52
  %v87 = vunpack.c.l.b16 %v53
  %v88 = vunpack.c.l.b16 %v54
  %v89 = vunpack.c.l.b16 %v55
  %v90 = vunpack.c.l.b16 %v56
  %v91 = vunpack.c.l.b16 %v57
  %v92 = vpack.c.b16 %v77, %v76
  %v93 = vpack.c.b16 %v79, %v78
  %v94 = vpack.c.b16 %v81, %v80
  %v95 = vpack.c.b16 %v83, %v82
  %v96 = vpack.c.b16 %v85, %v84
  %v97 = vpack.c.b16 %v87, %v86
  %v98 = vpack.c.b16 %v89, %v88
  %v99 = vpack.c.b16 %v91, %v90
  %vm100 = vcmask 31744
  %v102 = vsel %vm100, %v92, 0
  %v105 = vsel %vm100, %v93, 0
  %v108 = vsel %vm100, %v94, 0
  %v111 = vsel %vm100, %v95, 0
  %v114 = vsel %vm100, %v96, 0
  %v117 = vsel %vm100, %v97, 0
  %v120 = vsel %vm100, %v98, 0
  %v123 = vsel %vm100, %v99, 0
  %vm125 = vcmask 1041408
  %v127 = vsel %vm125, %v59, 0
  %129 = vmatprep.subr.bf16.mxu0 0
  %130 = vmatpush1.bf16.msra.mxu0 0
  %131 = vmatprep.subr.bf16.mxu0 0
  %132 = vmatpush1.bf16.msra.mxu0 0
  %133 = vmatprep.subr.bf16.mxu0 0
  %134 = vmatpush1.bf16.msra.mxu0 0
  %135 = vmatprep.subr.bf16.mxu0 0
  %136 = vmatpush1.bf16.msra.mxu0 0
  %137 = vmatprep.subr.bf16.mxu0 0
  %138 = vmatpush1.bf16.msra.mxu0 0
  %139 = vmatprep.subr.bf16.mxu0 0
  %140 = vmatpush1.bf16.msra.mxu0 0
  %141 = vmatprep.subr.bf16.mxu0 0
  %142 = vmatpush1.bf16.msra.mxu0 0
  %143 = vmatprep.subr.bf16.mxu0 0
  %144 = vmatpush1.bf16.msra.mxu0 %v127
  %145 = vmatprep.subr.bf16.mxu0 0
  %146 = vmatpush2.bf16.msra.mxu0 0
  %147 = vmatprep.subr.bf16.mxu0 0
  %148 = vmatpush2.bf16.msra.mxu0 0
  %149 = vmatprep.subr.bf16.mxu0 0
  %150 = vmatpush2.bf16.msra.mxu0 0
  %151 = vmatprep.subr.bf16.mxu0 0
  %152 = vmatpush2.bf16.msra.mxu0 0
  %153 = vmatprep.subr.bf16.mxu0 0
  %154 = vmatpush2.bf16.msra.mxu0 0
  %155 = vmatprep.subr.bf16.mxu0 0
  %156 = vmatpush2.bf16.msra.mxu0 0
  %157 = vmatprep.subr.bf16.mxu0 0
  %158 = vmatpush2.bf16.msra.mxu0 0
  %159 = vmatprep.subr.bf16.mxu0 0
  %160 = vmatpush2.bf16.msra.mxu0 0
  %161 = vmatprep.mubr.bf16.mxu0 0
  %162 = vmatmul.mubr.bf16.gmra.mxu0 %v102
  %v163 = vpop.f32.mrf.mxu0
  %v164 = vadd.f32 0.0, %v163
  %v165 = vpop.f32.mrf.mxu0
  %v166 = vpop.f32.mrf.mxu0
  %v167 = vadd.f32 0.0, %v166
  %v168 = vpop.f32.mrf.mxu0
  %169 = vmatprep.mubr.bf16.mxu0 0
  %170 = vmatmul.mubr.bf16.gmra.mxu0 %v105
  %v171 = vpop.f32.mrf.mxu0
  %v172 = vadd.f32 0.0, %v171
  %v173 = vpop.f32.mrf.mxu0
  %v174 = vpop.f32.mrf.mxu0
  %v175 = vadd.f32 0.0, %v174
  %v176 = vpop.f32.mrf.mxu0
  %177 = vmatprep.mubr.bf16.mxu0 0
  %178 = vmatmul.mubr.bf16.gmra.mxu0 %v108
  %v179 = vpop.f32.mrf.mxu0
  %v180 = vadd.f32 0.0, %v179
  %v181 = vpop.f32.mrf.mxu0
  %v182 = vpop.f32.mrf.mxu0
  %v183 = vadd.f32 0.0, %v182
  %v184 = vpop.f32.mrf.mxu0
  %185 = vmatprep.mubr.bf16.mxu0 0
  %186 = vmatmul.mubr.bf16.gmra.mxu0 %v111
  %v187 = vpop.f32.mrf.mxu0
  %v188 = vadd.f32 0.0, %v187
  %v189 = vpop.f32.mrf.mxu0
  %v190 = vpop.f32.mrf.mxu0
  %v191 = vadd.f32 0.0, %v190
  %v192 = vpop.f32.mrf.mxu0
  %193 = vmatprep.mubr.bf16.mxu0 0
  %194 = vmatmul.mubr.bf16.gmra.mxu0 %v114
  %v195 = vpop.f32.mrf.mxu0
  %v196 = vadd.f32 0.0, %v195
  %v197 = vpop.f32.mrf.mxu0
  %v198 = vpop.f32.mrf.mxu0
  %v199 = vadd.f32 0.0, %v198
  %v200 = vpop.f32.mrf.mxu0
  %201 = vmatprep.mubr.bf16.mxu0 0
  %202 = vmatmul.mubr.bf16.gmra.mxu0 %v117
  %v203 = vpop.f32.mrf.mxu0
  %v204 = vadd.f32 0.0, %v203
  %v205 = vpop.f32.mrf.mxu0
  %v206 = vpop.f32.mrf.mxu0
  %v207 = vadd.f32 0.0, %v206
  %v208 = vpop.f32.mrf.mxu0
  %209 = vmatprep.mubr.bf16.mxu0 0
  %210 = vmatmul.mubr.bf16.gmra.mxu0 %v120
  %v211 = vpop.f32.mrf.mxu0
  %v212 = vadd.f32 0.0, %v211
  %v213 = vpop.f32.mrf.mxu0
  %v214 = vpop.f32.mrf.mxu0
  %v215 = vadd.f32 0.0, %v214
  %v216 = vpop.f32.mrf.mxu0
  %217 = vmatprep.mubr.bf16.mxu0 0
  %218 = vmatmul.mubr.bf16.gmra.mxu0 %v123
  %v219 = vpop.f32.mrf.mxu0
  %v220 = vadd.f32 0.0, %v219
  %v221 = vpop.f32.mrf.mxu0
  %v222 = vpop.f32.mrf.mxu0
  %v223 = vadd.f32 0.0, %v222
  %v224 = vpop.f32.mrf.mxu0
  %225 = vdwg.mxu0
  %v242 = vunpack.c.l.b16 %v24
  %v243 = vunpack.c.l.b16 %v25
  %v244 = vunpack.c.l.b16 %v26
  %v245 = vunpack.c.l.b16 %v27
  %v246 = vunpack.c.l.b16 %v28
  %v247 = vunpack.c.l.b16 %v29
  %v248 = vunpack.c.l.b16 %v30
  %v249 = vunpack.c.l.b16 %v31
  %v250 = vunpack.c.l.b16 %v32
  %v251 = vunpack.c.l.b16 %v33
  %v252 = vunpack.c.l.b16 %v34
  %v253 = vunpack.c.l.b16 %v35
  %v254 = vunpack.c.l.b16 %v36
  %v255 = vunpack.c.l.b16 %v37
  %v256 = vunpack.c.l.b16 %v38
  %v257 = vunpack.c.l.b16 %v39
  %v258 = vpack.c.b16 %v243, %v242
  %v259 = vpack.c.b16 %v245, %v244
  %v260 = vpack.c.b16 %v247, %v246
  %v261 = vpack.c.b16 %v249, %v248
  %v262 = vpack.c.b16 %v251, %v250
  %v263 = vpack.c.b16 %v253, %v252
  %v264 = vpack.c.b16 %v255, %v254
  %v265 = vpack.c.b16 %v257, %v256
  %v267 = vsel %vm100, %v258, 0
  %v270 = vsel %vm100, %v259, 0
  %v273 = vsel %vm100, %v260, 0
  %v276 = vsel %vm100, %v261, 0
  %v279 = vsel %vm100, %v262, 0
  %v282 = vsel %vm100, %v263, 0
  %v285 = vsel %vm100, %v264, 0
  %v288 = vsel %vm100, %v265, 0
  %v291 = vsel %vm125, %v40, 0
  %293 = vmatprep.subr.bf16.mxu0 0
  %294 = vmatpush1.bf16.msra.mxu0 0
  %295 = vmatprep.subr.bf16.mxu0 0
  %296 = vmatpush1.bf16.msra.mxu0 0
  %297 = vmatprep.subr.bf16.mxu0 0
  %298 = vmatpush1.bf16.msra.mxu0 0
  %299 = vmatprep.subr.bf16.mxu0 0
  %300 = vmatpush1.bf16.msra.mxu0 0
  %301 = vmatprep.subr.bf16.mxu0 0
  %302 = vmatpush1.bf16.msra.mxu0 0
  %303 = vmatprep.subr.bf16.mxu0 0
  %304 = vmatpush1.bf16.msra.mxu0 0
  %305 = vmatprep.subr.bf16.mxu0 0
  %306 = vmatpush1.bf16.msra.mxu0 0
  %307 = vmatprep.subr.bf16.mxu0 0
  %308 = vmatpush1.bf16.msra.mxu0 %v291
  %309 = vmatprep.subr.bf16.mxu0 0
  %310 = vmatpush2.bf16.msra.mxu0 0
  %311 = vmatprep.subr.bf16.mxu0 0
  %312 = vmatpush2.bf16.msra.mxu0 0
  %313 = vmatprep.subr.bf16.mxu0 0
  %314 = vmatpush2.bf16.msra.mxu0 0
  %315 = vmatprep.subr.bf16.mxu0 0
  %316 = vmatpush2.bf16.msra.mxu0 0
  %317 = vmatprep.subr.bf16.mxu0 0
  %318 = vmatpush2.bf16.msra.mxu0 0
  %319 = vmatprep.subr.bf16.mxu0 0
  %320 = vmatpush2.bf16.msra.mxu0 0
  %321 = vmatprep.subr.bf16.mxu0 0
  %322 = vmatpush2.bf16.msra.mxu0 0
  %323 = vmatprep.subr.bf16.mxu0 0
  %324 = vmatpush2.bf16.msra.mxu0 0
  %325 = vmatprep.mubr.bf16.mxu0 0
  %326 = vmatmul.mubr.bf16.gmra.mxu0 %v267
  %v327 = vpop.f32.mrf.mxu0
  %v328 = vadd.f32 %v164, %v327
  %v329 = vpop.f32.mrf.mxu0
  %v330 = vpop.f32.mrf.mxu0
  %v331 = vadd.f32 %v167, %v330
  %v332 = vpop.f32.mrf.mxu0
  %333 = vmatprep.mubr.bf16.mxu0 0
  %334 = vmatmul.mubr.bf16.gmra.mxu0 %v270
  %v335 = vpop.f32.mrf.mxu0
  %v336 = vadd.f32 %v172, %v335
  %v337 = vpop.f32.mrf.mxu0
  %v338 = vpop.f32.mrf.mxu0
  %v339 = vadd.f32 %v175, %v338
  %v340 = vpop.f32.mrf.mxu0
  %341 = vmatprep.mubr.bf16.mxu0 0
  %342 = vmatmul.mubr.bf16.gmra.mxu0 %v273
  %v343 = vpop.f32.mrf.mxu0
  %v344 = vadd.f32 %v180, %v343
  %v345 = vpop.f32.mrf.mxu0
  %v346 = vpop.f32.mrf.mxu0
  %v347 = vadd.f32 %v183, %v346
  %v348 = vpop.f32.mrf.mxu0
  %349 = vmatprep.mubr.bf16.mxu0 0
  %350 = vmatmul.mubr.bf16.gmra.mxu0 %v276
  %v351 = vpop.f32.mrf.mxu0
  %v352 = vadd.f32 %v188, %v351
  %v353 = vpop.f32.mrf.mxu0
  %v354 = vpop.f32.mrf.mxu0
  %v355 = vadd.f32 %v191, %v354
  %v356 = vpop.f32.mrf.mxu0
  %357 = vmatprep.mubr.bf16.mxu0 0
  %358 = vmatmul.mubr.bf16.gmra.mxu0 %v279
  %v359 = vpop.f32.mrf.mxu0
  %v360 = vadd.f32 %v196, %v359
  %v361 = vpop.f32.mrf.mxu0
  %v362 = vpop.f32.mrf.mxu0
  %v363 = vadd.f32 %v199, %v362
  %v364 = vpop.f32.mrf.mxu0
  %365 = vmatprep.mubr.bf16.mxu0 0
  %366 = vmatmul.mubr.bf16.gmra.mxu0 %v282
  %v367 = vpop.f32.mrf.mxu0
  %v368 = vadd.f32 %v204, %v367
  %v369 = vpop.f32.mrf.mxu0
  %v370 = vpop.f32.mrf.mxu0
  %v371 = vadd.f32 %v207, %v370
  %v372 = vpop.f32.mrf.mxu0
  %373 = vmatprep.mubr.bf16.mxu0 0
  %374 = vmatmul.mubr.bf16.gmra.mxu0 %v285
  %v375 = vpop.f32.mrf.mxu0
  %v376 = vadd.f32 %v212, %v375
  %v377 = vpop.f32.mrf.mxu0
  %v378 = vpop.f32.mrf.mxu0
  %v379 = vadd.f32 %v215, %v378
  %v380 = vpop.f32.mrf.mxu0
  %381 = vmatprep.mubr.bf16.mxu0 0
  %382 = vmatmul.mubr.bf16.gmra.mxu0 %v288
  %v383 = vpop.f32.mrf.mxu0
  %v384 = vadd.f32 %v220, %v383
  %v385 = vpop.f32.mrf.mxu0
  %v386 = vpop.f32.mrf.mxu0
  %v387 = vadd.f32 %v223, %v386
  %v388 = vpop.f32.mrf.mxu0
  %389 = vdwg.mxu0
  %v390 = vld [vmem:[%s0] sm:$0xf]
  %v391 = vld [vmem:[%s0 + $0x4] sm:$0x1]
  %v392 = vld [vmem:[%s0 + $0x8] sm:$0xf]
  %v393 = vld [vmem:[%s0 + $0xc] sm:$0x1]
  %v394 = vld [vmem:[%s0 + $0x10] sm:$0xf]
  %v395 = vld [vmem:[%s0 + $0x14] sm:$0x1]
  %v396 = vld [vmem:[%s0 + $0x18] sm:$0xf]
  %v397 = vld [vmem:[%s0 + $0x1c] sm:$0x1]
  %v398 = vld [vmem:[%s0 + $0x20] sm:$0xf]
  %v399 = vld [vmem:[%s0 + $0x24] sm:$0x1]
  %v400 = vld [vmem:[%s0 + $0x28] sm:$0xf]
  %v401 = vld [vmem:[%s0 + $0x2c] sm:$0x1]
  %v402 = vld [vmem:[%s0 + $0x30] sm:$0xf]
  %v403 = vld [vmem:[%s0 + $0x34] sm:$0x1]
  %v404 = vld [vmem:[%s0 + $0x38] sm:$0xf]
  %v405 = vld [vmem:[%s0 + $0x3c] sm:$0x1]
  %v406 = vld [vmem:[%s0 + $0x48] sm:$0xf]
  %v407 = vld [vmem:[%s0 + $0x4c] sm:$0x1]
  %v408 = vld [vmem:[%s0 + $0x50] sm:$0xf]
  %v409 = vld [vmem:[%s0 + $0x54] sm:$0x1]
  %v410 = vld [vmem:[%s0 + $0x58] sm:$0xf]
  %v411 = vld [vmem:[%s0 + $0x5c] sm:$0x1]
  %v412 = vld [vmem:[%s0 + $0x60] sm:$0xf]
  %v413 = vld [vmem:[%s0 + $0x64] sm:$0x1]
  %v414 = vld [vmem:[%s0 + $0x68] sm:$0xf]
  %v415 = vld [vmem:[%s0 + $0x6c] sm:$0x1]
  %v416 = vld [vmem:[%s0 + $0x70] sm:$0xf]
  %v417 = vld [vmem:[%s0 + $0x74] sm:$0x1]
  %v418 = vld [vmem:[%s0 + $0x78] sm:$0xf]
  %v419 = vld [vmem:[%s0 + $0x7c] sm:$0x1]
  %v420 = vld [vmem:[%s0 + $0x80] sm:$0xf]
  %v421 = vld [vmem:[%s0 + $0x84] sm:$0x1]
  %vm422 = vsmask.f32 3328
  %vm423 = vsmask.f32 7440
  %vm424 = vmor %vm422, %vm423
  %v426 = vshrl.u32 %v390, 16
  %v428 = vrot.slane %v426, 4
  %v429 = vshll.u32 %v390, 16
  %v431 = vrot.slane %v429, 5
  %v432 = vor.u32 %v428, %v431
  %v433 = vrot.slane %v432, 4
  %v435 = vshll.u32 %v391, 16
  %v437 = vrot.slane %v435, 5
  %v438 = vsel %vm424, %v433, %v437
  %v440 = vshrl.u32 %v392, 16
  %v442 = vrot.slane %v440, 4
  %v443 = vshll.u32 %v392, 16
  %v445 = vrot.slane %v443, 5
  %v446 = vor.u32 %v442, %v445
  %v447 = vrot.slane %v446, 4
  %v449 = vshll.u32 %v393, 16
  %v451 = vrot.slane %v449, 5
  %v452 = vsel %vm424, %v447, %v451
  %v454 = vshrl.u32 %v394, 16
  %v456 = vrot.slane %v454, 4
  %v457 = vshll.u32 %v394, 16
  %v459 = vrot.slane %v457, 5
  %v460 = vor.u32 %v456, %v459
  %v461 = vrot.slane %v460, 4
  %v463 = vshll.u32 %v395, 16
  %v465 = vrot.slane %v463, 5
  %v466 = vsel %vm424, %v461, %v465
  %v468 = vshrl.u32 %v396, 16
  %v470 = vrot.slane %v468, 4
  %v471 = vshll.u32 %v396, 16
  %v473 = vrot.slane %v471, 5
  %v474 = vor.u32 %v470, %v473
  %v475 = vrot.slane %v474, 4
  %v477 = vshll.u32 %v397, 16
  %v479 = vrot.slane %v477, 5
  %v480 = vsel %vm424, %v475, %v479
  %v482 = vshrl.u32 %v398, 16
  %v484 = vrot.slane %v482, 4
  %v485 = vshll.u32 %v398, 16
  %v487 = vrot.slane %v485, 5
  %v488 = vor.u32 %v484, %v487
  %v489 = vrot.slane %v488, 4
  %v491 = vshll.u32 %v399, 16
  %v493 = vrot.slane %v491, 5
  %v494 = vsel %vm424, %v489, %v493
  %v496 = vshrl.u32 %v400, 16
  %v498 = vrot.slane %v496, 4
  %v499 = vshll.u32 %v400, 16
  %v501 = vrot.slane %v499, 5
  %v502 = vor.u32 %v498, %v501
  %v503 = vrot.slane %v502, 4
  %v505 = vshll.u32 %v401, 16
  %v507 = vrot.slane %v505, 5
  %v508 = vsel %vm424, %v503, %v507
  %v510 = vshrl.u32 %v402, 16
  %v512 = vrot.slane %v510, 4
  %v513 = vshll.u32 %v402, 16
  %v515 = vrot.slane %v513, 5
  %v516 = vor.u32 %v512, %v515
  %v517 = vrot.slane %v516, 4
  %v519 = vshll.u32 %v403, 16
  %v521 = vrot.slane %v519, 5
  %v522 = vsel %vm424, %v517, %v521
  %v524 = vshrl.u32 %v404, 16
  %v526 = vrot.slane %v524, 4
  %v527 = vshll.u32 %v404, 16
  %v529 = vrot.slane %v527, 5
  %v530 = vor.u32 %v526, %v529
  %v531 = vrot.slane %v530, 4
  %v533 = vshll.u32 %v405, 16
  %v535 = vrot.slane %v533, 5
  %v536 = vsel %vm424, %v531, %v535
  %v538 = vshrl.u32 %v406, 16
  %v540 = vrot.slane %v538, 4
  %v541 = vshll.u32 %v406, 16
  %v543 = vrot.slane %v541, 5
  %v544 = vor.u32 %v540, %v543
  %v545 = vrot.slane %v544, 4
  %v547 = vshll.u32 %v407, 16
  %v549 = vrot.slane %v547, 5
  %v550 = vsel %vm424, %v545, %v549
  %v552 = vshrl.u32 %v408, 16
  %v554 = vrot.slane %v552, 4
  %v555 = vshll.u32 %v408, 16
  %v557 = vrot.slane %v555, 5
  %v558 = vor.u32 %v554, %v557
  %v559 = vrot.slane %v558, 4
  %v561 = vshll.u32 %v409, 16
  %v563 = vrot.slane %v561, 5
  %v564 = vsel %vm424, %v559, %v563
  %v566 = vshrl.u32 %v410, 16
  %v568 = vrot.slane %v566, 4
  %v569 = vshll.u32 %v410, 16
  %v571 = vrot.slane %v569, 5
  %v572 = vor.u32 %v568, %v571
  %v573 = vrot.slane %v572, 4
  %v575 = vshll.u32 %v411, 16
  %v577 = vrot.slane %v575, 5
  %v578 = vsel %vm424, %v573, %v577
  %v580 = vshrl.u32 %v412, 16
  %v582 = vrot.slane %v580, 4
  %v583 = vshll.u32 %v412, 16
  %v585 = vrot.slane %v583, 5
  %v586 = vor.u32 %v582, %v585
  %v587 = vrot.slane %v586, 4
  %v589 = vshll.u32 %v413, 16
  %v591 = vrot.slane %v589, 5
  %v592 = vsel %vm424, %v587, %v591
  %v594 = vshrl.u32 %v414, 16
  %v596 = vrot.slane %v594, 4
  %v597 = vshll.u32 %v414, 16
  %v599 = vrot.slane %v597, 5
  %v600 = vor.u32 %v596, %v599
  %v601 = vrot.slane %v600, 4
  %v603 = vshll.u32 %v415, 16
  %v605 = vrot.slane %v603, 5
  %v606 = vsel %vm424, %v601, %v605
  %v608 = vshrl.u32 %v416, 16
  %v610 = vrot.slane %v608, 4
  %v611 = vshll.u32 %v416, 16
  %v613 = vrot.slane %v611, 5
  %v614 = vor.u32 %v610, %v613
  %v615 = vrot.slane %v614, 4
  %v617 = vshll.u32 %v417, 16
  %v619 = vrot.slane %v617, 5
  %v620 = vsel %vm424, %v615, %v619
  %v622 = vshrl.u32 %v418, 16
  %v624 = vrot.slane %v622, 4
  %v625 = vshll.u32 %v418, 16
  %v627 = vrot.slane %v625, 5
  %v628 = vor.u32 %v624, %v627
  %v629 = vrot.slane %v628, 4
  %v631 = vshll.u32 %v419, 16
  %v633 = vrot.slane %v631, 5
  %v634 = vsel %vm424, %v629, %v633
  %v636 = vshrl.u32 %v420, 16
  %v638 = vrot.slane %v636, 4
  %v639 = vshll.u32 %v420, 16
  %v641 = vrot.slane %v639, 5
  %v642 = vor.u32 %v638, %v641
  %v643 = vrot.slane %v642, 4
  %v645 = vshll.u32 %v421, 16
  %v647 = vrot.slane %v645, 5
  %v648 = vsel %vm424, %v643, %v647
  %s649 = scalar_lea.vmem %s1, 4
  %v650 = vld [vmem:[%s649] sm:$0x3]
  %v651 = vunpack.c.l.b16 %v438
  %v652 = vunpack.c.l.b16 %v452
  %v653 = vunpack.c.l.b16 %v466
  %v654 = vunpack.c.l.b16 %v480
  %v655 = vunpack.c.l.b16 %v494
  %v656 = vunpack.c.l.b16 %v508
  %v657 = vunpack.c.l.b16 %v522
  %v658 = vunpack.c.l.b16 %v536
  %v659 = vunpack.c.l.b16 %v550
  %v660 = vunpack.c.l.b16 %v564
  %v661 = vunpack.c.l.b16 %v578
  %v662 = vunpack.c.l.b16 %v592
  %v663 = vunpack.c.l.b16 %v606
  %v664 = vunpack.c.l.b16 %v620
  %v665 = vunpack.c.l.b16 %v634
  %v666 = vunpack.c.l.b16 %v648
  %v667 = vpack.c.b16 %v652, %v651
  %v668 = vpack.c.b16 %v654, %v653
  %v669 = vpack.c.b16 %v656, %v655
  %v670 = vpack.c.b16 %v658, %v657
  %v671 = vpack.c.b16 %v660, %v659
  %v672 = vpack.c.b16 %v662, %v661
  %v673 = vpack.c.b16 %v664, %v663
  %v674 = vpack.c.b16 %v666, %v665
  %v676 = vsel %vm100, %v667, 0
  %v679 = vsel %vm100, %v668, 0
  %v682 = vsel %vm100, %v669, 0
  %v685 = vsel %vm100, %v670, 0
  %v688 = vsel %vm100, %v671, 0
  %v691 = vsel %vm100, %v672, 0
  %v694 = vsel %vm100, %v673, 0
  %v697 = vsel %vm100, %v674, 0
  %v700 = vsel %vm125, %v650, 0
  %702 = vmatprep.subr.bf16.mxu0 0
  %703 = vmatpush1.bf16.msra.mxu0 0
  %704 = vmatprep.subr.bf16.mxu0 0
  %705 = vmatpush1.bf16.msra.mxu0 0
  %706 = vmatprep.subr.bf16.mxu0 0
  %707 = vmatpush1.bf16.msra.mxu0 0
  %708 = vmatprep.subr.bf16.mxu0 0
  %709 = vmatpush1.bf16.msra.mxu0 0
  %710 = vmatprep.subr.bf16.mxu0 0
  %711 = vmatpush1.bf16.msra.mxu0 0
  %712 = vmatprep.subr.bf16.mxu0 0
  %713 = vmatpush1.bf16.msra.mxu0 0
  %714 = vmatprep.subr.bf16.mxu0 0
  %715 = vmatpush1.bf16.msra.mxu0 0
  %716 = vmatprep.subr.bf16.mxu0 0
  %717 = vmatpush1.bf16.msra.mxu0 %v700
  %718 = vmatprep.subr.bf16.mxu0 0
  %719 = vmatpush2.bf16.msra.mxu0 0
  %720 = vmatprep.subr.bf16.mxu0 0
  %721 = vmatpush2.bf16.msra.mxu0 0
  %722 = vmatprep.subr.bf16.mxu0 0
  %723 = vmatpush2.bf16.msra.mxu0 0
  %724 = vmatprep.subr.bf16.mxu0 0
  %725 = vmatpush2.bf16.msra.mxu0 0
  %726 = vmatprep.subr.bf16.mxu0 0
  %727 = vmatpush2.bf16.msra.mxu0 0
  %728 = vmatprep.subr.bf16.mxu0 0
  %729 = vmatpush2.bf16.msra.mxu0 0
  %730 = vmatprep.subr.bf16.mxu0 0
  %731 = vmatpush2.bf16.msra.mxu0 0
  %732 = vmatprep.subr.bf16.mxu0 0
  %733 = vmatpush2.bf16.msra.mxu0 0
  %734 = vmatprep.mubr.bf16.mxu0 0
  %735 = vmatmul.mubr.bf16.gmra.mxu0 %v676
  %v736 = vpop.f32.mrf.mxu0
  %v737 = vadd.f32 0.0, %v736
  %v738 = vpop.f32.mrf.mxu0
  %v739 = vpop.f32.mrf.mxu0
  %v740 = vadd.f32 0.0, %v739
  %v741 = vpop.f32.mrf.mxu0
  %742 = vmatprep.mubr.bf16.mxu0 0
  %743 = vmatmul.mubr.bf16.gmra.mxu0 %v679
  %v744 = vpop.f32.mrf.mxu0
  %v745 = vadd.f32 0.0, %v744
  %v746 = vpop.f32.mrf.mxu0
  %v747 = vpop.f32.mrf.mxu0
  %v748 = vadd.f32 0.0, %v747
  %v749 = vpop.f32.mrf.mxu0
  %750 = vmatprep.mubr.bf16.mxu0 0
  %751 = vmatmul.mubr.bf16.gmra.mxu0 %v682
  %v752 = vpop.f32.mrf.mxu0
  %v753 = vadd.f32 0.0, %v752
  %v754 = vpop.f32.mrf.mxu0
  %v755 = vpop.f32.mrf.mxu0
  %v756 = vadd.f32 0.0, %v755
  %v757 = vpop.f32.mrf.mxu0
  %758 = vmatprep.mubr.bf16.mxu0 0
  %759 = vmatmul.mubr.bf16.gmra.mxu0 %v685
  %v760 = vpop.f32.mrf.mxu0
  %v761 = vadd.f32 0.0, %v760
  %v762 = vpop.f32.mrf.mxu0
  %v763 = vpop.f32.mrf.mxu0
  %v764 = vadd.f32 0.0, %v763
  %v765 = vpop.f32.mrf.mxu0
  %766 = vmatprep.mubr.bf16.mxu0 0
  %767 = vmatmul.mubr.bf16.gmra.mxu0 %v688
  %v768 = vpop.f32.mrf.mxu0
  %v769 = vadd.f32 0.0, %v768
  %v770 = vpop.f32.mrf.mxu0
  %v771 = vpop.f32.mrf.mxu0
  %v772 = vadd.f32 0.0, %v771
  %v773 = vpop.f32.mrf.mxu0
  %774 = vmatprep.mubr.bf16.mxu0 0
  %775 = vmatmul.mubr.bf16.gmra.mxu0 %v691
  %v776 = vpop.f32.mrf.mxu0
  %v777 = vadd.f32 0.0, %v776
  %v778 = vpop.f32.mrf.mxu0
  %v779 = vpop.f32.mrf.mxu0
  %v780 = vadd.f32 0.0, %v779
  %v781 = vpop.f32.mrf.mxu0
  %782 = vmatprep.mubr.bf16.mxu0 0
  %783 = vmatmul.mubr.bf16.gmra.mxu0 %v694
  %v784 = vpop.f32.mrf.mxu0
  %v785 = vadd.f32 0.0, %v784
  %v786 = vpop.f32.mrf.mxu0
  %v787 = vpop.f32.mrf.mxu0
  %v788 = vadd.f32 0.0, %v787
  %v789 = vpop.f32.mrf.mxu0
  %790 = vmatprep.mubr.bf16.mxu0 0
  %791 = vmatmul.mubr.bf16.gmra.mxu0 %v697
  %v792 = vpop.f32.mrf.mxu0
  %v793 = vadd.f32 0.0, %v792
  %v794 = vpop.f32.mrf.mxu0
  %v795 = vpop.f32.mrf.mxu0
  %v796 = vadd.f32 0.0, %v795
  %v797 = vpop.f32.mrf.mxu0
  %798 = vdwg.mxu0
  %v799 = vadd.f32 %v328, %v737
  %v800 = vadd.f32 %v331, %v740
  %v801 = vadd.f32 %v336, %v745
  %v802 = vadd.f32 %v339, %v748
  %v803 = vadd.f32 %v344, %v753
  %v804 = vadd.f32 %v347, %v756
  %v805 = vadd.f32 %v352, %v761
  %v806 = vadd.f32 %v355, %v764
  %v807 = vadd.f32 %v360, %v769
  %v808 = vadd.f32 %v363, %v772
  %v809 = vadd.f32 %v368, %v777
  %v810 = vadd.f32 %v371, %v780
  %v811 = vadd.f32 %v376, %v785
  %v812 = vadd.f32 %v379, %v788
  %v813 = vadd.f32 %v384, %v793
  %v814 = vadd.f32 %v387, %v796
  %s815 = scalar_lea.vmem %s0, 288
  %v816 = vld [vmem:[%s815] sm:$0xf]
  %v817 = vld [vmem:[%s815 + $0x8] sm:$0xf]
  %v818 = vld [vmem:[%s815 + $0x10] sm:$0xf]
  %v819 = vld [vmem:[%s815 + $0x18] sm:$0xf]
  %v820 = vld [vmem:[%s815 + $0x20] sm:$0xf]
  %v821 = vld [vmem:[%s815 + $0x28] sm:$0xf]
  %v822 = vld [vmem:[%s815 + $0x30] sm:$0xf]
  %v823 = vld [vmem:[%s815 + $0x38] sm:$0xf]
  %v824 = vld [vmem:[%s815 + $0x48] sm:$0xf]
  %v825 = vld [vmem:[%s815 + $0x50] sm:$0xf]
  %v826 = vld [vmem:[%s815 + $0x58] sm:$0xf]
  %v827 = vld [vmem:[%s815 + $0x60] sm:$0xf]
  %v828 = vld [vmem:[%s815 + $0x68] sm:$0xf]
  %v829 = vld [vmem:[%s815 + $0x70] sm:$0xf]
  %v830 = vld [vmem:[%s815 + $0x78] sm:$0xf]
  %v831 = vld [vmem:[%s815 + $0x80] sm:$0xf]
  %s832 = scalar_lea.vmem %s1, 6
  %v833 = vld [vmem:[%s832] sm:$0x3]
  %v850 = vunpack.c.l.b16 %v816
  %v851 = vunpack.c.l.b16 %v817
  %v852 = vunpack.c.l.b16 %v818
  %v853 = vunpack.c.l.b16 %v819
  %v854 = vunpack.c.l.b16 %v820
  %v855 = vunpack.c.l.b16 %v821
  %v856 = vunpack.c.l.b16 %v822
  %v857 = vunpack.c.l.b16 %v823
  %v858 = vunpack.c.l.b16 %v824
  %v859 = vunpack.c.l.b16 %v825
  %v860 = vunpack.c.l.b16 %v826
  %v861 = vunpack.c.l.b16 %v827
  %v862 = vunpack.c.l.b16 %v828
  %v863 = vunpack.c.l.b16 %v829
  %v864 = vunpack.c.l.b16 %v830
  %v865 = vunpack.c.l.b16 %v831
  %v866 = vpack.c.b16 %v851, %v850
  %v867 = vpack.c.b16 %v853, %v852
  %v868 = vpack.c.b16 %v855, %v854
  %v869 = vpack.c.b16 %v857, %v856
  %v870 = vpack.c.b16 %v859, %v858
  %v871 = vpack.c.b16 %v861, %v860
  %v872 = vpack.c.b16 %v863, %v862
  %v873 = vpack.c.b16 %v865, %v864
  %v875 = vsel %vm100, %v866, 0
  %v878 = vsel %vm100, %v867, 0
  %v881 = vsel %vm100, %v868, 0
  %v884 = vsel %vm100, %v869, 0
  %v887 = vsel %vm100, %v870, 0
  %v890 = vsel %vm100, %v871, 0
  %v893 = vsel %vm100, %v872, 0
  %v896 = vsel %vm100, %v873, 0
  %v899 = vsel %vm125, %v833, 0
  %901 = vmatprep.subr.bf16.mxu0 0
  %902 = vmatpush1.bf16.msra.mxu0 0
  %903 = vmatprep.subr.bf16.mxu0 0
  %904 = vmatpush1.bf16.msra.mxu0 0
  %905 = vmatprep.subr.bf16.mxu0 0
  %906 = vmatpush1.bf16.msra.mxu0 0
  %907 = vmatprep.subr.bf16.mxu0 0
  %908 = vmatpush1.bf16.msra.mxu0 0
  %909 = vmatprep.subr.bf16.mxu0 0
  %910 = vmatpush1.bf16.msra.mxu0 0
  %911 = vmatprep.subr.bf16.mxu0 0
  %912 = vmatpush1.bf16.msra.mxu0 0
  %913 = vmatprep.subr.bf16.mxu0 0
  %914 = vmatpush1.bf16.msra.mxu0 0
  %915 = vmatprep.subr.bf16.mxu0 0
  %916 = vmatpush1.bf16.msra.mxu0 %v899
  %917 = vmatprep.subr.bf16.mxu0 0
  %918 = vmatpush2.bf16.msra.mxu0 0
  %919 = vmatprep.subr.bf16.mxu0 0
  %920 = vmatpush2.bf16.msra.mxu0 0
  %921 = vmatprep.subr.bf16.mxu0 0
  %922 = vmatpush2.bf16.msra.mxu0 0
  %923 = vmatprep.subr.bf16.mxu0 0
  %924 = vmatpush2.bf16.msra.mxu0 0
  %925 = vmatprep.subr.bf16.mxu0 0
  %926 = vmatpush2.bf16.msra.mxu0 0
  %927 = vmatprep.subr.bf16.mxu0 0
  %928 = vmatpush2.bf16.msra.mxu0 0
  %929 = vmatprep.subr.bf16.mxu0 0
  %930 = vmatpush2.bf16.msra.mxu0 0
  %931 = vmatprep.subr.bf16.mxu0 0
  %932 = vmatpush2.bf16.msra.mxu0 0
  %933 = vmatprep.mubr.bf16.mxu0 0
  %934 = vmatmul.mubr.bf16.gmra.mxu0 %v875
  %v935 = vpop.f32.mrf.mxu0
  %v936 = vadd.f32 0.0, %v935
  %v937 = vpop.f32.mrf.mxu0
  %v938 = vpop.f32.mrf.mxu0
  %v939 = vadd.f32 0.0, %v938
  %v940 = vpop.f32.mrf.mxu0
  %941 = vmatprep.mubr.bf16.mxu0 0
  %942 = vmatmul.mubr.bf16.gmra.mxu0 %v878
  %v943 = vpop.f32.mrf.mxu0
  %v944 = vadd.f32 0.0, %v943
  %v945 = vpop.f32.mrf.mxu0
  %v946 = vpop.f32.mrf.mxu0
  %v947 = vadd.f32 0.0, %v946
  %v948 = vpop.f32.mrf.mxu0
  %949 = vmatprep.mubr.bf16.mxu0 0
  %950 = vmatmul.mubr.bf16.gmra.mxu0 %v881
  %v951 = vpop.f32.mrf.mxu0
  %v952 = vadd.f32 0.0, %v951
  %v953 = vpop.f32.mrf.mxu0
  %v954 = vpop.f32.mrf.mxu0
  %v955 = vadd.f32 0.0, %v954
  %v956 = vpop.f32.mrf.mxu0
  %957 = vmatprep.mubr.bf16.mxu0 0
  %958 = vmatmul.mubr.bf16.gmra.mxu0 %v884
  %v959 = vpop.f32.mrf.mxu0
  %v960 = vadd.f32 0.0, %v959
  %v961 = vpop.f32.mrf.mxu0
  %v962 = vpop.f32.mrf.mxu0
  %v963 = vadd.f32 0.0, %v962
  %v964 = vpop.f32.mrf.mxu0
  %965 = vmatprep.mubr.bf16.mxu0 0
  %966 = vmatmul.mubr.bf16.gmra.mxu0 %v887
  %v967 = vpop.f32.mrf.mxu0
  %v968 = vadd.f32 0.0, %v967
  %v969 = vpop.f32.mrf.mxu0
  %v970 = vpop.f32.mrf.mxu0
  %v971 = vadd.f32 0.0, %v970
  %v972 = vpop.f32.mrf.mxu0
  %973 = vmatprep.mubr.bf16.mxu0 0
  %974 = vmatmul.mubr.bf16.gmra.mxu0 %v890
  %v975 = vpop.f32.mrf.mxu0
  %v976 = vadd.f32 0.0, %v975
  %v977 = vpop.f32.mrf.mxu0
  %v978 = vpop.f32.mrf.mxu0
  %v979 = vadd.f32 0.0, %v978
  %v980 = vpop.f32.mrf.mxu0
  %981 = vmatprep.mubr.bf16.mxu0 0
  %982 = vmatmul.mubr.bf16.gmra.mxu0 %v893
  %v983 = vpop.f32.mrf.mxu0
  %v984 = vadd.f32 0.0, %v983
  %v985 = vpop.f32.mrf.mxu0
  %v986 = vpop.f32.mrf.mxu0
  %v987 = vadd.f32 0.0, %v986
  %v988 = vpop.f32.mrf.mxu0
  %989 = vmatprep.mubr.bf16.mxu0 0
  %990 = vmatmul.mubr.bf16.gmra.mxu0 %v896
  %v991 = vpop.f32.mrf.mxu0
  %v992 = vadd.f32 0.0, %v991
  %v993 = vpop.f32.mrf.mxu0
  %v994 = vpop.f32.mrf.mxu0
  %v995 = vadd.f32 0.0, %v994
  %v996 = vpop.f32.mrf.mxu0
  %997 = vdwg.mxu0
  %v998 = vadd.f32 %v799, %v936
  %v999 = vadd.f32 %v800, %v939
  %v1000 = vadd.f32 %v801, %v944
  %v1001 = vadd.f32 %v802, %v947
  %v1002 = vadd.f32 %v803, %v952
  %v1003 = vadd.f32 %v804, %v955
  %v1004 = vadd.f32 %v805, %v960
  %v1005 = vadd.f32 %v806, %v963
  %v1006 = vadd.f32 %v807, %v968
  %v1007 = vadd.f32 %v808, %v971
  %v1008 = vadd.f32 %v809, %v976
  %v1009 = vadd.f32 %v810, %v979
  %v1010 = vadd.f32 %v811, %v984
  %v1011 = vadd.f32 %v812, %v987
  %v1012 = vadd.f32 %v813, %v992
  %v1013 = vadd.f32 %v814, %v995
  %s1014 = scalar_lea.vmem %s0, 432
  %v1015 = vld [vmem:[%s1014] sm:$0xf]
  %v1016 = vld [vmem:[%s1014 + $0x8] sm:$0xf]
  %v1017 = vld [vmem:[%s1014 + $0x10] sm:$0xf]
  %v1018 = vld [vmem:[%s1014 + $0x18] sm:$0xf]
  %v1019 = vld [vmem:[%s1014 + $0x20] sm:$0xf]
  %v1020 = vld [vmem:[%s1014 + $0x28] sm:$0xf]
  %v1021 = vld [vmem:[%s1014 + $0x30] sm:$0xf]
  %v1022 = vld [vmem:[%s1014 + $0x38] sm:$0xf]
  %v1023 = vld [vmem:[%s1014 + $0x48] sm:$0xf]
  %v1024 = vld [vmem:[%s1014 + $0x50] sm:$0xf]
  %v1025 = vld [vmem:[%s1014 + $0x58] sm:$0xf]
  %v1026 = vld [vmem:[%s1014 + $0x60] sm:$0xf]
  %v1027 = vld [vmem:[%s1014 + $0x68] sm:$0xf]
  %v1028 = vld [vmem:[%s1014 + $0x70] sm:$0xf]
  %v1029 = vld [vmem:[%s1014 + $0x78] sm:$0xf]
  %v1030 = vld [vmem:[%s1014 + $0x80] sm:$0xf]
  %s1031 = scalar_lea.vmem %s1, 8
  %v1032 = vld [vmem:[%s1031] sm:$0x3]
  %v1049 = vunpack.c.l.b16 %v1015
  %v1050 = vunpack.c.l.b16 %v1016
  %v1051 = vunpack.c.l.b16 %v1017
  %v1052 = vunpack.c.l.b16 %v1018
  %v1053 = vunpack.c.l.b16 %v1019
  %v1054 = vunpack.c.l.b16 %v1020
  %v1055 = vunpack.c.l.b16 %v1021
  %v1056 = vunpack.c.l.b16 %v1022
  %v1057 = vunpack.c.l.b16 %v1023
  %v1058 = vunpack.c.l.b16 %v1024
  %v1059 = vunpack.c.l.b16 %v1025
  %v1060 = vunpack.c.l.b16 %v1026
  %v1061 = vunpack.c.l.b16 %v1027
  %v1062 = vunpack.c.l.b16 %v1028
  %v1063 = vunpack.c.l.b16 %v1029
  %v1064 = vunpack.c.l.b16 %v1030
  %v1065 = vpack.c.b16 %v1050, %v1049
  %v1066 = vpack.c.b16 %v1052, %v1051
  %v1067 = vpack.c.b16 %v1054, %v1053
  %v1068 = vpack.c.b16 %v1056, %v1055
  %v1069 = vpack.c.b16 %v1058, %v1057
  %v1070 = vpack.c.b16 %v1060, %v1059
  %v1071 = vpack.c.b16 %v1062, %v1061
  %v1072 = vpack.c.b16 %v1064, %v1063
  %v1074 = vsel %vm100, %v1065, 0
  %v1077 = vsel %vm100, %v1066, 0
  %v1080 = vsel %vm100, %v1067, 0
  %v1083 = vsel %vm100, %v1068, 0
  %v1086 = vsel %vm100, %v1069, 0
  %v1089 = vsel %vm100, %v1070, 0
  %v1092 = vsel %vm100, %v1071, 0
  %v1095 = vsel %vm100, %v1072, 0
  %v1098 = vsel %vm125, %v1032, 0
  %1100 = vmatprep.subr.bf16.mxu0 0
  %1101 = vmatpush1.bf16.msra.mxu0 0
  %1102 = vmatprep.subr.bf16.mxu0 0
  %1103 = vmatpush1.bf16.msra.mxu0 0
  %1104 = vmatprep.subr.bf16.mxu0 0
  %1105 = vmatpush1.bf16.msra.mxu0 0
  %1106 = vmatprep.subr.bf16.mxu0 0
  %1107 = vmatpush1.bf16.msra.mxu0 0
  %1108 = vmatprep.subr.bf16.mxu0 0
  %1109 = vmatpush1.bf16.msra.mxu0 0
  %1110 = vmatprep.subr.bf16.mxu0 0
  %1111 = vmatpush1.bf16.msra.mxu0 0
  %1112 = vmatprep.subr.bf16.mxu0 0
  %1113 = vmatpush1.bf16.msra.mxu0 0
  %1114 = vmatprep.subr.bf16.mxu0 0
  %1115 = vmatpush1.bf16.msra.mxu0 %v1098
  %1116 = vmatprep.subr.bf16.mxu0 0
  %1117 = vmatpush2.bf16.msra.mxu0 0
  %1118 = vmatprep.subr.bf16.mxu0 0
  %1119 = vmatpush2.bf16.msra.mxu0 0
  %1120 = vmatprep.subr.bf16.mxu0 0
  %1121 = vmatpush2.bf16.msra.mxu0 0
  %1122 = vmatprep.subr.bf16.mxu0 0
  %1123 = vmatpush2.bf16.msra.mxu0 0
  %1124 = vmatprep.subr.bf16.mxu0 0
  %1125 = vmatpush2.bf16.msra.mxu0 0
  %1126 = vmatprep.subr.bf16.mxu0 0
  %1127 = vmatpush2.bf16.msra.mxu0 0
  %1128 = vmatprep.subr.bf16.mxu0 0
  %1129 = vmatpush2.bf16.msra.mxu0 0
  %1130 = vmatprep.subr.bf16.mxu0 0
  %1131 = vmatpush2.bf16.msra.mxu0 0
  %1132 = vmatprep.mubr.bf16.mxu0 0
  %1133 = vmatmul.mubr.bf16.gmra.mxu0 %v1074
  %v1134 = vpop.f32.mrf.mxu0
  %v1135 = vadd.f32 0.0, %v1134
  %v1136 = vpop.f32.mrf.mxu0
  %v1137 = vpop.f32.mrf.mxu0
  %v1138 = vadd.f32 0.0, %v1137
  %v1139 = vpop.f32.mrf.mxu0
  %1140 = vmatprep.mubr.bf16.mxu0 0
  %1141 = vmatmul.mubr.bf16.gmra.mxu0 %v1077
  %v1142 = vpop.f32.mrf.mxu0
  %v1143 = vadd.f32 0.0, %v1142
  %v1144 = vpop.f32.mrf.mxu0
  %v1145 = vpop.f32.mrf.mxu0
  %v1146 = vadd.f32 0.0, %v1145
  %v1147 = vpop.f32.mrf.mxu0
  %1148 = vmatprep.mubr.bf16.mxu0 0
  %1149 = vmatmul.mubr.bf16.gmra.mxu0 %v1080
  %v1150 = vpop.f32.mrf.mxu0
  %v1151 = vadd.f32 0.0, %v1150
  %v1152 = vpop.f32.mrf.mxu0
  %v1153 = vpop.f32.mrf.mxu0
  %v1154 = vadd.f32 0.0, %v1153
  %v1155 = vpop.f32.mrf.mxu0
  %1156 = vmatprep.mubr.bf16.mxu0 0
  %1157 = vmatmul.mubr.bf16.gmra.mxu0 %v1083
  %v1158 = vpop.f32.mrf.mxu0
  %v1159 = vadd.f32 0.0, %v1158
  %v1160 = vpop.f32.mrf.mxu0
  %v1161 = vpop.f32.mrf.mxu0
  %v1162 = vadd.f32 0.0, %v1161
  %v1163 = vpop.f32.mrf.mxu0
  %1164 = vmatprep.mubr.bf16.mxu0 0
  %1165 = vmatmul.mubr.bf16.gmra.mxu0 %v1086
  %v1166 = vpop.f32.mrf.mxu0
  %v1167 = vadd.f32 0.0, %v1166
  %v1168 = vpop.f32.mrf.mxu0
  %v1169 = vpop.f32.mrf.mxu0
  %v1170 = vadd.f32 0.0, %v1169
  %v1171 = vpop.f32.mrf.mxu0
  %1172 = vmatprep.mubr.bf16.mxu0 0
  %1173 = vmatmul.mubr.bf16.gmra.mxu0 %v1089
  %v1174 = vpop.f32.mrf.mxu0
  %v1175 = vadd.f32 0.0, %v1174
  %v1176 = vpop.f32.mrf.mxu0
  %v1177 = vpop.f32.mrf.mxu0
  %v1178 = vadd.f32 0.0, %v1177
  %v1179 = vpop.f32.mrf.mxu0
  %1180 = vmatprep.mubr.bf16.mxu0 0
  %1181 = vmatmul.mubr.bf16.gmra.mxu0 %v1092
  %v1182 = vpop.f32.mrf.mxu0
  %v1183 = vadd.f32 0.0, %v1182
  %v1184 = vpop.f32.mrf.mxu0
  %v1185 = vpop.f32.mrf.mxu0
  %v1186 = vadd.f32 0.0, %v1185
  %v1187 = vpop.f32.mrf.mxu0
  %1188 = vmatprep.mubr.bf16.mxu0 0
  %1189 = vmatmul.mubr.bf16.gmra.mxu0 %v1095
  %v1190 = vpop.f32.mrf.mxu0
  %v1191 = vadd.f32 0.0, %v1190
  %v1192 = vpop.f32.mrf.mxu0
  %v1193 = vpop.f32.mrf.mxu0
  %v1194 = vadd.f32 0.0, %v1193
  %v1195 = vpop.f32.mrf.mxu0
  %1196 = vdwg.mxu0
  %v1197 = vadd.f32 %v998, %v1135
  %v1198 = vadd.f32 %v999, %v1138
  %v1199 = vadd.f32 %v1000, %v1143
  %v1200 = vadd.f32 %v1001, %v1146
  %v1201 = vadd.f32 %v1002, %v1151
  %v1202 = vadd.f32 %v1003, %v1154
  %v1203 = vadd.f32 %v1004, %v1159
  %v1204 = vadd.f32 %v1005, %v1162
  %v1205 = vadd.f32 %v1006, %v1167
  %v1206 = vadd.f32 %v1007, %v1170
  %v1207 = vadd.f32 %v1008, %v1175
  %v1208 = vadd.f32 %v1009, %v1178
  %v1209 = vadd.f32 %v1010, %v1183
  %v1210 = vadd.f32 %v1011, %v1186
  %v1211 = vadd.f32 %v1012, %v1191
  %v1212 = vadd.f32 %v1013, %v1194
  %v1213 = vld [vmem:[%s815] sm:$0xf]
  %v1214 = vld [vmem:[%s815 + $0x4] sm:$0x1]
  %v1215 = vld [vmem:[%s815 + $0x8] sm:$0xf]
  %v1216 = vld [vmem:[%s815 + $0xc] sm:$0x1]
  %v1217 = vld [vmem:[%s815 + $0x10] sm:$0xf]
  %v1218 = vld [vmem:[%s815 + $0x14] sm:$0x1]
  %v1219 = vld [vmem:[%s815 + $0x18] sm:$0xf]
  %v1220 = vld [vmem:[%s815 + $0x1c] sm:$0x1]
  %v1221 = vld [vmem:[%s815 + $0x20] sm:$0xf]
  %v1222 = vld [vmem:[%s815 + $0x24] sm:$0x1]
  %v1223 = vld [vmem:[%s815 + $0x28] sm:$0xf]
  %v1224 = vld [vmem:[%s815 + $0x2c] sm:$0x1]
  %v1225 = vld [vmem:[%s815 + $0x30] sm:$0xf]
  %v1226 = vld [vmem:[%s815 + $0x34] sm:$0x1]
  %v1227 = vld [vmem:[%s815 + $0x38] sm:$0xf]
  %v1228 = vld [vmem:[%s815 + $0x3c] sm:$0x1]
  %v1229 = vld [vmem:[%s815 + $0x48] sm:$0xf]
  %v1230 = vld [vmem:[%s815 + $0x4c] sm:$0x1]
  %v1231 = vld [vmem:[%s815 + $0x50] sm:$0xf]
  %v1232 = vld [vmem:[%s815 + $0x54] sm:$0x1]
  %v1233 = vld [vmem:[%s815 + $0x58] sm:$0xf]
  %v1234 = vld [vmem:[%s815 + $0x5c] sm:$0x1]
  %v1235 = vld [vmem:[%s815 + $0x60] sm:$0xf]
  %v1236 = vld [vmem:[%s815 + $0x64] sm:$0x1]
  %v1237 = vld [vmem:[%s815 + $0x68] sm:$0xf]
  %v1238 = vld [vmem:[%s815 + $0x6c] sm:$0x1]
  %v1239 = vld [vmem:[%s815 + $0x70] sm:$0xf]
  %v1240 = vld [vmem:[%s815 + $0x74] sm:$0x1]
  %v1241 = vld [vmem:[%s815 + $0x78] sm:$0xf]
  %v1242 = vld [vmem:[%s815 + $0x7c] sm:$0x1]
  %v1243 = vld [vmem:[%s815 + $0x80] sm:$0xf]
  %v1244 = vld [vmem:[%s815 + $0x84] sm:$0x1]
  %v1246 = vshrl.u32 %v1213, 16
  %v1248 = vrot.slane %v1246, 4
  %v1249 = vshll.u32 %v1213, 16
  %v1251 = vrot.slane %v1249, 5
  %v1252 = vor.u32 %v1248, %v1251
  %v1253 = vrot.slane %v1252, 4
  %v1255 = vshll.u32 %v1214, 16
  %v1257 = vrot.slane %v1255, 5
  %v1258 = vsel %vm424, %v1253, %v1257
  %v1260 = vshrl.u32 %v1215, 16
  %v1262 = vrot.slane %v1260, 4
  %v1263 = vshll.u32 %v1215, 16
  %v1265 = vrot.slane %v1263, 5
  %v1266 = vor.u32 %v1262, %v1265
  %v1267 = vrot.slane %v1266, 4
  %v1269 = vshll.u32 %v1216, 16
  %v1271 = vrot.slane %v1269, 5
  %v1272 = vsel %vm424, %v1267, %v1271
  %v1274 = vshrl.u32 %v1217, 16
  %v1276 = vrot.slane %v1274, 4
  %v1277 = vshll.u32 %v1217, 16
  %v1279 = vrot.slane %v1277, 5
  %v1280 = vor.u32 %v1276, %v1279
  %v1281 = vrot.slane %v1280, 4
  %v1283 = vshll.u32 %v1218, 16
  %v1285 = vrot.slane %v1283, 5
  %v1286 = vsel %vm424, %v1281, %v1285
  %v1288 = vshrl.u32 %v1219, 16
  %v1290 = vrot.slane %v1288, 4
  %v1291 = vshll.u32 %v1219, 16
  %v1293 = vrot.slane %v1291, 5
  %v1294 = vor.u32 %v1290, %v1293
  %v1295 = vrot.slane %v1294, 4
  %v1297 = vshll.u32 %v1220, 16
  %v1299 = vrot.slane %v1297, 5
  %v1300 = vsel %vm424, %v1295, %v1299
  %v1302 = vshrl.u32 %v1221, 16
  %v1304 = vrot.slane %v1302, 4
  %v1305 = vshll.u32 %v1221, 16
  %v1307 = vrot.slane %v1305, 5
  %v1308 = vor.u32 %v1304, %v1307
  %v1309 = vrot.slane %v1308, 4
  %v1311 = vshll.u32 %v1222, 16
  %v1313 = vrot.slane %v1311, 5
  %v1314 = vsel %vm424, %v1309, %v1313
  %v1316 = vshrl.u32 %v1223, 16
  %v1318 = vrot.slane %v1316, 4
  %v1319 = vshll.u32 %v1223, 16
  %v1321 = vrot.slane %v1319, 5
  %v1322 = vor.u32 %v1318, %v1321
  %v1323 = vrot.slane %v1322, 4
  %v1325 = vshll.u32 %v1224, 16
  %v1327 = vrot.slane %v1325, 5
  %v1328 = vsel %vm424, %v1323, %v1327
  %v1330 = vshrl.u32 %v1225, 16
  %v1332 = vrot.slane %v1330, 4
  %v1333 = vshll.u32 %v1225, 16
  %v1335 = vrot.slane %v1333, 5
  %v1336 = vor.u32 %v1332, %v1335
  %v1337 = vrot.slane %v1336, 4
  %v1339 = vshll.u32 %v1226, 16
  %v1341 = vrot.slane %v1339, 5
  %v1342 = vsel %vm424, %v1337, %v1341
  %v1344 = vshrl.u32 %v1227, 16
  %v1346 = vrot.slane %v1344, 4
  %v1347 = vshll.u32 %v1227, 16
  %v1349 = vrot.slane %v1347, 5
  %v1350 = vor.u32 %v1346, %v1349
  %v1351 = vrot.slane %v1350, 4
  %v1353 = vshll.u32 %v1228, 16
  %v1355 = vrot.slane %v1353, 5
  %v1356 = vsel %vm424, %v1351, %v1355
  %v1358 = vshrl.u32 %v1229, 16
  %v1360 = vrot.slane %v1358, 4
  %v1361 = vshll.u32 %v1229, 16
  %v1363 = vrot.slane %v1361, 5
  %v1364 = vor.u32 %v1360, %v1363
  %v1365 = vrot.slane %v1364, 4
  %v1367 = vshll.u32 %v1230, 16
  %v1369 = vrot.slane %v1367, 5
  %v1370 = vsel %vm424, %v1365, %v1369
  %v1372 = vshrl.u32 %v1231, 16
  %v1374 = vrot.slane %v1372, 4
  %v1375 = vshll.u32 %v1231, 16
  %v1377 = vrot.slane %v1375, 5
  %v1378 = vor.u32 %v1374, %v1377
  %v1379 = vrot.slane %v1378, 4
  %v1381 = vshll.u32 %v1232, 16
  %v1383 = vrot.slane %v1381, 5
  %v1384 = vsel %vm424, %v1379, %v1383
  %v1386 = vshrl.u32 %v1233, 16
  %v1388 = vrot.slane %v1386, 4
  %v1389 = vshll.u32 %v1233, 16
  %v1391 = vrot.slane %v1389, 5
  %v1392 = vor.u32 %v1388, %v1391
  %v1393 = vrot.slane %v1392, 4
  %v1395 = vshll.u32 %v1234, 16
  %v1397 = vrot.slane %v1395, 5
  %v1398 = vsel %vm424, %v1393, %v1397
  %v1400 = vshrl.u32 %v1235, 16
  %v1402 = vrot.slane %v1400, 4
  %v1403 = vshll.u32 %v1235, 16
  %v1405 = vrot.slane %v1403, 5
  %v1406 = vor.u32 %v1402, %v1405
  %v1407 = vrot.slane %v1406, 4
  %v1409 = vshll.u32 %v1236, 16
  %v1411 = vrot.slane %v1409, 5
  %v1412 = vsel %vm424, %v1407, %v1411
  %v1414 = vshrl.u32 %v1237, 16
  %v1416 = vrot.slane %v1414, 4
  %v1417 = vshll.u32 %v1237, 16
  %v1419 = vrot.slane %v1417, 5
  %v1420 = vor.u32 %v1416, %v1419
  %v1421 = vrot.slane %v1420, 4
  %v1423 = vshll.u32 %v1238, 16
  %v1425 = vrot.slane %v1423, 5
  %v1426 = vsel %vm424, %v1421, %v1425
  %v1428 = vshrl.u32 %v1239, 16
  %v1430 = vrot.slane %v1428, 4
  %v1431 = vshll.u32 %v1239, 16
  %v1433 = vrot.slane %v1431, 5
  %v1434 = vor.u32 %v1430, %v1433
  %v1435 = vrot.slane %v1434, 4
  %v1437 = vshll.u32 %v1240, 16
  %v1439 = vrot.slane %v1437, 5
  %v1440 = vsel %vm424, %v1435, %v1439
  %v1442 = vshrl.u32 %v1241, 16
  %v1444 = vrot.slane %v1442, 4
  %v1445 = vshll.u32 %v1241, 16
  %v1447 = vrot.slane %v1445, 5
  %v1448 = vor.u32 %v1444, %v1447
  %v1449 = vrot.slane %v1448, 4
  %v1451 = vshll.u32 %v1242, 16
  %v1453 = vrot.slane %v1451, 5
  %v1454 = vsel %vm424, %v1449, %v1453
  %v1456 = vshrl.u32 %v1243, 16
  %v1458 = vrot.slane %v1456, 4
  %v1459 = vshll.u32 %v1243, 16
  %v1461 = vrot.slane %v1459, 5
  %v1462 = vor.u32 %v1458, %v1461
  %v1463 = vrot.slane %v1462, 4
  %v1465 = vshll.u32 %v1244, 16
  %v1467 = vrot.slane %v1465, 5
  %v1468 = vsel %vm424, %v1463, %v1467
  %s1469 = scalar_lea.vmem %s1, 10
  %v1470 = vld [vmem:[%s1469] sm:$0x3]
  %v1471 = vunpack.c.l.b16 %v1258
  %v1472 = vunpack.c.l.b16 %v1272
  %v1473 = vunpack.c.l.b16 %v1286
  %v1474 = vunpack.c.l.b16 %v1300
  %v1475 = vunpack.c.l.b16 %v1314
  %v1476 = vunpack.c.l.b16 %v1328
  %v1477 = vunpack.c.l.b16 %v1342
  %v1478 = vunpack.c.l.b16 %v1356
  %v1479 = vunpack.c.l.b16 %v1370
  %v1480 = vunpack.c.l.b16 %v1384
  %v1481 = vunpack.c.l.b16 %v1398
  %v1482 = vunpack.c.l.b16 %v1412
  %v1483 = vunpack.c.l.b16 %v1426
  %v1484 = vunpack.c.l.b16 %v1440
  %v1485 = vunpack.c.l.b16 %v1454
  %v1486 = vunpack.c.l.b16 %v1468
  %v1487 = vpack.c.b16 %v1472, %v1471
  %v1488 = vpack.c.b16 %v1474, %v1473
  %v1489 = vpack.c.b16 %v1476, %v1475
  %v1490 = vpack.c.b16 %v1478, %v1477
  %v1491 = vpack.c.b16 %v1480, %v1479
  %v1492 = vpack.c.b16 %v1482, %v1481
  %v1493 = vpack.c.b16 %v1484, %v1483
  %v1494 = vpack.c.b16 %v1486, %v1485
  %v1496 = vsel %vm100, %v1487, 0
  %v1499 = vsel %vm100, %v1488, 0
  %v1502 = vsel %vm100, %v1489, 0
  %v1505 = vsel %vm100, %v1490, 0
  %v1508 = vsel %vm100, %v1491, 0
  %v1511 = vsel %vm100, %v1492, 0
  %v1514 = vsel %vm100, %v1493, 0
  %v1517 = vsel %vm100, %v1494, 0
  %v1520 = vsel %vm125, %v1470, 0
  %1522 = vmatprep.subr.bf16.mxu0 0
  %1523 = vmatpush1.bf16.msra.mxu0 0
  %1524 = vmatprep.subr.bf16.mxu0 0
  %1525 = vmatpush1.bf16.msra.mxu0 0
  %1526 = vmatprep.subr.bf16.mxu0 0
  %1527 = vmatpush1.bf16.msra.mxu0 0
  %1528 = vmatprep.subr.bf16.mxu0 0
  %1529 = vmatpush1.bf16.msra.mxu0 0
  %1530 = vmatprep.subr.bf16.mxu0 0
  %1531 = vmatpush1.bf16.msra.mxu0 0
  %1532 = vmatprep.subr.bf16.mxu0 0
  %1533 = vmatpush1.bf16.msra.mxu0 0
  %1534 = vmatprep.subr.bf16.mxu0 0
  %1535 = vmatpush1.bf16.msra.mxu0 0
  %1536 = vmatprep.subr.bf16.mxu0 0
  %1537 = vmatpush1.bf16.msra.mxu0 %v1520
  %1538 = vmatprep.subr.bf16.mxu0 0
  %1539 = vmatpush2.bf16.msra.mxu0 0
  %1540 = vmatprep.subr.bf16.mxu0 0
  %1541 = vmatpush2.bf16.msra.mxu0 0
  %1542 = vmatprep.subr.bf16.mxu0 0
  %1543 = vmatpush2.bf16.msra.mxu0 0
  %1544 = vmatprep.subr.bf16.mxu0 0
  %1545 = vmatpush2.bf16.msra.mxu0 0
  %1546 = vmatprep.subr.bf16.mxu0 0
  %1547 = vmatpush2.bf16.msra.mxu0 0
  %1548 = vmatprep.subr.bf16.mxu0 0
  %1549 = vmatpush2.bf16.msra.mxu0 0
  %1550 = vmatprep.subr.bf16.mxu0 0
  %1551 = vmatpush2.bf16.msra.mxu0 0
  %1552 = vmatprep.subr.bf16.mxu0 0
  %1553 = vmatpush2.bf16.msra.mxu0 0
  %1554 = vmatprep.mubr.bf16.mxu0 0
  %1555 = vmatmul.mubr.bf16.gmra.mxu0 %v1496
  %v1556 = vpop.f32.mrf.mxu0
  %v1557 = vadd.f32 0.0, %v1556
  %v1558 = vpop.f32.mrf.mxu0
  %v1559 = vpop.f32.mrf.mxu0
  %v1560 = vadd.f32 0.0, %v1559
  %v1561 = vpop.f32.mrf.mxu0
  %1562 = vmatprep.mubr.bf16.mxu0 0
  %1563 = vmatmul.mubr.bf16.gmra.mxu0 %v1499
  %v1564 = vpop.f32.mrf.mxu0
  %v1565 = vadd.f32 0.0, %v1564
  %v1566 = vpop.f32.mrf.mxu0
  %v1567 = vpop.f32.mrf.mxu0
  %v1568 = vadd.f32 0.0, %v1567
  %v1569 = vpop.f32.mrf.mxu0
  %1570 = vmatprep.mubr.bf16.mxu0 0
  %1571 = vmatmul.mubr.bf16.gmra.mxu0 %v1502
  %v1572 = vpop.f32.mrf.mxu0
  %v1573 = vadd.f32 0.0, %v1572
  %v1574 = vpop.f32.mrf.mxu0
  %v1575 = vpop.f32.mrf.mxu0
  %v1576 = vadd.f32 0.0, %v1575
  %v1577 = vpop.f32.mrf.mxu0
  %1578 = vmatprep.mubr.bf16.mxu0 0
  %1579 = vmatmul.mubr.bf16.gmra.mxu0 %v1505
  %v1580 = vpop.f32.mrf.mxu0
  %v1581 = vadd.f32 0.0, %v1580
  %v1582 = vpop.f32.mrf.mxu0
  %v1583 = vpop.f32.mrf.mxu0
  %v1584 = vadd.f32 0.0, %v1583
  %v1585 = vpop.f32.mrf.mxu0
  %1586 = vmatprep.mubr.bf16.mxu0 0
  %1587 = vmatmul.mubr.bf16.gmra.mxu0 %v1508
  %v1588 = vpop.f32.mrf.mxu0
  %v1589 = vadd.f32 0.0, %v1588
  %v1590 = vpop.f32.mrf.mxu0
  %v1591 = vpop.f32.mrf.mxu0
  %v1592 = vadd.f32 0.0, %v1591
  %v1593 = vpop.f32.mrf.mxu0
  %1594 = vmatprep.mubr.bf16.mxu0 0
  %1595 = vmatmul.mubr.bf16.gmra.mxu0 %v1511
  %v1596 = vpop.f32.mrf.mxu0
  %v1597 = vadd.f32 0.0, %v1596
  %v1598 = vpop.f32.mrf.mxu0
  %v1599 = vpop.f32.mrf.mxu0
  %v1600 = vadd.f32 0.0, %v1599
  %v1601 = vpop.f32.mrf.mxu0
  %1602 = vmatprep.mubr.bf16.mxu0 0
  %1603 = vmatmul.mubr.bf16.gmra.mxu0 %v1514
  %v1604 = vpop.f32.mrf.mxu0
  %v1605 = vadd.f32 0.0, %v1604
  %v1606 = vpop.f32.mrf.mxu0
  %v1607 = vpop.f32.mrf.mxu0
  %v1608 = vadd.f32 0.0, %v1607
  %v1609 = vpop.f32.mrf.mxu0
  %1610 = vmatprep.mubr.bf16.mxu0 0
  %1611 = vmatmul.mubr.bf16.gmra.mxu0 %v1517
  %v1612 = vpop.f32.mrf.mxu0
  %v1613 = vadd.f32 0.0, %v1612
  %v1614 = vpop.f32.mrf.mxu0
  %v1615 = vpop.f32.mrf.mxu0
  %v1616 = vadd.f32 0.0, %v1615
  %v1617 = vpop.f32.mrf.mxu0
  %1618 = vdwg.mxu0
  %v1619 = vadd.f32 %v1197, %v1557
  %v1620 = vadd.f32 %v1198, %v1560
  %v1621 = vadd.f32 %v1199, %v1565
  %v1622 = vadd.f32 %v1200, %v1568
  %v1623 = vadd.f32 %v1201, %v1573
  %v1624 = vadd.f32 %v1202, %v1576
  %v1625 = vadd.f32 %v1203, %v1581
  %v1626 = vadd.f32 %v1204, %v1584
  %v1627 = vadd.f32 %v1205, %v1589
  %v1628 = vadd.f32 %v1206, %v1592
  %v1629 = vadd.f32 %v1207, %v1597
  %v1630 = vadd.f32 %v1208, %v1600
  %v1631 = vadd.f32 %v1209, %v1605
  %v1632 = vadd.f32 %v1210, %v1608
  %v1633 = vadd.f32 %v1211, %v1613
  %v1634 = vadd.f32 %v1212, %v1616
  %s1635 = scalar_lea.vmem %s0, 8
  %v1636 = vld [vmem:[%s1635] sm:$0xf]
  %v1637 = vld [vmem:[%s1635 + $0x8] sm:$0xf]
  %v1638 = vld [vmem:[%s1635 + $0x10] sm:$0xf]
  %v1639 = vld [vmem:[%s1635 + $0x18] sm:$0xf]
  %v1640 = vld [vmem:[%s1635 + $0x20] sm:$0xf]
  %v1641 = vld [vmem:[%s1635 + $0x28] sm:$0xf]
  %v1642 = vld [vmem:[%s1635 + $0x30] sm:$0xf]
  %v1643 = vld [vmem:[%s1635 + $0x38] sm:$0xf]
  %v1644 = vld [vmem:[%s1635 + $0x48] sm:$0xf]
  %v1645 = vld [vmem:[%s1635 + $0x50] sm:$0xf]
  %v1646 = vld [vmem:[%s1635 + $0x58] sm:$0xf]
  %v1647 = vld [vmem:[%s1635 + $0x60] sm:$0xf]
  %v1648 = vld [vmem:[%s1635 + $0x68] sm:$0xf]
  %v1649 = vld [vmem:[%s1635 + $0x70] sm:$0xf]
  %v1650 = vld [vmem:[%s1635 + $0x78] sm:$0xf]
  %v1651 = vld [vmem:[%s1635 + $0x80] sm:$0xf]
  %s1652 = scalar_lea.vmem %s1, 12
  %v1653 = vld [vmem:[%s1652] sm:$0x3]
  %v1670 = vunpack.c.l.b16 %v1636
  %v1671 = vunpack.c.l.b16 %v1637
  %v1672 = vunpack.c.l.b16 %v1638
  %v1673 = vunpack.c.l.b16 %v1639
  %v1674 = vunpack.c.l.b16 %v1640
  %v1675 = vunpack.c.l.b16 %v1641
  %v1676 = vunpack.c.l.b16 %v1642
  %v1677 = vunpack.c.l.b16 %v1643
  %v1678 = vunpack.c.l.b16 %v1644
  %v1679 = vunpack.c.l.b16 %v1645
  %v1680 = vunpack.c.l.b16 %v1646
  %v1681 = vunpack.c.l.b16 %v1647
  %v1682 = vunpack.c.l.b16 %v1648
  %v1683 = vunpack.c.l.b16 %v1649
  %v1684 = vunpack.c.l.b16 %v1650
  %v1685 = vunpack.c.l.b16 %v1651
  %v1686 = vpack.c.b16 %v1671, %v1670
  %v1687 = vpack.c.b16 %v1673, %v1672
  %v1688 = vpack.c.b16 %v1675, %v1674
  %v1689 = vpack.c.b16 %v1677, %v1676
  %v1690 = vpack.c.b16 %v1679, %v1678
  %v1691 = vpack.c.b16 %v1681, %v1680
  %v1692 = vpack.c.b16 %v1683, %v1682
  %v1693 = vpack.c.b16 %v1685, %v1684
  %v1695 = vsel %vm100, %v1686, 0
  %v1698 = vsel %vm100, %v1687, 0
  %v1701 = vsel %vm100, %v1688, 0
  %v1704 = vsel %vm100, %v1689, 0
  %v1707 = vsel %vm100, %v1690, 0
  %v1710 = vsel %vm100, %v1691, 0
  %v1713 = vsel %vm100, %v1692, 0
  %v1716 = vsel %vm100, %v1693, 0
  %v1719 = vsel %vm125, %v1653, 0
  %1721 = vmatprep.subr.bf16.mxu0 0
  %1722 = vmatpush1.bf16.msra.mxu0 0
  %1723 = vmatprep.subr.bf16.mxu0 0
  %1724 = vmatpush1.bf16.msra.mxu0 0
  %1725 = vmatprep.subr.bf16.mxu0 0
  %1726 = vmatpush1.bf16.msra.mxu0 0
  %1727 = vmatprep.subr.bf16.mxu0 0
  %1728 = vmatpush1.bf16.msra.mxu0 0
  %1729 = vmatprep.subr.bf16.mxu0 0
  %1730 = vmatpush1.bf16.msra.mxu0 0
  %1731 = vmatprep.subr.bf16.mxu0 0
  %1732 = vmatpush1.bf16.msra.mxu0 0
  %1733 = vmatprep.subr.bf16.mxu0 0
  %1734 = vmatpush1.bf16.msra.mxu0 0
  %1735 = vmatprep.subr.bf16.mxu0 0
  %1736 = vmatpush1.bf16.msra.mxu0 %v1719
  %1737 = vmatprep.subr.bf16.mxu0 0
  %1738 = vmatpush2.bf16.msra.mxu0 0
  %1739 = vmatprep.subr.bf16.mxu0 0
  %1740 = vmatpush2.bf16.msra.mxu0 0
  %1741 = vmatprep.subr.bf16.mxu0 0
  %1742 = vmatpush2.bf16.msra.mxu0 0
  %1743 = vmatprep.subr.bf16.mxu0 0
  %1744 = vmatpush2.bf16.msra.mxu0 0
  %1745 = vmatprep.subr.bf16.mxu0 0
  %1746 = vmatpush2.bf16.msra.mxu0 0
  %1747 = vmatprep.subr.bf16.mxu0 0
  %1748 = vmatpush2.bf16.msra.mxu0 0
  %1749 = vmatprep.subr.bf16.mxu0 0
  %1750 = vmatpush2.bf16.msra.mxu0 0
  %1751 = vmatprep.subr.bf16.mxu0 0
  %1752 = vmatpush2.bf16.msra.mxu0 0
  %1753 = vmatprep.mubr.bf16.mxu0 0
  %1754 = vmatmul.mubr.bf16.gmra.mxu0 %v1695
  %v1755 = vpop.f32.mrf.mxu0
  %v1756 = vadd.f32 0.0, %v1755
  %v1757 = vpop.f32.mrf.mxu0
  %v1758 = vpop.f32.mrf.mxu0
  %v1759 = vadd.f32 0.0, %v1758
  %v1760 = vpop.f32.mrf.mxu0
  %1761 = vmatprep.mubr.bf16.mxu0 0
  %1762 = vmatmul.mubr.bf16.gmra.mxu0 %v1698
  %v1763 = vpop.f32.mrf.mxu0
  %v1764 = vadd.f32 0.0, %v1763
  %v1765 = vpop.f32.mrf.mxu0
  %v1766 = vpop.f32.mrf.mxu0
  %v1767 = vadd.f32 0.0, %v1766
  %v1768 = vpop.f32.mrf.mxu0
  %1769 = vmatprep.mubr.bf16.mxu0 0
  %1770 = vmatmul.mubr.bf16.gmra.mxu0 %v1701
  %v1771 = vpop.f32.mrf.mxu0
  %v1772 = vadd.f32 0.0, %v1771
  %v1773 = vpop.f32.mrf.mxu0
  %v1774 = vpop.f32.mrf.mxu0
  %v1775 = vadd.f32 0.0, %v1774
  %v1776 = vpop.f32.mrf.mxu0
  %1777 = vmatprep.mubr.bf16.mxu0 0
  %1778 = vmatmul.mubr.bf16.gmra.mxu0 %v1704
  %v1779 = vpop.f32.mrf.mxu0
  %v1780 = vadd.f32 0.0, %v1779
  %v1781 = vpop.f32.mrf.mxu0
  %v1782 = vpop.f32.mrf.mxu0
  %v1783 = vadd.f32 0.0, %v1782
  %v1784 = vpop.f32.mrf.mxu0
  %1785 = vmatprep.mubr.bf16.mxu0 0
  %1786 = vmatmul.mubr.bf16.gmra.mxu0 %v1707
  %v1787 = vpop.f32.mrf.mxu0
  %v1788 = vadd.f32 0.0, %v1787
  %v1789 = vpop.f32.mrf.mxu0
  %v1790 = vpop.f32.mrf.mxu0
  %v1791 = vadd.f32 0.0, %v1790
  %v1792 = vpop.f32.mrf.mxu0
  %1793 = vmatprep.mubr.bf16.mxu0 0
  %1794 = vmatmul.mubr.bf16.gmra.mxu0 %v1710
  %v1795 = vpop.f32.mrf.mxu0
  %v1796 = vadd.f32 0.0, %v1795
  %v1797 = vpop.f32.mrf.mxu0
  %v1798 = vpop.f32.mrf.mxu0
  %v1799 = vadd.f32 0.0, %v1798
  %v1800 = vpop.f32.mrf.mxu0
  %1801 = vmatprep.mubr.bf16.mxu0 0
  %1802 = vmatmul.mubr.bf16.gmra.mxu0 %v1713
  %v1803 = vpop.f32.mrf.mxu0
  %v1804 = vadd.f32 0.0, %v1803
  %v1805 = vpop.f32.mrf.mxu0
  %v1806 = vpop.f32.mrf.mxu0
  %v1807 = vadd.f32 0.0, %v1806
  %v1808 = vpop.f32.mrf.mxu0
  %1809 = vmatprep.mubr.bf16.mxu0 0
  %1810 = vmatmul.mubr.bf16.gmra.mxu0 %v1716
  %v1811 = vpop.f32.mrf.mxu0
  %v1812 = vadd.f32 0.0, %v1811
  %v1813 = vpop.f32.mrf.mxu0
  %v1814 = vpop.f32.mrf.mxu0
  %v1815 = vadd.f32 0.0, %v1814
  %v1816 = vpop.f32.mrf.mxu0
  %1817 = vdwg.mxu0
  %v1818 = vadd.f32 %v1619, %v1756
  %v1819 = vadd.f32 %v1620, %v1759
  %v1820 = vadd.f32 %v1621, %v1764
  %v1821 = vadd.f32 %v1622, %v1767
  %v1822 = vadd.f32 %v1623, %v1772
  %v1823 = vadd.f32 %v1624, %v1775
  %v1824 = vadd.f32 %v1625, %v1780
  %v1825 = vadd.f32 %v1626, %v1783
  %v1826 = vadd.f32 %v1627, %v1788
  %v1827 = vadd.f32 %v1628, %v1791
  %v1828 = vadd.f32 %v1629, %v1796
  %v1829 = vadd.f32 %v1630, %v1799
  %v1830 = vadd.f32 %v1631, %v1804
  %v1831 = vadd.f32 %v1632, %v1807
  %v1832 = vadd.f32 %v1633, %v1812
  %v1833 = vadd.f32 %v1634, %v1815
  %s1834 = scalar_lea.vmem %s0, 152
  %v1835 = vld [vmem:[%s1834] sm:$0xf]
  %v1836 = vld [vmem:[%s1834 + $0x8] sm:$0xf]
  %v1837 = vld [vmem:[%s1834 + $0x10] sm:$0xf]
  %v1838 = vld [vmem:[%s1834 + $0x18] sm:$0xf]
  %v1839 = vld [vmem:[%s1834 + $0x20] sm:$0xf]
  %v1840 = vld [vmem:[%s1834 + $0x28] sm:$0xf]
  %v1841 = vld [vmem:[%s1834 + $0x30] sm:$0xf]
  %v1842 = vld [vmem:[%s1834 + $0x38] sm:$0xf]
  %v1843 = vld [vmem:[%s1834 + $0x48] sm:$0xf]
  %v1844 = vld [vmem:[%s1834 + $0x50] sm:$0xf]
  %v1845 = vld [vmem:[%s1834 + $0x58] sm:$0xf]
  %v1846 = vld [vmem:[%s1834 + $0x60] sm:$0xf]
  %v1847 = vld [vmem:[%s1834 + $0x68] sm:$0xf]
  %v1848 = vld [vmem:[%s1834 + $0x70] sm:$0xf]
  %v1849 = vld [vmem:[%s1834 + $0x78] sm:$0xf]
  %v1850 = vld [vmem:[%s1834 + $0x80] sm:$0xf]
  %s1851 = scalar_lea.vmem %s1, 14
  %v1852 = vld [vmem:[%s1851] sm:$0x3]
  %v1869 = vunpack.c.l.b16 %v1835
  %v1870 = vunpack.c.l.b16 %v1836
  %v1871 = vunpack.c.l.b16 %v1837
  %v1872 = vunpack.c.l.b16 %v1838
  %v1873 = vunpack.c.l.b16 %v1839
  %v1874 = vunpack.c.l.b16 %v1840
  %v1875 = vunpack.c.l.b16 %v1841
  %v1876 = vunpack.c.l.b16 %v1842
  %v1877 = vunpack.c.l.b16 %v1843
  %v1878 = vunpack.c.l.b16 %v1844
  %v1879 = vunpack.c.l.b16 %v1845
  %v1880 = vunpack.c.l.b16 %v1846
  %v1881 = vunpack.c.l.b16 %v1847
  %v1882 = vunpack.c.l.b16 %v1848
  %v1883 = vunpack.c.l.b16 %v1849
  %v1884 = vunpack.c.l.b16 %v1850
  %v1885 = vpack.c.b16 %v1870, %v1869
  %v1886 = vpack.c.b16 %v1872, %v1871
  %v1887 = vpack.c.b16 %v1874, %v1873
  %v1888 = vpack.c.b16 %v1876, %v1875
  %v1889 = vpack.c.b16 %v1878, %v1877
  %v1890 = vpack.c.b16 %v1880, %v1879
  %v1891 = vpack.c.b16 %v1882, %v1881
  %v1892 = vpack.c.b16 %v1884, %v1883
  %v1894 = vsel %vm100, %v1885, 0
  %v1897 = vsel %vm100, %v1886, 0
  %v1900 = vsel %vm100, %v1887, 0
  %v1903 = vsel %vm100, %v1888, 0
  %v1906 = vsel %vm100, %v1889, 0
  %v1909 = vsel %vm100, %v1890, 0
  %v1912 = vsel %vm100, %v1891, 0
  %v1915 = vsel %vm100, %v1892, 0
  %v1918 = vsel %vm125, %v1852, 0
  %1920 = vmatprep.subr.bf16.mxu0 0
  %1921 = vmatpush1.bf16.msra.mxu0 0
  %1922 = vmatprep.subr.bf16.mxu0 0
  %1923 = vmatpush1.bf16.msra.mxu0 0
  %1924 = vmatprep.subr.bf16.mxu0 0
  %1925 = vmatpush1.bf16.msra.mxu0 0
  %1926 = vmatprep.subr.bf16.mxu0 0
  %1927 = vmatpush1.bf16.msra.mxu0 0
  %1928 = vmatprep.subr.bf16.mxu0 0
  %1929 = vmatpush1.bf16.msra.mxu0 0
  %1930 = vmatprep.subr.bf16.mxu0 0
  %1931 = vmatpush1.bf16.msra.mxu0 0
  %1932 = vmatprep.subr.bf16.mxu0 0
  %1933 = vmatpush1.bf16.msra.mxu0 0
  %1934 = vmatprep.subr.bf16.mxu0 0
  %1935 = vmatpush1.bf16.msra.mxu0 %v1918
  %1936 = vmatprep.subr.bf16.mxu0 0
  %1937 = vmatpush2.bf16.msra.mxu0 0
  %1938 = vmatprep.subr.bf16.mxu0 0
  %1939 = vmatpush2.bf16.msra.mxu0 0
  %1940 = vmatprep.subr.bf16.mxu0 0
  %1941 = vmatpush2.bf16.msra.mxu0 0
  %1942 = vmatprep.subr.bf16.mxu0 0
  %1943 = vmatpush2.bf16.msra.mxu0 0
  %1944 = vmatprep.subr.bf16.mxu0 0
  %1945 = vmatpush2.bf16.msra.mxu0 0
  %1946 = vmatprep.subr.bf16.mxu0 0
  %1947 = vmatpush2.bf16.msra.mxu0 0
  %1948 = vmatprep.subr.bf16.mxu0 0
  %1949 = vmatpush2.bf16.msra.mxu0 0
  %1950 = vmatprep.subr.bf16.mxu0 0
  %1951 = vmatpush2.bf16.msra.mxu0 0
  %1952 = vmatprep.mubr.bf16.mxu0 0
  %1953 = vmatmul.mubr.bf16.gmra.mxu0 %v1894
  %v1954 = vpop.f32.mrf.mxu0
  %v1955 = vadd.f32 0.0, %v1954
  %v1956 = vpop.f32.mrf.mxu0
  %v1957 = vpop.f32.mrf.mxu0
  %v1958 = vadd.f32 0.0, %v1957
  %v1959 = vpop.f32.mrf.mxu0
  %1960 = vmatprep.mubr.bf16.mxu0 0
  %1961 = vmatmul.mubr.bf16.gmra.mxu0 %v1897
  %v1962 = vpop.f32.mrf.mxu0
  %v1963 = vadd.f32 0.0, %v1962
  %v1964 = vpop.f32.mrf.mxu0
  %v1965 = vpop.f32.mrf.mxu0
  %v1966 = vadd.f32 0.0, %v1965
  %v1967 = vpop.f32.mrf.mxu0
  %1968 = vmatprep.mubr.bf16.mxu0 0
  %1969 = vmatmul.mubr.bf16.gmra.mxu0 %v1900
  %v1970 = vpop.f32.mrf.mxu0
  %v1971 = vadd.f32 0.0, %v1970
  %v1972 = vpop.f32.mrf.mxu0
  %v1973 = vpop.f32.mrf.mxu0
  %v1974 = vadd.f32 0.0, %v1973
  %v1975 = vpop.f32.mrf.mxu0
  %1976 = vmatprep.mubr.bf16.mxu0 0
  %1977 = vmatmul.mubr.bf16.gmra.mxu0 %v1903
  %v1978 = vpop.f32.mrf.mxu0
  %v1979 = vadd.f32 0.0, %v1978
  %v1980 = vpop.f32.mrf.mxu0
  %v1981 = vpop.f32.mrf.mxu0
  %v1982 = vadd.f32 0.0, %v1981
  %v1983 = vpop.f32.mrf.mxu0
  %1984 = vmatprep.mubr.bf16.mxu0 0
  %1985 = vmatmul.mubr.bf16.gmra.mxu0 %v1906
  %v1986 = vpop.f32.mrf.mxu0
  %v1987 = vadd.f32 0.0, %v1986
  %v1988 = vpop.f32.mrf.mxu0
  %v1989 = vpop.f32.mrf.mxu0
  %v1990 = vadd.f32 0.0, %v1989
  %v1991 = vpop.f32.mrf.mxu0
  %1992 = vmatprep.mubr.bf16.mxu0 0
  %1993 = vmatmul.mubr.bf16.gmra.mxu0 %v1909
  %v1994 = vpop.f32.mrf.mxu0
  %v1995 = vadd.f32 0.0, %v1994
  %v1996 = vpop.f32.mrf.mxu0
  %v1997 = vpop.f32.mrf.mxu0
  %v1998 = vadd.f32 0.0, %v1997
  %v1999 = vpop.f32.mrf.mxu0
  %2000 = vmatprep.mubr.bf16.mxu0 0
  %2001 = vmatmul.mubr.bf16.gmra.mxu0 %v1912
  %v2002 = vpop.f32.mrf.mxu0
  %v2003 = vadd.f32 0.0, %v2002
  %v2004 = vpop.f32.mrf.mxu0
  %v2005 = vpop.f32.mrf.mxu0
  %v2006 = vadd.f32 0.0, %v2005
  %v2007 = vpop.f32.mrf.mxu0
  %2008 = vmatprep.mubr.bf16.mxu0 0
  %2009 = vmatmul.mubr.bf16.gmra.mxu0 %v1915
  %v2010 = vpop.f32.mrf.mxu0
  %v2011 = vadd.f32 0.0, %v2010
  %v2012 = vpop.f32.mrf.mxu0
  %v2013 = vpop.f32.mrf.mxu0
  %v2014 = vadd.f32 0.0, %v2013
  %v2015 = vpop.f32.mrf.mxu0
  %2016 = vdwg.mxu0
  %v2017 = vadd.f32 %v1818, %v1955
  %v2018 = vadd.f32 %v1819, %v1958
  %v2019 = vadd.f32 %v1820, %v1963
  %v2020 = vadd.f32 %v1821, %v1966
  %v2021 = vadd.f32 %v1822, %v1971
  %v2022 = vadd.f32 %v1823, %v1974
  %v2023 = vadd.f32 %v1824, %v1979
  %v2024 = vadd.f32 %v1825, %v1982
  %v2025 = vadd.f32 %v1826, %v1987
  %v2026 = vadd.f32 %v1827, %v1990
  %v2027 = vadd.f32 %v1828, %v1995
  %v2028 = vadd.f32 %v1829, %v1998
  %v2029 = vadd.f32 %v1830, %v2003
  %v2030 = vadd.f32 %v1831, %v2006
  %v2031 = vadd.f32 %v1832, %v2011
  %v2032 = vadd.f32 %v1833, %v2014
  %v2033 = vld [vmem:[%s1635] sm:$0xf]
  %v2034 = vld [vmem:[%s1635 + $0x4] sm:$0x1]
  %v2035 = vld [vmem:[%s1635 + $0x8] sm:$0xf]
  %v2036 = vld [vmem:[%s1635 + $0xc] sm:$0x1]
  %v2037 = vld [vmem:[%s1635 + $0x10] sm:$0xf]
  %v2038 = vld [vmem:[%s1635 + $0x14] sm:$0x1]
  %v2039 = vld [vmem:[%s1635 + $0x18] sm:$0xf]
  %v2040 = vld [vmem:[%s1635 + $0x1c] sm:$0x1]
  %v2041 = vld [vmem:[%s1635 + $0x20] sm:$0xf]
  %v2042 = vld [vmem:[%s1635 + $0x24] sm:$0x1]
  %v2043 = vld [vmem:[%s1635 + $0x28] sm:$0xf]
  %v2044 = vld [vmem:[%s1635 + $0x2c] sm:$0x1]
  %v2045 = vld [vmem:[%s1635 + $0x30] sm:$0xf]
  %v2046 = vld [vmem:[%s1635 + $0x34] sm:$0x1]
  %v2047 = vld [vmem:[%s1635 + $0x38] sm:$0xf]
  %v2048 = vld [vmem:[%s1635 + $0x3c] sm:$0x1]
  %v2049 = vld [vmem:[%s1635 + $0x48] sm:$0xf]
  %v2050 = vld [vmem:[%s1635 + $0x4c] sm:$0x1]
  %v2051 = vld [vmem:[%s1635 + $0x50] sm:$0xf]
  %v2052 = vld [vmem:[%s1635 + $0x54] sm:$0x1]
  %v2053 = vld [vmem:[%s1635 + $0x58] sm:$0xf]
  %v2054 = vld [vmem:[%s1635 + $0x5c] sm:$0x1]
  %v2055 = vld [vmem:[%s1635 + $0x60] sm:$0xf]
  %v2056 = vld [vmem:[%s1635 + $0x64] sm:$0x1]
  %v2057 = vld [vmem:[%s1635 + $0x68] sm:$0xf]
  %v2058 = vld [vmem:[%s1635 + $0x6c] sm:$0x1]
  %v2059 = vld [vmem:[%s1635 + $0x70] sm:$0xf]
  %v2060 = vld [vmem:[%s1635 + $0x74] sm:$0x1]
  %v2061 = vld [vmem:[%s1635 + $0x78] sm:$0xf]
  %v2062 = vld [vmem:[%s1635 + $0x7c] sm:$0x1]
  %v2063 = vld [vmem:[%s1635 + $0x80] sm:$0xf]
  %v2064 = vld [vmem:[%s1635 + $0x84] sm:$0x1]
  %v2066 = vshrl.u32 %v2033, 16
  %v2068 = vrot.slane %v2066, 4
  %v2069 = vshll.u32 %v2033, 16
  %v2071 = vrot.slane %v2069, 5
  %v2072 = vor.u32 %v2068, %v2071
  %v2073 = vrot.slane %v2072, 4
  %v2075 = vshll.u32 %v2034, 16
  %v2077 = vrot.slane %v2075, 5
  %v2078 = vsel %vm424, %v2073, %v2077
  %v2080 = vshrl.u32 %v2035, 16
  %v2082 = vrot.slane %v2080, 4
  %v2083 = vshll.u32 %v2035, 16
  %v2085 = vrot.slane %v2083, 5
  %v2086 = vor.u32 %v2082, %v2085
  %v2087 = vrot.slane %v2086, 4
  %v2089 = vshll.u32 %v2036, 16
  %v2091 = vrot.slane %v2089, 5
  %v2092 = vsel %vm424, %v2087, %v2091
  %v2094 = vshrl.u32 %v2037, 16
  %v2096 = vrot.slane %v2094, 4
  %v2097 = vshll.u32 %v2037, 16
  %v2099 = vrot.slane %v2097, 5
  %v2100 = vor.u32 %v2096, %v2099
  %v2101 = vrot.slane %v2100, 4
  %v2103 = vshll.u32 %v2038, 16
  %v2105 = vrot.slane %v2103, 5
  %v2106 = vsel %vm424, %v2101, %v2105
  %v2108 = vshrl.u32 %v2039, 16
  %v2110 = vrot.slane %v2108, 4
  %v2111 = vshll.u32 %v2039, 16
  %v2113 = vrot.slane %v2111, 5
  %v2114 = vor.u32 %v2110, %v2113
  %v2115 = vrot.slane %v2114, 4
  %v2117 = vshll.u32 %v2040, 16
  %v2119 = vrot.slane %v2117, 5
  %v2120 = vsel %vm424, %v2115, %v2119
  %v2122 = vshrl.u32 %v2041, 16
  %v2124 = vrot.slane %v2122, 4
  %v2125 = vshll.u32 %v2041, 16
  %v2127 = vrot.slane %v2125, 5
  %v2128 = vor.u32 %v2124, %v2127
  %v2129 = vrot.slane %v2128, 4
  %v2131 = vshll.u32 %v2042, 16
  %v2133 = vrot.slane %v2131, 5
  %v2134 = vsel %vm424, %v2129, %v2133
  %v2136 = vshrl.u32 %v2043, 16
  %v2138 = vrot.slane %v2136, 4
  %v2139 = vshll.u32 %v2043, 16
  %v2141 = vrot.slane %v2139, 5
  %v2142 = vor.u32 %v2138, %v2141
  %v2143 = vrot.slane %v2142, 4
  %v2145 = vshll.u32 %v2044, 16
  %v2147 = vrot.slane %v2145, 5
  %v2148 = vsel %vm424, %v2143, %v2147
  %v2150 = vshrl.u32 %v2045, 16
  %v2152 = vrot.slane %v2150, 4
  %v2153 = vshll.u32 %v2045, 16
  %v2155 = vrot.slane %v2153, 5
  %v2156 = vor.u32 %v2152, %v2155
  %v2157 = vrot.slane %v2156, 4
  %v2159 = vshll.u32 %v2046, 16
  %v2161 = vrot.slane %v2159, 5
  %v2162 = vsel %vm424, %v2157, %v2161
  %v2164 = vshrl.u32 %v2047, 16
  %v2166 = vrot.slane %v2164, 4
  %v2167 = vshll.u32 %v2047, 16
  %v2169 = vrot.slane %v2167, 5
  %v2170 = vor.u32 %v2166, %v2169
  %v2171 = vrot.slane %v2170, 4
  %v2173 = vshll.u32 %v2048, 16
  %v2175 = vrot.slane %v2173, 5
  %v2176 = vsel %vm424, %v2171, %v2175
  %v2178 = vshrl.u32 %v2049, 16
  %v2180 = vrot.slane %v2178, 4
  %v2181 = vshll.u32 %v2049, 16
  %v2183 = vrot.slane %v2181, 5
  %v2184 = vor.u32 %v2180, %v2183
  %v2185 = vrot.slane %v2184, 4
  %v2187 = vshll.u32 %v2050, 16
  %v2189 = vrot.slane %v2187, 5
  %v2190 = vsel %vm424, %v2185, %v2189
  %v2192 = vshrl.u32 %v2051, 16
  %v2194 = vrot.slane %v2192, 4
  %v2195 = vshll.u32 %v2051, 16
  %v2197 = vrot.slane %v2195, 5
  %v2198 = vor.u32 %v2194, %v2197
  %v2199 = vrot.slane %v2198, 4
  %v2201 = vshll.u32 %v2052, 16
  %v2203 = vrot.slane %v2201, 5
  %v2204 = vsel %vm424, %v2199, %v2203
  %v2206 = vshrl.u32 %v2053, 16
  %v2208 = vrot.slane %v2206, 4
  %v2209 = vshll.u32 %v2053, 16
  %v2211 = vrot.slane %v2209, 5
  %v2212 = vor.u32 %v2208, %v2211
  %v2213 = vrot.slane %v2212, 4
  %v2215 = vshll.u32 %v2054, 16
  %v2217 = vrot.slane %v2215, 5
  %v2218 = vsel %vm424, %v2213, %v2217
  %v2220 = vshrl.u32 %v2055, 16
  %v2222 = vrot.slane %v2220, 4
  %v2223 = vshll.u32 %v2055, 16
  %v2225 = vrot.slane %v2223, 5
  %v2226 = vor.u32 %v2222, %v2225
  %v2227 = vrot.slane %v2226, 4
  %v2229 = vshll.u32 %v2056, 16
  %v2231 = vrot.slane %v2229, 5
  %v2232 = vsel %vm424, %v2227, %v2231
  %v2234 = vshrl.u32 %v2057, 16
  %v2236 = vrot.slane %v2234, 4
  %v2237 = vshll.u32 %v2057, 16
  %v2239 = vrot.slane %v2237, 5
  %v2240 = vor.u32 %v2236, %v2239
  %v2241 = vrot.slane %v2240, 4
  %v2243 = vshll.u32 %v2058, 16
  %v2245 = vrot.slane %v2243, 5
  %v2246 = vsel %vm424, %v2241, %v2245
  %v2248 = vshrl.u32 %v2059, 16
  %v2250 = vrot.slane %v2248, 4
  %v2251 = vshll.u32 %v2059, 16
  %v2253 = vrot.slane %v2251, 5
  %v2254 = vor.u32 %v2250, %v2253
  %v2255 = vrot.slane %v2254, 4
  %v2257 = vshll.u32 %v2060, 16
  %v2259 = vrot.slane %v2257, 5
  %v2260 = vsel %vm424, %v2255, %v2259
  %v2262 = vshrl.u32 %v2061, 16
  %v2264 = vrot.slane %v2262, 4
  %v2265 = vshll.u32 %v2061, 16
  %v2267 = vrot.slane %v2265, 5
  %v2268 = vor.u32 %v2264, %v2267
  %v2269 = vrot.slane %v2268, 4
  %v2271 = vshll.u32 %v2062, 16
  %v2273 = vrot.slane %v2271, 5
  %v2274 = vsel %vm424, %v2269, %v2273
  %v2276 = vshrl.u32 %v2063, 16
  %v2278 = vrot.slane %v2276, 4
  %v2279 = vshll.u32 %v2063, 16
  %v2281 = vrot.slane %v2279, 5
  %v2282 = vor.u32 %v2278, %v2281
  %v2283 = vrot.slane %v2282, 4
  %v2285 = vshll.u32 %v2064, 16
  %v2287 = vrot.slane %v2285, 5
  %v2288 = vsel %vm424, %v2283, %v2287
  %s2289 = scalar_lea.vmem %s1, 16
  %v2290 = vld [vmem:[%s2289] sm:$0x3]
  %v2291 = vunpack.c.l.b16 %v2078
  %v2292 = vunpack.c.l.b16 %v2092
  %v2293 = vunpack.c.l.b16 %v2106
  %v2294 = vunpack.c.l.b16 %v2120
  %v2295 = vunpack.c.l.b16 %v2134
  %v2296 = vunpack.c.l.b16 %v2148
  %v2297 = vunpack.c.l.b16 %v2162
  %v2298 = vunpack.c.l.b16 %v2176
  %v2299 = vunpack.c.l.b16 %v2190
  %v2300 = vunpack.c.l.b16 %v2204
  %v2301 = vunpack.c.l.b16 %v2218
  %v2302 = vunpack.c.l.b16 %v2232
  %v2303 = vunpack.c.l.b16 %v2246
  %v2304 = vunpack.c.l.b16 %v2260
  %v2305 = vunpack.c.l.b16 %v2274
  %v2306 = vunpack.c.l.b16 %v2288
  %v2307 = vpack.c.b16 %v2292, %v2291
  %v2308 = vpack.c.b16 %v2294, %v2293
  %v2309 = vpack.c.b16 %v2296, %v2295
  %v2310 = vpack.c.b16 %v2298, %v2297
  %v2311 = vpack.c.b16 %v2300, %v2299
  %v2312 = vpack.c.b16 %v2302, %v2301
  %v2313 = vpack.c.b16 %v2304, %v2303
  %v2314 = vpack.c.b16 %v2306, %v2305
  %v2316 = vsel %vm100, %v2307, 0
  %v2319 = vsel %vm100, %v2308, 0
  %v2322 = vsel %vm100, %v2309, 0
  %v2325 = vsel %vm100, %v2310, 0
  %v2328 = vsel %vm100, %v2311, 0
  %v2331 = vsel %vm100, %v2312, 0
  %v2334 = vsel %vm100, %v2313, 0
  %v2337 = vsel %vm100, %v2314, 0
  %v2340 = vsel %vm125, %v2290, 0
  %2342 = vmatprep.subr.bf16.mxu0 0
  %2343 = vmatpush1.bf16.msra.mxu0 0
  %2344 = vmatprep.subr.bf16.mxu0 0
  %2345 = vmatpush1.bf16.msra.mxu0 0
  %2346 = vmatprep.subr.bf16.mxu0 0
  %2347 = vmatpush1.bf16.msra.mxu0 0
  %2348 = vmatprep.subr.bf16.mxu0 0
  %2349 = vmatpush1.bf16.msra.mxu0 0
  %2350 = vmatprep.subr.bf16.mxu0 0
  %2351 = vmatpush1.bf16.msra.mxu0 0
  %2352 = vmatprep.subr.bf16.mxu0 0
  %2353 = vmatpush1.bf16.msra.mxu0 0
  %2354 = vmatprep.subr.bf16.mxu0 0
  %2355 = vmatpush1.bf16.msra.mxu0 0
  %2356 = vmatprep.subr.bf16.mxu0 0
  %2357 = vmatpush1.bf16.msra.mxu0 %v2340
  %2358 = vmatprep.subr.bf16.mxu0 0
  %2359 = vmatpush2.bf16.msra.mxu0 0
  %2360 = vmatprep.subr.bf16.mxu0 0
  %2361 = vmatpush2.bf16.msra.mxu0 0
  %2362 = vmatprep.subr.bf16.mxu0 0
  %2363 = vmatpush2.bf16.msra.mxu0 0
  %2364 = vmatprep.subr.bf16.mxu0 0
  %2365 = vmatpush2.bf16.msra.mxu0 0
  %2366 = vmatprep.subr.bf16.mxu0 0
  %2367 = vmatpush2.bf16.msra.mxu0 0
  %2368 = vmatprep.subr.bf16.mxu0 0
  %2369 = vmatpush2.bf16.msra.mxu0 0
  %2370 = vmatprep.subr.bf16.mxu0 0
  %2371 = vmatpush2.bf16.msra.mxu0 0
  %2372 = vmatprep.subr.bf16.mxu0 0
  %2373 = vmatpush2.bf16.msra.mxu0 0
  %2374 = vmatprep.mubr.bf16.mxu0 0
  %2375 = vmatmul.mubr.bf16.gmra.mxu0 %v2316
  %v2376 = vpop.f32.mrf.mxu0
  %v2377 = vadd.f32 0.0, %v2376
  %v2378 = vpop.f32.mrf.mxu0
  %v2379 = vpop.f32.mrf.mxu0
  %v2380 = vadd.f32 0.0, %v2379
  %v2381 = vpop.f32.mrf.mxu0
  %2382 = vmatprep.mubr.bf16.mxu0 0
  %2383 = vmatmul.mubr.bf16.gmra.mxu0 %v2319
  %v2384 = vpop.f32.mrf.mxu0
  %v2385 = vadd.f32 0.0, %v2384
  %v2386 = vpop.f32.mrf.mxu0
  %v2387 = vpop.f32.mrf.mxu0
  %v2388 = vadd.f32 0.0, %v2387
  %v2389 = vpop.f32.mrf.mxu0
  %2390 = vmatprep.mubr.bf16.mxu0 0
  %2391 = vmatmul.mubr.bf16.gmra.mxu0 %v2322
  %v2392 = vpop.f32.mrf.mxu0
  %v2393 = vadd.f32 0.0, %v2392
  %v2394 = vpop.f32.mrf.mxu0
  %v2395 = vpop.f32.mrf.mxu0
  %v2396 = vadd.f32 0.0, %v2395
  %v2397 = vpop.f32.mrf.mxu0
  %2398 = vmatprep.mubr.bf16.mxu0 0
  %2399 = vmatmul.mubr.bf16.gmra.mxu0 %v2325
  %v2400 = vpop.f32.mrf.mxu0
  %v2401 = vadd.f32 0.0, %v2400
  %v2402 = vpop.f32.mrf.mxu0
  %v2403 = vpop.f32.mrf.mxu0
  %v2404 = vadd.f32 0.0, %v2403
  %v2405 = vpop.f32.mrf.mxu0
  %2406 = vmatprep.mubr.bf16.mxu0 0
  %2407 = vmatmul.mubr.bf16.gmra.mxu0 %v2328
  %v2408 = vpop.f32.mrf.mxu0
  %v2409 = vadd.f32 0.0, %v2408
  %v2410 = vpop.f32.mrf.mxu0
  %v2411 = vpop.f32.mrf.mxu0
  %v2412 = vadd.f32 0.0, %v2411
  %v2413 = vpop.f32.mrf.mxu0
  %2414 = vmatprep.mubr.bf16.mxu0 0
  %2415 = vmatmul.mubr.bf16.gmra.mxu0 %v2331
  %v2416 = vpop.f32.mrf.mxu0
  %v2417 = vadd.f32 0.0, %v2416
  %v2418 = vpop.f32.mrf.mxu0
  %v2419 = vpop.f32.mrf.mxu0
  %v2420 = vadd.f32 0.0, %v2419
  %v2421 = vpop.f32.mrf.mxu0
  %2422 = vmatprep.mubr.bf16.mxu0 0
  %2423 = vmatmul.mubr.bf16.gmra.mxu0 %v2334
  %v2424 = vpop.f32.mrf.mxu0
  %v2425 = vadd.f32 0.0, %v2424
  %v2426 = vpop.f32.mrf.mxu0
  %v2427 = vpop.f32.mrf.mxu0
  %v2428 = vadd.f32 0.0, %v2427
  %v2429 = vpop.f32.mrf.mxu0
  %2430 = vmatprep.mubr.bf16.mxu0 0
  %2431 = vmatmul.mubr.bf16.gmra.mxu0 %v2337
  %v2432 = vpop.f32.mrf.mxu0
  %v2433 = vadd.f32 0.0, %v2432
  %v2434 = vpop.f32.mrf.mxu0
  %v2435 = vpop.f32.mrf.mxu0
  %v2436 = vadd.f32 0.0, %v2435
  %v2437 = vpop.f32.mrf.mxu0
  %2438 = vdwg.mxu0
  %v2439 = vadd.f32 %v2017, %v2377
  %v2440 = vadd.f32 %v2018, %v2380
  %v2441 = vadd.f32 %v2019, %v2385
  %v2442 = vadd.f32 %v2020, %v2388
  %v2443 = vadd.f32 %v2021, %v2393
  %v2444 = vadd.f32 %v2022, %v2396
  %v2445 = vadd.f32 %v2023, %v2401
  %v2446 = vadd.f32 %v2024, %v2404
  %v2447 = vadd.f32 %v2025, %v2409
  %v2448 = vadd.f32 %v2026, %v2412
  %v2449 = vadd.f32 %v2027, %v2417
  %v2450 = vadd.f32 %v2028, %v2420
  %v2451 = vadd.f32 %v2029, %v2425
  %v2452 = vadd.f32 %v2030, %v2428
  %v2453 = vadd.f32 %v2031, %v2433
  %v2454 = vadd.f32 %v2032, %v2436
  %v2455 = vld [vmem:[%s2] sm:$0x1]
  %v2457 = vlaneseq
  %v2458 = vshrl.u32 %v2457, 7
  %v2459 = vsub.s32 0, %v2458
  %v2460 = vrot.slane %v2455, %v2459
  %v2462 = vadd.f32 %v2439, %v2460
  %v2463 = vadd.f32 %v2440, %v2460
  %v2464 = vadd.f32 %v2441, %v2460
  %v2465 = vadd.f32 %v2442, %v2460
  %v2466 = vadd.f32 %v2443, %v2460
  %v2467 = vadd.f32 %v2444, %v2460
  %v2468 = vadd.f32 %v2445, %v2460
  %v2469 = vadd.f32 %v2446, %v2460
  %v2470 = vadd.f32 %v2447, %v2460
  %v2471 = vadd.f32 %v2448, %v2460
  %v2472 = vadd.f32 %v2449, %v2460
  %v2473 = vadd.f32 %v2450, %v2460
  %v2474 = vadd.f32 %v2451, %v2460
  %v2475 = vadd.f32 %v2452, %v2460
  %v2476 = vadd.f32 %v2453, %v2460
  %v2477 = vadd.f32 %v2454, %v2460
  %v2478 = vmax.f32 %v2462, 0.0
  %v2479 = vmax.f32 %v2463, 0.0
  %v2480 = vmax.f32 %v2464, 0.0
  %v2481 = vmax.f32 %v2465, 0.0
  %v2482 = vmax.f32 %v2466, 0.0
  %v2483 = vmax.f32 %v2467, 0.0
  %v2484 = vmax.f32 %v2468, 0.0
  %v2485 = vmax.f32 %v2469, 0.0
  %v2486 = vmax.f32 %v2470, 0.0
  %v2487 = vmax.f32 %v2471, 0.0
  %v2488 = vmax.f32 %v2472, 0.0
  %v2489 = vmax.f32 %v2473, 0.0
  %v2490 = vmax.f32 %v2474, 0.0
  %v2491 = vmax.f32 %v2475, 0.0
  %v2492 = vmax.f32 %v2476, 0.0
  %v2493 = vmax.f32 %v2477, 0.0
  %2494 = vst [vmem:[#allocation2] sm:$0xf] 0
  %2495 = vst [vmem:[#allocation2 + $0x4] sm:$0x1] 0
  %2496 = vst [vmem:[#allocation2 + $0x50] sm:$0xf] 0
  %2497 = vst [vmem:[#allocation2 + $0x54] sm:$0x1] 0
  %s2498 = scalar_lea.vmem [#allocation2], 72
  %2499 = vst [vmem:[%s2498] sm:$0xf] 0
  %2500 = vst [vmem:[%s2498 + $0x4] sm:$0x1] 0
  %2501 = vst [vmem:[%s2498 + $0x50] sm:$0xf] 0
  %2502 = vst [vmem:[%s2498 + $0x54] sm:$0x1] 0
  %s2503 = scalar_lea.vmem [#allocation2], 8
  %vm2504 = vcmask 1040384
  %vm2505 = vsmask.f32 256
  %vm2506 = vmand %vm2504, %vm2505
  %v2507 = vld [vmem:[%s2503] sm:$0x1]
  %v2508 = vsel %vm2506, 0, %v2507
  %2509 = vst [vmem:[%s2503] sm:$0x1] %v2508
  %v2510 = vld [vmem:[%s2503 + $0x8] sm:$0x1]
  %v2511 = vsel %vm2506, 0, %v2510
  %2512 = vst [vmem:[%s2503 + $0x8] sm:$0x1] %v2511
  %v2513 = vld [vmem:[%s2503 + $0x10] sm:$0x1]
  %v2514 = vsel %vm2506, 0, %v2513
  %2515 = vst [vmem:[%s2503 + $0x10] sm:$0x1] %v2514
  %v2516 = vld [vmem:[%s2503 + $0x18] sm:$0x1]
  %v2517 = vsel %vm2506, 0, %v2516
  %2518 = vst [vmem:[%s2503 + $0x18] sm:$0x1] %v2517
  %v2519 = vld [vmem:[%s2503 + $0x20] sm:$0x1]
  %v2520 = vsel %vm2506, 0, %v2519
  %2521 = vst [vmem:[%s2503 + $0x20] sm:$0x1] %v2520
  %v2522 = vld [vmem:[%s2503 + $0x28] sm:$0x1]
  %v2523 = vsel %vm2506, 0, %v2522
  %2524 = vst [vmem:[%s2503 + $0x28] sm:$0x1] %v2523
  %v2525 = vld [vmem:[%s2503 + $0x30] sm:$0x1]
  %v2526 = vsel %vm2506, 0, %v2525
  %2527 = vst [vmem:[%s2503 + $0x30] sm:$0x1] %v2526
  %v2528 = vld [vmem:[%s2503 + $0x38] sm:$0x1]
  %v2529 = vsel %vm2506, 0, %v2528
  %2530 = vst [vmem:[%s2503 + $0x38] sm:$0x1] %v2529
  %v2531 = vld [vmem:[%s2503 + $0x50] sm:$0x1]
  %v2532 = vsel %vm2506, 0, %v2531
  %2533 = vst [vmem:[%s2503 + $0x50] sm:$0x1] %v2532
  %v2534 = vld [vmem:[%s2503 + $0x58] sm:$0x1]
  %v2535 = vsel %vm2506, 0, %v2534
  %2536 = vst [vmem:[%s2503 + $0x58] sm:$0x1] %v2535
  %v2537 = vld [vmem:[%s2503 + $0x60] sm:$0x1]
  %v2538 = vsel %vm2506, 0, %v2537
  %2539 = vst [vmem:[%s2503 + $0x60] sm:$0x1] %v2538
  %v2540 = vld [vmem:[%s2503 + $0x68] sm:$0x1]
  %v2541 = vsel %vm2506, 0, %v2540
  %2542 = vst [vmem:[%s2503 + $0x68] sm:$0x1] %v2541
  %v2543 = vld [vmem:[%s2503 + $0x70] sm:$0x1]
  %v2544 = vsel %vm2506, 0, %v2543
  %2545 = vst [vmem:[%s2503 + $0x70] sm:$0x1] %v2544
  %v2546 = vld [vmem:[%s2503 + $0x78] sm:$0x1]
  %v2547 = vsel %vm2506, 0, %v2546
  %2548 = vst [vmem:[%s2503 + $0x78] sm:$0x1] %v2547
  %v2549 = vld [vmem:[%s2503 + $0x80] sm:$0x1]
  %v2550 = vsel %vm2506, 0, %v2549
  %2551 = vst [vmem:[%s2503 + $0x80] sm:$0x1] %v2550
  %v2552 = vld [vmem:[%s2503 + $0x88] sm:$0x1]
  %v2553 = vsel %vm2506, 0, %v2552
  %2554 = vst [vmem:[%s2503 + $0x88] sm:$0x1] %v2553
  %vm2555 = vsmask.f32 7938
  %vm2556 = vmand %vm2504, %vm2555
  %v2557 = vld [vmem:[%s2503 + $0x4] sm:$0x1]
  %v2558 = vsel %vm2556, 0, %v2557
  %2559 = vst [vmem:[%s2503 + $0x4] sm:$0x1] %v2558
  %v2560 = vld [vmem:[%s2503 + $0xc] sm:$0x1]
  %v2561 = vsel %vm2556, 0, %v2560
  %2562 = vst [vmem:[%s2503 + $0xc] sm:$0x1] %v2561
  %v2563 = vld [vmem:[%s2503 + $0x14] sm:$0x1]
  %v2564 = vsel %vm2556, 0, %v2563
  %2565 = vst [vmem:[%s2503 + $0x14] sm:$0x1] %v2564
  %v2566 = vld [vmem:[%s2503 + $0x1c] sm:$0x1]
  %v2567 = vsel %vm2556, 0, %v2566
  %2568 = vst [vmem:[%s2503 + $0x1c] sm:$0x1] %v2567
  %v2569 = vld [vmem:[%s2503 + $0x24] sm:$0x1]
  %v2570 = vsel %vm2556, 0, %v2569
  %2571 = vst [vmem:[%s2503 + $0x24] sm:$0x1] %v2570
  %v2572 = vld [vmem:[%s2503 + $0x2c] sm:$0x1]
  %v2573 = vsel %vm2556, 0, %v2572
  %2574 = vst [vmem:[%s2503 + $0x2c] sm:$0x1] %v2573
  %v2575 = vld [vmem:[%s2503 + $0x34] sm:$0x1]
  %v2576 = vsel %vm2556, 0, %v2575
  %2577 = vst [vmem:[%s2503 + $0x34] sm:$0x1] %v2576
  %v2578 = vld [vmem:[%s2503 + $0x3c] sm:$0x1]
  %v2579 = vsel %vm2556, 0, %v2578
  %2580 = vst [vmem:[%s2503 + $0x3c] sm:$0x1] %v2579
  %v2581 = vld [vmem:[%s2503 + $0x54] sm:$0x1]
  %v2582 = vsel %vm2556, 0, %v2581
  %2583 = vst [vmem:[%s2503 + $0x54] sm:$0x1] %v2582
  %v2584 = vld [vmem:[%s2503 + $0x5c] sm:$0x1]
  %v2585 = vsel %vm2556, 0, %v2584
  %2586 = vst [vmem:[%s2503 + $0x5c] sm:$0x1] %v2585
  %v2587 = vld [vmem:[%s2503 + $0x64] sm:$0x1]
  %v2588 = vsel %vm2556, 0, %v2587
  %2589 = vst [vmem:[%s2503 + $0x64] sm:$0x1] %v2588
  %v2590 = vld [vmem:[%s2503 + $0x6c] sm:$0x1]
  %v2591 = vsel %vm2556, 0, %v2590
  %2592 = vst [vmem:[%s2503 + $0x6c] sm:$0x1] %v2591
  %v2593 = vld [vmem:[%s2503 + $0x74] sm:$0x1]
  %v2594 = vsel %vm2556, 0, %v2593
  %2595 = vst [vmem:[%s2503 + $0x74] sm:$0x1] %v2594
  %v2596 = vld [vmem:[%s2503 + $0x7c] sm:$0x1]
  %v2597 = vsel %vm2556, 0, %v2596
  %2598 = vst [vmem:[%s2503 + $0x7c] sm:$0x1] %v2597
  %v2599 = vld [vmem:[%s2503 + $0x84] sm:$0x1]
  %v2600 = vsel %vm2556, 0, %v2599
  %2601 = vst [vmem:[%s2503 + $0x84] sm:$0x1] %v2600
  %v2602 = vld [vmem:[%s2503 + $0x8c] sm:$0x1]
  %v2603 = vsel %vm2556, 0, %v2602
  %2604 = vst [vmem:[%s2503 + $0x8c] sm:$0x1] %v2603
  %v2605 = vpack.c.bf16 %v2478, %v2478
  %v2606 = vpack.c.bf16 %v2479, %v2479
  %v2607 = vpack.c.bf16 %v2480, %v2480
  %v2608 = vpack.c.bf16 %v2481, %v2481
  %v2609 = vpack.c.bf16 %v2482, %v2482
  %v2610 = vpack.c.bf16 %v2483, %v2483
  %v2611 = vpack.c.bf16 %v2484, %v2484
  %v2612 = vpack.c.bf16 %v2485, %v2485
  %v2613 = vpack.c.bf16 %v2486, %v2486
  %v2614 = vpack.c.bf16 %v2487, %v2487
  %v2615 = vpack.c.bf16 %v2488, %v2488
  %v2616 = vpack.c.bf16 %v2489, %v2489
  %v2617 = vpack.c.bf16 %v2490, %v2490
  %v2618 = vpack.c.bf16 %v2491, %v2491
  %v2619 = vpack.c.bf16 %v2492, %v2492
  %v2620 = vpack.c.bf16 %v2493, %v2493
  %v2637 = vunpack.c.l.b16 %v2605
  %v2638 = vunpack.c.l.b16 %v2606
  %v2639 = vunpack.c.l.b16 %v2607
  %v2640 = vunpack.c.l.b16 %v2608
  %v2641 = vunpack.c.l.b16 %v2609
  %v2642 = vunpack.c.l.b16 %v2610
  %v2643 = vunpack.c.l.b16 %v2611
  %v2644 = vunpack.c.l.b16 %v2612
  %v2645 = vunpack.c.l.b16 %v2613
  %v2646 = vunpack.c.l.b16 %v2614
  %v2647 = vunpack.c.l.b16 %v2615
  %v2648 = vunpack.c.l.b16 %v2616
  %v2649 = vunpack.c.l.b16 %v2617
  %v2650 = vunpack.c.l.b16 %v2618
  %v2651 = vunpack.c.l.b16 %v2619
  %v2652 = vunpack.c.l.b16 %v2620
  %v2653 = vpack.c.b16 %v2637, %v2637
  %v2654 = vpack.c.b16 %v2638, %v2638
  %v2655 = vpack.c.b16 %v2639, %v2639
  %v2656 = vpack.c.b16 %v2640, %v2640
  %v2657 = vpack.c.b16 %v2641, %v2641
  %v2658 = vpack.c.b16 %v2642, %v2642
  %v2659 = vpack.c.b16 %v2643, %v2643
  %v2660 = vpack.c.b16 %v2644, %v2644
  %v2661 = vpack.c.b16 %v2645, %v2645
  %v2662 = vpack.c.b16 %v2646, %v2646
  %v2663 = vpack.c.b16 %v2647, %v2647
  %v2664 = vpack.c.b16 %v2648, %v2648
  %v2665 = vpack.c.b16 %v2649, %v2649
  %v2666 = vpack.c.b16 %v2650, %v2650
  %v2667 = vpack.c.b16 %v2651, %v2651
  %v2668 = vpack.c.b16 %v2652, %v2652
  %v2670 = vshrl.u32 %v2653, 16
  %v2672 = vrot.slane %v2670, 7
  %v2673 = vshll.u32 %v2653, 16
  %v2675 = vor.u32 %v2672, %v2673
  %v2676 = vrot.slane %v2672, 4
  %v2678 = vshrl.u32 %v2654, 16
  %v2680 = vrot.slane %v2678, 7
  %v2681 = vshll.u32 %v2654, 16
  %v2683 = vor.u32 %v2680, %v2681
  %v2684 = vrot.slane %v2680, 4
  %v2686 = vshrl.u32 %v2655, 16
  %v2688 = vrot.slane %v2686, 7
  %v2689 = vshll.u32 %v2655, 16
  %v2691 = vor.u32 %v2688, %v2689
  %v2692 = vrot.slane %v2688, 4
  %v2694 = vshrl.u32 %v2656, 16
  %v2696 = vrot.slane %v2694, 7
  %v2697 = vshll.u32 %v2656, 16
  %v2699 = vor.u32 %v2696, %v2697
  %v2700 = vrot.slane %v2696, 4
  %v2702 = vshrl.u32 %v2657, 16
  %v2704 = vrot.slane %v2702, 7
  %v2705 = vshll.u32 %v2657, 16
  %v2707 = vor.u32 %v2704, %v2705
  %v2708 = vrot.slane %v2704, 4
  %v2710 = vshrl.u32 %v2658, 16
  %v2712 = vrot.slane %v2710, 7
  %v2713 = vshll.u32 %v2658, 16
  %v2715 = vor.u32 %v2712, %v2713
  %v2716 = vrot.slane %v2712, 4
  %v2718 = vshrl.u32 %v2659, 16
  %v2720 = vrot.slane %v2718, 7
  %v2721 = vshll.u32 %v2659, 16
  %v2723 = vor.u32 %v2720, %v2721
  %v2724 = vrot.slane %v2720, 4
  %v2726 = vshrl.u32 %v2660, 16
  %v2728 = vrot.slane %v2726, 7
  %v2729 = vshll.u32 %v2660, 16
  %v2731 = vor.u32 %v2728, %v2729
  %v2732 = vrot.slane %v2728, 4
  %v2734 = vshrl.u32 %v2661, 16
  %v2736 = vrot.slane %v2734, 7
  %v2737 = vshll.u32 %v2661, 16
  %v2739 = vor.u32 %v2736, %v2737
  %v2740 = vrot.slane %v2736, 4
  %v2742 = vshrl.u32 %v2662, 16
  %v2744 = vrot.slane %v2742, 7
  %v2745 = vshll.u32 %v2662, 16
  %v2747 = vor.u32 %v2744, %v2745
  %v2748 = vrot.slane %v2744, 4
  %v2750 = vshrl.u32 %v2663, 16
  %v2752 = vrot.slane %v2750, 7
  %v2753 = vshll.u32 %v2663, 16
  %v2755 = vor.u32 %v2752, %v2753
  %v2756 = vrot.slane %v2752, 4
  %v2758 = vshrl.u32 %v2664, 16
  %v2760 = vrot.slane %v2758, 7
  %v2761 = vshll.u32 %v2664, 16
  %v2763 = vor.u32 %v2760, %v2761
  %v2764 = vrot.slane %v2760, 4
  %v2766 = vshrl.u32 %v2665, 16
  %v2768 = vrot.slane %v2766, 7
  %v2769 = vshll.u32 %v2665, 16
  %v2771 = vor.u32 %v2768, %v2769
  %v2772 = vrot.slane %v2768, 4
  %v2774 = vshrl.u32 %v2666, 16
  %v2776 = vrot.slane %v2774, 7
  %v2777 = vshll.u32 %v2666, 16
  %v2779 = vor.u32 %v2776, %v2777
  %v2780 = vrot.slane %v2776, 4
  %v2782 = vshrl.u32 %v2667, 16
  %v2784 = vrot.slane %v2782, 7
  %v2785 = vshll.u32 %v2667, 16
  %v2787 = vor.u32 %v2784, %v2785
  %v2788 = vrot.slane %v2784, 4
  %v2790 = vshrl.u32 %v2668, 16
  %v2792 = vrot.slane %v2790, 7
  %v2793 = vshll.u32 %v2668, 16
  %v2795 = vor.u32 %v2792, %v2793
  %v2796 = vrot.slane %v2792, 4
  %vm2829 = vcmask 1043456
  %vm2830 = vmand %vm2829, %vm2555
  %v2831 = vld [vmem:[%s2503] sm:$0xf]
  %v2832 = vsel %vm2830, %v2675, %v2831
  %2833 = vst [vmem:[%s2503] sm:$0xf] %v2832
  %v2834 = vld [vmem:[%s2503 + $0x4] sm:$0x1]
  %v2835 = vsel %vm2506, %v2676, %v2834
  %2836 = vst [vmem:[%s2503 + $0x4] sm:$0x1] %v2835
  %v2837 = vld [vmem:[%s2503 + $0x8] sm:$0xf]
  %v2838 = vsel %vm2830, %v2683, %v2837
  %2839 = vst [vmem:[%s2503 + $0x8] sm:$0xf] %v2838
  %v2840 = vld [vmem:[%s2503 + $0xc] sm:$0x1]
  %v2841 = vsel %vm2506, %v2684, %v2840
  %2842 = vst [vmem:[%s2503 + $0xc] sm:$0x1] %v2841
  %v2843 = vld [vmem:[%s2503 + $0x10] sm:$0xf]
  %v2844 = vsel %vm2830, %v2691, %v2843
  %2845 = vst [vmem:[%s2503 + $0x10] sm:$0xf] %v2844
  %v2846 = vld [vmem:[%s2503 + $0x14] sm:$0x1]
  %v2847 = vsel %vm2506, %v2692, %v2846
  %2848 = vst [vmem:[%s2503 + $0x14] sm:$0x1] %v2847
  %v2849 = vld [vmem:[%s2503 + $0x18] sm:$0xf]
  %v2850 = vsel %vm2830, %v2699, %v2849
  %2851 = vst [vmem:[%s2503 + $0x18] sm:$0xf] %v2850
  %v2852 = vld [vmem:[%s2503 + $0x1c] sm:$0x1]
  %v2853 = vsel %vm2506, %v2700, %v2852
  %2854 = vst [vmem:[%s2503 + $0x1c] sm:$0x1] %v2853
  %v2855 = vld [vmem:[%s2503 + $0x20] sm:$0xf]
  %v2856 = vsel %vm2830, %v2707, %v2855
  %2857 = vst [vmem:[%s2503 + $0x20] sm:$0xf] %v2856
  %v2858 = vld [vmem:[%s2503 + $0x24] sm:$0x1]
  %v2859 = vsel %vm2506, %v2708, %v2858
  %2860 = vst [vmem:[%s2503 + $0x24] sm:$0x1] %v2859
  %v2861 = vld [vmem:[%s2503 + $0x28] sm:$0xf]
  %v2862 = vsel %vm2830, %v2715, %v2861
  %2863 = vst [vmem:[%s2503 + $0x28] sm:$0xf] %v2862
  %v2864 = vld [vmem:[%s2503 + $0x2c] sm:$0x1]
  %v2865 = vsel %vm2506, %v2716, %v2864
  %2866 = vst [vmem:[%s2503 + $0x2c] sm:$0x1] %v2865
  %v2867 = vld [vmem:[%s2503 + $0x30] sm:$0xf]
  %v2868 = vsel %vm2830, %v2723, %v2867
  %2869 = vst [vmem:[%s2503 + $0x30] sm:$0xf] %v2868
  %v2870 = vld [vmem:[%s2503 + $0x34] sm:$0x1]
  %v2871 = vsel %vm2506, %v2724, %v2870
  %2872 = vst [vmem:[%s2503 + $0x34] sm:$0x1] %v2871
  %v2873 = vld [vmem:[%s2503 + $0x38] sm:$0xf]
  %v2874 = vsel %vm2830, %v2731, %v2873
  %2875 = vst [vmem:[%s2503 + $0x38] sm:$0xf] %v2874
  %v2876 = vld [vmem:[%s2503 + $0x3c] sm:$0x1]
  %v2877 = vsel %vm2506, %v2732, %v2876
  %2878 = vst [vmem:[%s2503 + $0x3c] sm:$0x1] %v2877
  %v2879 = vld [vmem:[%s2503 + $0x50] sm:$0xf]
  %v2880 = vsel %vm2830, %v2739, %v2879
  %2881 = vst [vmem:[%s2503 + $0x50] sm:$0xf] %v2880
  %v2882 = vld [vmem:[%s2503 + $0x54] sm:$0x1]
  %v2883 = vsel %vm2506, %v2740, %v2882
  %2884 = vst [vmem:[%s2503 + $0x54] sm:$0x1] %v2883
  %v2885 = vld [vmem:[%s2503 + $0x58] sm:$0xf]
  %v2886 = vsel %vm2830, %v2747, %v2885
  %2887 = vst [vmem:[%s2503 + $0x58] sm:$0xf] %v2886
  %v2888 = vld [vmem:[%s2503 + $0x5c] sm:$0x1]
  %v2889 = vsel %vm2506, %v2748, %v2888
  %2890 = vst [vmem:[%s2503 + $0x5c] sm:$0x1] %v2889
  %v2891 = vld [vmem:[%s2503 + $0x60] sm:$0xf]
  %v2892 = vsel %vm2830, %v2755, %v2891
  %2893 = vst [vmem:[%s2503 + $0x60] sm:$0xf] %v2892
  %v2894 = vld [vmem:[%s2503 + $0x64] sm:$0x1]
  %v2895 = vsel %vm2506, %v2756, %v2894
  %2896 = vst [vmem:[%s2503 + $0x64] sm:$0x1] %v2895
  %v2897 = vld [vmem:[%s2503 + $0x68] sm:$0xf]
  %v2898 = vsel %vm2830, %v2763, %v2897
  %2899 = vst [vmem:[%s2503 + $0x68] sm:$0xf] %v2898
  %v2900 = vld [vmem:[%s2503 + $0x6c] sm:$0x1]
  %v2901 = vsel %vm2506, %v2764, %v2900
  %2902 = vst [vmem:[%s2503 + $0x6c] sm:$0x1] %v2901
  %v2903 = vld [vmem:[%s2503 + $0x70] sm:$0xf]
  %v2904 = vsel %vm2830, %v2771, %v2903
  %2905 = vst [vmem:[%s2503 + $0x70] sm:$0xf] %v2904
  %v2906 = vld [vmem:[%s2503 + $0x74] sm:$0x1]
  %v2907 = vsel %vm2506, %v2772, %v2906
  %2908 = vst [vmem:[%s2503 + $0x74] sm:$0x1] %v2907
  %v2909 = vld [vmem:[%s2503 + $0x78] sm:$0xf]
  %v2910 = vsel %vm2830, %v2779, %v2909
  %2911 = vst [vmem:[%s2503 + $0x78] sm:$0xf] %v2910
  %v2912 = vld [vmem:[%s2503 + $0x7c] sm:$0x1]
  %v2913 = vsel %vm2506, %v2780, %v2912
  %2914 = vst [vmem:[%s2503 + $0x7c] sm:$0x1] %v2913
  %v2915 = vld [vmem:[%s2503 + $0x80] sm:$0xf]
  %v2916 = vsel %vm2830, %v2787, %v2915
  %2917 = vst [vmem:[%s2503 + $0x80] sm:$0xf] %v2916
  %v2918 = vld [vmem:[%s2503 + $0x84] sm:$0x1]
  %v2919 = vsel %vm2506, %v2788, %v2918
  %2920 = vst [vmem:[%s2503 + $0x84] sm:$0x1] %v2919
  %v2921 = vld [vmem:[%s2503 + $0x88] sm:$0xf]
  %v2922 = vsel %vm2830, %v2795, %v2921
  %2923 = vst [vmem:[%s2503 + $0x88] sm:$0xf] %v2922
  %v2924 = vld [vmem:[%s2503 + $0x8c] sm:$0x1]
  %v2925 = vsel %vm2506, %v2796, %v2924
  %2926 = vst [vmem:[%s2503 + $0x8c] sm:$0x1] %v2925
  %v2927 = vld [vmem:[#allocation2] sm:$0xf]
  %v2928 = vld [vmem:[#allocation2 + $0x8] sm:$0xf]
  %v2929 = vld [vmem:[#allocation2 + $0x10] sm:$0xf]
  %v2930 = vld [vmem:[#allocation2 + $0x18] sm:$0xf]
  %v2931 = vld [vmem:[#allocation2 + $0x20] sm:$0xf]
  %v2932 = vld [vmem:[#allocation2 + $0x28] sm:$0xf]
  %v2933 = vld [vmem:[#allocation2 + $0x30] sm:$0xf]
  %v2934 = vld [vmem:[#allocation2 + $0x38] sm:$0xf]
  %v2935 = vld [vmem:[#allocation2 + $0x50] sm:$0xf]
  %v2936 = vld [vmem:[#allocation2 + $0x58] sm:$0xf]
  %v2937 = vld [vmem:[#allocation2 + $0x60] sm:$0xf]
  %v2938 = vld [vmem:[#allocation2 + $0x68] sm:$0xf]
  %v2939 = vld [vmem:[#allocation2 + $0x70] sm:$0xf]
  %v2940 = vld [vmem:[#allocation2 + $0x78] sm:$0xf]
  %v2941 = vld [vmem:[#allocation2 + $0x80] sm:$0xf]
  %v2942 = vld [vmem:[#allocation2 + $0x88] sm:$0xf]
  %v2943 = vld [vmem:[#allocation2 + $0x4] sm:$0x1]
  %v2944 = vld [vmem:[#allocation2 + $0xc] sm:$0x1]
  %v2945 = vld [vmem:[#allocation2 + $0x14] sm:$0x1]
  %v2946 = vld [vmem:[#allocation2 + $0x1c] sm:$0x1]
  %v2947 = vld [vmem:[#allocation2 + $0x24] sm:$0x1]
  %v2948 = vld [vmem:[#allocation2 + $0x2c] sm:$0x1]
  %v2949 = vld [vmem:[#allocation2 + $0x34] sm:$0x1]
  %v2950 = vld [vmem:[#allocation2 + $0x3c] sm:$0x1]
  %v2951 = vld [vmem:[#allocation2 + $0x54] sm:$0x1]
  %v2952 = vld [vmem:[#allocation2 + $0x5c] sm:$0x1]
  %v2953 = vld [vmem:[#allocation2 + $0x64] sm:$0x1]
  %v2954 = vld [vmem:[#allocation2 + $0x6c] sm:$0x1]
  %v2955 = vld [vmem:[#allocation2 + $0x74] sm:$0x1]
  %v2956 = vld [vmem:[#allocation2 + $0x7c] sm:$0x1]
  %v2957 = vld [vmem:[#allocation2 + $0x84] sm:$0x1]
  %v2958 = vld [vmem:[#allocation2 + $0x8c] sm:$0x1]
  %v2959 = vld [vmem:[#allocation2] sm:$0xe]
  %v2960 = vld [vmem:[#allocation2 + $0x8] sm:$0xe]
  %v2961 = vld [vmem:[#allocation2 + $0x10] sm:$0xe]
  %v2962 = vld [vmem:[#allocation2 + $0x18] sm:$0xe]
  %v2963 = vld [vmem:[#allocation2 + $0x20] sm:$0xe]
  %v2964 = vld [vmem:[#allocation2 + $0x28] sm:$0xe]
  %v2965 = vld [vmem:[#allocation2 + $0x30] sm:$0xe]
  %v2966 = vld [vmem:[#allocation2 + $0x38] sm:$0xe]
  %v2967 = vld [vmem:[#allocation2 + $0x50] sm:$0xe]
  %v2968 = vld [vmem:[#allocation2 + $0x58] sm:$0xe]
  %v2969 = vld [vmem:[#allocation2 + $0x60] sm:$0xe]
  %v2970 = vld [vmem:[#allocation2 + $0x68] sm:$0xe]
  %v2971 = vld [vmem:[#allocation2 + $0x70] sm:$0xe]
  %v2972 = vld [vmem:[#allocation2 + $0x78] sm:$0xe]
  %v2973 = vld [vmem:[#allocation2 + $0x80] sm:$0xe]
  %v2974 = vld [vmem:[#allocation2 + $0x88] sm:$0xe]
  %v2975 = vld [vmem:[%s2503] sm:$0xf]
  %v2976 = vld [vmem:[%s2503 + $0x8] sm:$0xf]
  %v2977 = vld [vmem:[%s2503 + $0x10] sm:$0xf]
  %v2978 = vld [vmem:[%s2503 + $0x18] sm:$0xf]
  %v2979 = vld [vmem:[%s2503 + $0x20] sm:$0xf]
  %v2980 = vld [vmem:[%s2503 + $0x28] sm:$0xf]
  %v2981 = vld [vmem:[%s2503 + $0x30] sm:$0xf]
  %v2982 = vld [vmem:[%s2503 + $0x38] sm:$0xf]
  %v2983 = vld [vmem:[%s2503 + $0x50] sm:$0xf]
  %v2984 = vld [vmem:[%s2503 + $0x58] sm:$0xf]
  %v2985 = vld [vmem:[%s2503 + $0x60] sm:$0xf]
  %v2986 = vld [vmem:[%s2503 + $0x68] sm:$0xf]
  %v2987 = vld [vmem:[%s2503 + $0x70] sm:$0xf]
  %v2988 = vld [vmem:[%s2503 + $0x78] sm:$0xf]
  %v2989 = vld [vmem:[%s2503 + $0x80] sm:$0xf]
  %v2990 = vld [vmem:[%s2503 + $0x88] sm:$0xf]
  %v2991 = vld [vmem:[%s2503 + $0x4] sm:$0x1]
  %v2992 = vld [vmem:[%s2503 + $0xc] sm:$0x1]
  %v2993 = vld [vmem:[%s2503 + $0x14] sm:$0x1]
  %v2994 = vld [vmem:[%s2503 + $0x1c] sm:$0x1]
  %v2995 = vld [vmem:[%s2503 + $0x24] sm:$0x1]
  %v2996 = vld [vmem:[%s2503 + $0x2c] sm:$0x1]
  %v2997 = vld [vmem:[%s2503 + $0x34] sm:$0x1]
  %v2998 = vld [vmem:[%s2503 + $0x3c] sm:$0x1]
  %v2999 = vld [vmem:[%s2503 + $0x54] sm:$0x1]
  %v3000 = vld [vmem:[%s2503 + $0x5c] sm:$0x1]
  %v3001 = vld [vmem:[%s2503 + $0x64] sm:$0x1]
  %v3002 = vld [vmem:[%s2503 + $0x6c] sm:$0x1]
  %v3003 = vld [vmem:[%s2503 + $0x74] sm:$0x1]
  %v3004 = vld [vmem:[%s2503 + $0x7c] sm:$0x1]
  %v3005 = vld [vmem:[%s2503 + $0x84] sm:$0x1]
  %v3006 = vld [vmem:[%s2503 + $0x8c] sm:$0x1]
  %v3007 = vld [vmem:[%s2503] sm:$0xe]
  %v3008 = vld [vmem:[%s2503 + $0x8] sm:$0xe]
  %v3009 = vld [vmem:[%s2503 + $0x10] sm:$0xe]
  %v3010 = vld [vmem:[%s2503 + $0x18] sm:$0xe]
  %v3011 = vld [vmem:[%s2503 + $0x20] sm:$0xe]
  %v3012 = vld [vmem:[%s2503 + $0x28] sm:$0xe]
  %v3013 = vld [vmem:[%s2503 + $0x30] sm:$0xe]
  %v3014 = vld [vmem:[%s2503 + $0x38] sm:$0xe]
  %v3015 = vld [vmem:[%s2503 + $0x50] sm:$0xe]
  %v3016 = vld [vmem:[%s2503 + $0x58] sm:$0xe]
  %v3017 = vld [vmem:[%s2503 + $0x60] sm:$0xe]
  %v3018 = vld [vmem:[%s2503 + $0x68] sm:$0xe]
  %v3019 = vld [vmem:[%s2503 + $0x70] sm:$0xe]
  %v3020 = vld [vmem:[%s2503 + $0x78] sm:$0xe]
  %v3021 = vld [vmem:[%s2503 + $0x80] sm:$0xe]
  %v3022 = vld [vmem:[%s2503 + $0x88] sm:$0xe]
  %s3023 = scalar_lea.vmem [#allocation2], 16
  %v3024 = vld [vmem:[%s3023] sm:$0xf]
  %v3025 = vld [vmem:[%s3023 + $0x8] sm:$0xf]
  %v3026 = vld [vmem:[%s3023 + $0x10] sm:$0xf]
  %v3027 = vld [vmem:[%s3023 + $0x18] sm:$0xf]
  %v3028 = vld [vmem:[%s3023 + $0x20] sm:$0xf]
  %v3029 = vld [vmem:[%s3023 + $0x28] sm:$0xf]
  %v3030 = vld [vmem:[%s3023 + $0x30] sm:$0xf]
  %v3031 = vld [vmem:[%s3023 + $0x38] sm:$0xf]
  %v3032 = vld [vmem:[%s3023 + $0x50] sm:$0xf]
  %v3033 = vld [vmem:[%s3023 + $0x58] sm:$0xf]
  %v3034 = vld [vmem:[%s3023 + $0x60] sm:$0xf]
  %v3035 = vld [vmem:[%s3023 + $0x68] sm:$0xf]
  %v3036 = vld [vmem:[%s3023 + $0x70] sm:$0xf]
  %v3037 = vld [vmem:[%s3023 + $0x78] sm:$0xf]
  %v3038 = vld [vmem:[%s3023 + $0x80] sm:$0xf]
  %v3039 = vld [vmem:[%s3023 + $0x88] sm:$0xf]
  %v3040 = vld [vmem:[%s3023 + $0x4] sm:$0x1]
  %v3041 = vld [vmem:[%s3023 + $0xc] sm:$0x1]
  %v3042 = vld [vmem:[%s3023 + $0x14] sm:$0x1]
  %v3043 = vld [vmem:[%s3023 + $0x1c] sm:$0x1]
  %v3044 = vld [vmem:[%s3023 + $0x24] sm:$0x1]
  %v3045 = vld [vmem:[%s3023 + $0x2c] sm:$0x1]
  %v3046 = vld [vmem:[%s3023 + $0x34] sm:$0x1]
  %v3047 = vld [vmem:[%s3023 + $0x3c] sm:$0x1]
  %v3048 = vld [vmem:[%s3023 + $0x54] sm:$0x1]
  %v3049 = vld [vmem:[%s3023 + $0x5c] sm:$0x1]
  %v3050 = vld [vmem:[%s3023 + $0x64] sm:$0x1]
  %v3051 = vld [vmem:[%s3023 + $0x6c] sm:$0x1]
  %v3052 = vld [vmem:[%s3023 + $0x74] sm:$0x1]
  %v3053 = vld [vmem:[%s3023 + $0x7c] sm:$0x1]
  %v3054 = vld [vmem:[%s3023 + $0x84] sm:$0x1]
  %v3055 = vld [vmem:[%s3023 + $0x8c] sm:$0x1]
  %v3056 = vld [vmem:[%s3023] sm:$0xe]
  %v3057 = vld [vmem:[%s3023 + $0x8] sm:$0xe]
  %v3058 = vld [vmem:[%s3023 + $0x10] sm:$0xe]
  %v3059 = vld [vmem:[%s3023 + $0x18] sm:$0xe]
  %v3060 = vld [vmem:[%s3023 + $0x20] sm:$0xe]
  %v3061 = vld [vmem:[%s3023 + $0x28] sm:$0xe]
  %v3062 = vld [vmem:[%s3023 + $0x30] sm:$0xe]
  %v3063 = vld [vmem:[%s3023 + $0x38] sm:$0xe]
  %v3064 = vld [vmem:[%s3023 + $0x50] sm:$0xe]
  %v3065 = vld [vmem:[%s3023 + $0x58] sm:$0xe]
  %v3066 = vld [vmem:[%s3023 + $0x60] sm:$0xe]
  %v3067 = vld [vmem:[%s3023 + $0x68] sm:$0xe]
  %v3068 = vld [vmem:[%s3023 + $0x70] sm:$0xe]
  %v3069 = vld [vmem:[%s3023 + $0x78] sm:$0xe]
  %v3070 = vld [vmem:[%s3023 + $0x80] sm:$0xe]
  %v3071 = vld [vmem:[%s3023 + $0x88] sm:$0xe]
  %v3104 = vunpack.c.l.b16 %v2927
  %v3105 = vunpack.c.l.b16 %v2943
  %v3106 = vunpack.c.l.b16 %v2928
  %v3107 = vunpack.c.l.b16 %v2944
  %v3108 = vunpack.c.l.b16 %v2929
  %v3109 = vunpack.c.l.b16 %v2945
  %v3110 = vunpack.c.l.b16 %v2930
  %v3111 = vunpack.c.l.b16 %v2946
  %v3112 = vunpack.c.l.b16 %v2931
  %v3113 = vunpack.c.l.b16 %v2947
  %v3114 = vunpack.c.l.b16 %v2932
  %v3115 = vunpack.c.l.b16 %v2948
  %v3116 = vunpack.c.l.b16 %v2933
  %v3117 = vunpack.c.l.b16 %v2949
  %v3118 = vunpack.c.l.b16 %v2934
  %v3119 = vunpack.c.l.b16 %v2950
  %v3120 = vunpack.c.l.b16 %v2935
  %v3121 = vunpack.c.l.b16 %v2951
  %v3122 = vunpack.c.l.b16 %v2936
  %v3123 = vunpack.c.l.b16 %v2952
  %v3124 = vunpack.c.l.b16 %v2937
  %v3125 = vunpack.c.l.b16 %v2953
  %v3126 = vunpack.c.l.b16 %v2938
  %v3127 = vunpack.c.l.b16 %v2954
  %v3128 = vunpack.c.l.b16 %v2939
  %v3129 = vunpack.c.l.b16 %v2955
  %v3130 = vunpack.c.l.b16 %v2940
  %v3131 = vunpack.c.l.b16 %v2956
  %v3132 = vunpack.c.l.b16 %v2941
  %v3133 = vunpack.c.l.b16 %v2957
  %v3134 = vunpack.c.l.b16 %v2942
  %v3135 = vunpack.c.l.b16 %v2958
  %v3136 = vpack.c.b16 %v3105, %v3104
  %v3137 = vpack.c.b16 %v3107, %v3106
  %v3138 = vpack.c.b16 %v3109, %v3108
  %v3139 = vpack.c.b16 %v3111, %v3110
  %v3140 = vpack.c.b16 %v3113, %v3112
  %v3141 = vpack.c.b16 %v3115, %v3114
  %v3142 = vpack.c.b16 %v3117, %v3116
  %v3143 = vpack.c.b16 %v3119, %v3118
  %v3144 = vpack.c.b16 %v3121, %v3120
  %v3145 = vpack.c.b16 %v3123, %v3122
  %v3146 = vpack.c.b16 %v3125, %v3124
  %v3147 = vpack.c.b16 %v3127, %v3126
  %v3148 = vpack.c.b16 %v3129, %v3128
  %v3149 = vpack.c.b16 %v3131, %v3130
  %v3150 = vpack.c.b16 %v3133, %v3132
  %v3151 = vpack.c.b16 %v3135, %v3134
  %v3153 = vshrl.u32 %v3136, 16
  %v3155 = vshll.u32 %v3136, 16
  %v3157 = vrot.slane %v3155, 1
  %v3158 = vor.u32 %v3153, %v3157
  %v3160 = vshrl.u32 %v3137, 16
  %v3162 = vshll.u32 %v3137, 16
  %v3164 = vrot.slane %v3162, 1
  %v3165 = vor.u32 %v3160, %v3164
  %v3167 = vshrl.u32 %v3138, 16
  %v3169 = vshll.u32 %v3138, 16
  %v3171 = vrot.slane %v3169, 1
  %v3172 = vor.u32 %v3167, %v3171
  %v3174 = vshrl.u32 %v3139, 16
  %v3176 = vshll.u32 %v3139, 16
  %v3178 = vrot.slane %v3176, 1
  %v3179 = vor.u32 %v3174, %v3178
  %v3181 = vshrl.u32 %v3140, 16
  %v3183 = vshll.u32 %v3140, 16
  %v3185 = vrot.slane %v3183, 1
  %v3186 = vor.u32 %v3181, %v3185
  %v3188 = vshrl.u32 %v3141, 16
  %v3190 = vshll.u32 %v3141, 16
  %v3192 = vrot.slane %v3190, 1
  %v3193 = vor.u32 %v3188, %v3192
  %v3195 = vshrl.u32 %v3142, 16
  %v3197 = vshll.u32 %v3142, 16
  %v3199 = vrot.slane %v3197, 1
  %v3200 = vor.u32 %v3195, %v3199
  %v3202 = vshrl.u32 %v3143, 16
  %v3204 = vshll.u32 %v3143, 16
  %v3206 = vrot.slane %v3204, 1
  %v3207 = vor.u32 %v3202, %v3206
  %v3209 = vshrl.u32 %v3144, 16
  %v3211 = vshll.u32 %v3144, 16
  %v3213 = vrot.slane %v3211, 1
  %v3214 = vor.u32 %v3209, %v3213
  %v3216 = vshrl.u32 %v3145, 16
  %v3218 = vshll.u32 %v3145, 16
  %v3220 = vrot.slane %v3218, 1
  %v3221 = vor.u32 %v3216, %v3220
  %v3223 = vshrl.u32 %v3146, 16
  %v3225 = vshll.u32 %v3146, 16
  %v3227 = vrot.slane %v3225, 1
  %v3228 = vor.u32 %v3223, %v3227
  %v3230 = vshrl.u32 %v3147, 16
  %v3232 = vshll.u32 %v3147, 16
  %v3234 = vrot.slane %v3232, 1
  %v3235 = vor.u32 %v3230, %v3234
  %v3237 = vshrl.u32 %v3148, 16
  %v3239 = vshll.u32 %v3148, 16
  %v3241 = vrot.slane %v3239, 1
  %v3242 = vor.u32 %v3237, %v3241
  %v3244 = vshrl.u32 %v3149, 16
  %v3246 = vshll.u32 %v3149, 16
  %v3248 = vrot.slane %v3246, 1
  %v3249 = vor.u32 %v3244, %v3248
  %v3251 = vshrl.u32 %v3150, 16
  %v3253 = vshll.u32 %v3150, 16
  %v3255 = vrot.slane %v3253, 1
  %v3256 = vor.u32 %v3251, %v3255
  %v3258 = vshrl.u32 %v3151, 16
  %v3260 = vshll.u32 %v3151, 16
  %v3262 = vrot.slane %v3260, 1
  %v3263 = vor.u32 %v3258, %v3262
  %v3280 = vunpack.c.l.b16 %v2959
  %v3281 = vunpack.c.l.b16 %v2960
  %v3282 = vunpack.c.l.b16 %v2961
  %v3283 = vunpack.c.l.b16 %v2962
  %v3284 = vunpack.c.l.b16 %v2963
  %v3285 = vunpack.c.l.b16 %v2964
  %v3286 = vunpack.c.l.b16 %v2965
  %v3287 = vunpack.c.l.b16 %v2966
  %v3288 = vunpack.c.l.b16 %v2967
  %v3289 = vunpack.c.l.b16 %v2968
  %v3290 = vunpack.c.l.b16 %v2969
  %v3291 = vunpack.c.l.b16 %v2970
  %v3292 = vunpack.c.l.b16 %v2971
  %v3293 = vunpack.c.l.b16 %v2972
  %v3294 = vunpack.c.l.b16 %v2973
  %v3295 = vunpack.c.l.b16 %v2974
  %v3296 = vpack.c.b16 %v3105, %v3280
  %v3297 = vpack.c.b16 %v3107, %v3281
  %v3298 = vpack.c.b16 %v3109, %v3282
  %v3299 = vpack.c.b16 %v3111, %v3283
  %v3300 = vpack.c.b16 %v3113, %v3284
  %v3301 = vpack.c.b16 %v3115, %v3285
  %v3302 = vpack.c.b16 %v3117, %v3286
  %v3303 = vpack.c.b16 %v3119, %v3287
  %v3304 = vpack.c.b16 %v3121, %v3288
  %v3305 = vpack.c.b16 %v3123, %v3289
  %v3306 = vpack.c.b16 %v3125, %v3290
  %v3307 = vpack.c.b16 %v3127, %v3291
  %v3308 = vpack.c.b16 %v3129, %v3292
  %v3309 = vpack.c.b16 %v3131, %v3293
  %v3310 = vpack.c.b16 %v3133, %v3294
  %v3311 = vpack.c.b16 %v3135, %v3295
  %v3312 = vrot.slane %v3296, 1
  %v3313 = vrot.slane %v3297, 1
  %v3314 = vrot.slane %v3298, 1
  %v3315 = vrot.slane %v3299, 1
  %v3316 = vrot.slane %v3300, 1
  %v3317 = vrot.slane %v3301, 1
  %v3318 = vrot.slane %v3302, 1
  %v3319 = vrot.slane %v3303, 1
  %v3320 = vrot.slane %v3304, 1
  %v3321 = vrot.slane %v3305, 1
  %v3322 = vrot.slane %v3306, 1
  %v3323 = vrot.slane %v3307, 1
  %v3324 = vrot.slane %v3308, 1
  %v3325 = vrot.slane %v3309, 1
  %v3326 = vrot.slane %v3310, 1
  %v3327 = vrot.slane %v3311, 1
  %v3360 = vunpack.c.l.b16 %v2975
  %v3361 = vunpack.c.l.b16 %v2991
  %v3362 = vunpack.c.l.b16 %v2976
  %v3363 = vunpack.c.l.b16 %v2992
  %v3364 = vunpack.c.l.b16 %v2977
  %v3365 = vunpack.c.l.b16 %v2993
  %v3366 = vunpack.c.l.b16 %v2978
  %v3367 = vunpack.c.l.b16 %v2994
  %v3368 = vunpack.c.l.b16 %v2979
  %v3369 = vunpack.c.l.b16 %v2995
  %v3370 = vunpack.c.l.b16 %v2980
  %v3371 = vunpack.c.l.b16 %v2996
  %v3372 = vunpack.c.l.b16 %v2981
  %v3373 = vunpack.c.l.b16 %v2997
  %v3374 = vunpack.c.l.b16 %v2982
  %v3375 = vunpack.c.l.b16 %v2998
  %v3376 = vunpack.c.l.b16 %v2983
  %v3377 = vunpack.c.l.b16 %v2999
  %v3378 = vunpack.c.l.b16 %v2984
  %v3379 = vunpack.c.l.b16 %v3000
  %v3380 = vunpack.c.l.b16 %v2985
  %v3381 = vunpack.c.l.b16 %v3001
  %v3382 = vunpack.c.l.b16 %v2986
  %v3383 = vunpack.c.l.b16 %v3002
  %v3384 = vunpack.c.l.b16 %v2987
  %v3385 = vunpack.c.l.b16 %v3003
  %v3386 = vunpack.c.l.b16 %v2988
  %v3387 = vunpack.c.l.b16 %v3004
  %v3388 = vunpack.c.l.b16 %v2989
  %v3389 = vunpack.c.l.b16 %v3005
  %v3390 = vunpack.c.l.b16 %v2990
  %v3391 = vunpack.c.l.b16 %v3006
  %v3392 = vpack.c.b16 %v3361, %v3360
  %v3393 = vpack.c.b16 %v3363, %v3362
  %v3394 = vpack.c.b16 %v3365, %v3364
  %v3395 = vpack.c.b16 %v3367, %v3366
  %v3396 = vpack.c.b16 %v3369, %v3368
  %v3397 = vpack.c.b16 %v3371, %v3370
  %v3398 = vpack.c.b16 %v3373, %v3372
  %v3399 = vpack.c.b16 %v3375, %v3374
  %v3400 = vpack.c.b16 %v3377, %v3376
  %v3401 = vpack.c.b16 %v3379, %v3378
  %v3402 = vpack.c.b16 %v3381, %v3380
  %v3403 = vpack.c.b16 %v3383, %v3382
  %v3404 = vpack.c.b16 %v3385, %v3384
  %v3405 = vpack.c.b16 %v3387, %v3386
  %v3406 = vpack.c.b16 %v3389, %v3388
  %v3407 = vpack.c.b16 %v3391, %v3390
  %v3409 = vshrl.u32 %v3392, 16
  %v3411 = vshll.u32 %v3392, 16
  %v3413 = vrot.slane %v3411, 1
  %v3414 = vor.u32 %v3409, %v3413
  %v3416 = vshrl.u32 %v3393, 16
  %v3418 = vshll.u32 %v3393, 16
  %v3420 = vrot.slane %v3418, 1
  %v3421 = vor.u32 %v3416, %v3420
  %v3423 = vshrl.u32 %v3394, 16
  %v3425 = vshll.u32 %v3394, 16
  %v3427 = vrot.slane %v3425, 1
  %v3428 = vor.u32 %v3423, %v3427
  %v3430 = vshrl.u32 %v3395, 16
  %v3432 = vshll.u32 %v3395, 16
  %v3434 = vrot.slane %v3432, 1
  %v3435 = vor.u32 %v3430, %v3434
  %v3437 = vshrl.u32 %v3396, 16
  %v3439 = vshll.u32 %v3396, 16
  %v3441 = vrot.slane %v3439, 1
  %v3442 = vor.u32 %v3437, %v3441
  %v3444 = vshrl.u32 %v3397, 16
  %v3446 = vshll.u32 %v3397, 16
  %v3448 = vrot.slane %v3446, 1
  %v3449 = vor.u32 %v3444, %v3448
  %v3451 = vshrl.u32 %v3398, 16
  %v3453 = vshll.u32 %v3398, 16
  %v3455 = vrot.slane %v3453, 1
  %v3456 = vor.u32 %v3451, %v3455
  %v3458 = vshrl.u32 %v3399, 16
  %v3460 = vshll.u32 %v3399, 16
  %v3462 = vrot.slane %v3460, 1
  %v3463 = vor.u32 %v3458, %v3462
  %v3465 = vshrl.u32 %v3400, 16
  %v3467 = vshll.u32 %v3400, 16
  %v3469 = vrot.slane %v3467, 1
  %v3470 = vor.u32 %v3465, %v3469
  %v3472 = vshrl.u32 %v3401, 16
  %v3474 = vshll.u32 %v3401, 16
  %v3476 = vrot.slane %v3474, 1
  %v3477 = vor.u32 %v3472, %v3476
  %v3479 = vshrl.u32 %v3402, 16
  %v3481 = vshll.u32 %v3402, 16
  %v3483 = vrot.slane %v3481, 1
  %v3484 = vor.u32 %v3479, %v3483
  %v3486 = vshrl.u32 %v3403, 16
  %v3488 = vshll.u32 %v3403, 16
  %v3490 = vrot.slane %v3488, 1
  %v3491 = vor.u32 %v3486, %v3490
  %v3493 = vshrl.u32 %v3404, 16
  %v3495 = vshll.u32 %v3404, 16
  %v3497 = vrot.slane %v3495, 1
  %v3498 = vor.u32 %v3493, %v3497
  %v3500 = vshrl.u32 %v3405, 16
  %v3502 = vshll.u32 %v3405, 16
  %v3504 = vrot.slane %v3502, 1
  %v3505 = vor.u32 %v3500, %v3504
  %v3507 = vshrl.u32 %v3406, 16
  %v3509 = vshll.u32 %v3406, 16
  %v3511 = vrot.slane %v3509, 1
  %v3512 = vor.u32 %v3507, %v3511
  %v3514 = vshrl.u32 %v3407, 16
  %v3516 = vshll.u32 %v3407, 16
  %v3518 = vrot.slane %v3516, 1
  %v3519 = vor.u32 %v3514, %v3518
  %v3536 = vunpack.c.l.b16 %v3007
  %v3537 = vunpack.c.l.b16 %v3008
  %v3538 = vunpack.c.l.b16 %v3009
  %v3539 = vunpack.c.l.b16 %v3010
  %v3540 = vunpack.c.l.b16 %v3011
  %v3541 = vunpack.c.l.b16 %v3012
  %v3542 = vunpack.c.l.b16 %v3013
  %v3543 = vunpack.c.l.b16 %v3014
  %v3544 = vunpack.c.l.b16 %v3015
  %v3545 = vunpack.c.l.b16 %v3016
  %v3546 = vunpack.c.l.b16 %v3017
  %v3547 = vunpack.c.l.b16 %v3018
  %v3548 = vunpack.c.l.b16 %v3019
  %v3549 = vunpack.c.l.b16 %v3020
  %v3550 = vunpack.c.l.b16 %v3021
  %v3551 = vunpack.c.l.b16 %v3022
  %v3552 = vpack.c.b16 %v3361, %v3536
  %v3553 = vpack.c.b16 %v3363, %v3537
  %v3554 = vpack.c.b16 %v3365, %v3538
  %v3555 = vpack.c.b16 %v3367, %v3539
  %v3556 = vpack.c.b16 %v3369, %v3540
  %v3557 = vpack.c.b16 %v3371, %v3541
  %v3558 = vpack.c.b16 %v3373, %v3542
  %v3559 = vpack.c.b16 %v3375, %v3543
  %v3560 = vpack.c.b16 %v3377, %v3544
  %v3561 = vpack.c.b16 %v3379, %v3545
  %v3562 = vpack.c.b16 %v3381, %v3546
  %v3563 = vpack.c.b16 %v3383, %v3547
  %v3564 = vpack.c.b16 %v3385, %v3548
  %v3565 = vpack.c.b16 %v3387, %v3549
  %v3566 = vpack.c.b16 %v3389, %v3550
  %v3567 = vpack.c.b16 %v3391, %v3551
  %v3568 = vrot.slane %v3552, 1
  %v3569 = vrot.slane %v3553, 1
  %v3570 = vrot.slane %v3554, 1
  %v3571 = vrot.slane %v3555, 1
  %v3572 = vrot.slane %v3556, 1
  %v3573 = vrot.slane %v3557, 1
  %v3574 = vrot.slane %v3558, 1
  %v3575 = vrot.slane %v3559, 1
  %v3576 = vrot.slane %v3560, 1
  %v3577 = vrot.slane %v3561, 1
  %v3578 = vrot.slane %v3562, 1
  %v3579 = vrot.slane %v3563, 1
  %v3580 = vrot.slane %v3564, 1
  %v3581 = vrot.slane %v3565, 1
  %v3582 = vrot.slane %v3566, 1
  %v3583 = vrot.slane %v3567, 1
  %v3616 = vunpack.c.l.b16 %v3024
  %v3617 = vunpack.c.l.b16 %v3040
  %v3618 = vunpack.c.l.b16 %v3025
  %v3619 = vunpack.c.l.b16 %v3041
  %v3620 = vunpack.c.l.b16 %v3026
  %v3621 = vunpack.c.l.b16 %v3042
  %v3622 = vunpack.c.l.b16 %v3027
  %v3623 = vunpack.c.l.b16 %v3043
  %v3624 = vunpack.c.l.b16 %v3028
  %v3625 = vunpack.c.l.b16 %v3044
  %v3626 = vunpack.c.l.b16 %v3029
  %v3627 = vunpack.c.l.b16 %v3045
  %v3628 = vunpack.c.l.b16 %v3030
  %v3629 = vunpack.c.l.b16 %v3046
  %v3630 = vunpack.c.l.b16 %v3031
  %v3631 = vunpack.c.l.b16 %v3047
  %v3632 = vunpack.c.l.b16 %v3032
  %v3633 = vunpack.c.l.b16 %v3048
  %v3634 = vunpack.c.l.b16 %v3033
  %v3635 = vunpack.c.l.b16 %v3049
  %v3636 = vunpack.c.l.b16 %v3034
  %v3637 = vunpack.c.l.b16 %v3050
  %v3638 = vunpack.c.l.b16 %v3035
  %v3639 = vunpack.c.l.b16 %v3051
  %v3640 = vunpack.c.l.b16 %v3036
  %v3641 = vunpack.c.l.b16 %v3052
  %v3642 = vunpack.c.l.b16 %v3037
  %v3643 = vunpack.c.l.b16 %v3053
  %v3644 = vunpack.c.l.b16 %v3038
  %v3645 = vunpack.c.l.b16 %v3054
  %v3646 = vunpack.c.l.b16 %v3039
  %v3647 = vunpack.c.l.b16 %v3055
  %v3648 = vpack.c.b16 %v3617, %v3616
  %v3649 = vpack.c.b16 %v3619, %v3618
  %v3650 = vpack.c.b16 %v3621, %v3620
  %v3651 = vpack.c.b16 %v3623, %v3622
  %v3652 = vpack.c.b16 %v3625, %v3624
  %v3653 = vpack.c.b16 %v3627, %v3626
  %v3654 = vpack.c.b16 %v3629, %v3628
  %v3655 = vpack.c.b16 %v3631, %v3630
  %v3656 = vpack.c.b16 %v3633, %v3632
  %v3657 = vpack.c.b16 %v3635, %v3634
  %v3658 = vpack.c.b16 %v3637, %v3636
  %v3659 = vpack.c.b16 %v3639, %v3638
  %v3660 = vpack.c.b16 %v3641, %v3640
  %v3661 = vpack.c.b16 %v3643, %v3642
  %v3662 = vpack.c.b16 %v3645, %v3644
  %v3663 = vpack.c.b16 %v3647, %v3646
  %v3665 = vshrl.u32 %v3648, 16
  %v3667 = vshll.u32 %v3648, 16
  %v3669 = vrot.slane %v3667, 1
  %v3670 = vor.u32 %v3665, %v3669
  %v3672 = vshrl.u32 %v3649, 16
  %v3674 = vshll.u32 %v3649, 16
  %v3676 = vrot.slane %v3674, 1
  %v3677 = vor.u32 %v3672, %v3676
  %v3679 = vshrl.u32 %v3650, 16
  %v3681 = vshll.u32 %v3650, 16
  %v3683 = vrot.slane %v3681, 1
  %v3684 = vor.u32 %v3679, %v3683
  %v3686 = vshrl.u32 %v3651, 16
  %v3688 = vshll.u32 %v3651, 16
  %v3690 = vrot.slane %v3688, 1
  %v3691 = vor.u32 %v3686, %v3690
  %v3693 = vshrl.u32 %v3652, 16
  %v3695 = vshll.u32 %v3652, 16
  %v3697 = vrot.slane %v3695, 1
  %v3698 = vor.u32 %v3693, %v3697
  %v3700 = vshrl.u32 %v3653, 16
  %v3702 = vshll.u32 %v3653, 16
  %v3704 = vrot.slane %v3702, 1
  %v3705 = vor.u32 %v3700, %v3704
  %v3707 = vshrl.u32 %v3654, 16
  %v3709 = vshll.u32 %v3654, 16
  %v3711 = vrot.slane %v3709, 1
  %v3712 = vor.u32 %v3707, %v3711
  %v3714 = vshrl.u32 %v3655, 16
  %v3716 = vshll.u32 %v3655, 16
  %v3718 = vrot.slane %v3716, 1
  %v3719 = vor.u32 %v3714, %v3718
  %v3721 = vshrl.u32 %v3656, 16
  %v3723 = vshll.u32 %v3656, 16
  %v3725 = vrot.slane %v3723, 1
  %v3726 = vor.u32 %v3721, %v3725
  %v3728 = vshrl.u32 %v3657, 16
  %v3730 = vshll.u32 %v3657, 16
  %v3732 = vrot.slane %v3730, 1
  %v3733 = vor.u32 %v3728, %v3732
  %v3735 = vshrl.u32 %v3658, 16
  %v3737 = vshll.u32 %v3658, 16
  %v3739 = vrot.slane %v3737, 1
  %v3740 = vor.u32 %v3735, %v3739
  %v3742 = vshrl.u32 %v3659, 16
  %v3744 = vshll.u32 %v3659, 16
  %v3746 = vrot.slane %v3744, 1
  %v3747 = vor.u32 %v3742, %v3746
  %v3749 = vshrl.u32 %v3660, 16
  %v3751 = vshll.u32 %v3660, 16
  %v3753 = vrot.slane %v3751, 1
  %v3754 = vor.u32 %v3749, %v3753
  %v3756 = vshrl.u32 %v3661, 16
  %v3758 = vshll.u32 %v3661, 16
  %v3760 = vrot.slane %v3758, 1
  %v3761 = vor.u32 %v3756, %v3760
  %v3763 = vshrl.u32 %v3662, 16
  %v3765 = vshll.u32 %v3662, 16
  %v3767 = vrot.slane %v3765, 1
  %v3768 = vor.u32 %v3763, %v3767
  %v3770 = vshrl.u32 %v3663, 16
  %v3772 = vshll.u32 %v3663, 16
  %v3774 = vrot.slane %v3772, 1
  %v3775 = vor.u32 %v3770, %v3774
  %v3792 = vunpack.c.l.b16 %v3056
  %v3793 = vunpack.c.l.b16 %v3057
  %v3794 = vunpack.c.l.b16 %v3058
  %v3795 = vunpack.c.l.b16 %v3059
  %v3796 = vunpack.c.l.b16 %v3060
  %v3797 = vunpack.c.l.b16 %v3061
  %v3798 = vunpack.c.l.b16 %v3062
  %v3799 = vunpack.c.l.b16 %v3063
  %v3800 = vunpack.c.l.b16 %v3064
  %v3801 = vunpack.c.l.b16 %v3065
  %v3802 = vunpack.c.l.b16 %v3066
  %v3803 = vunpack.c.l.b16 %v3067
  %v3804 = vunpack.c.l.b16 %v3068
  %v3805 = vunpack.c.l.b16 %v3069
  %v3806 = vunpack.c.l.b16 %v3070
  %v3807 = vunpack.c.l.b16 %v3071
  %v3808 = vpack.c.b16 %v3617, %v3792
  %v3809 = vpack.c.b16 %v3619, %v3793
  %v3810 = vpack.c.b16 %v3621, %v3794
  %v3811 = vpack.c.b16 %v3623, %v3795
  %v3812 = vpack.c.b16 %v3625, %v3796
  %v3813 = vpack.c.b16 %v3627, %v3797
  %v3814 = vpack.c.b16 %v3629, %v3798
  %v3815 = vpack.c.b16 %v3631, %v3799
  %v3816 = vpack.c.b16 %v3633, %v3800
  %v3817 = vpack.c.b16 %v3635, %v3801
  %v3818 = vpack.c.b16 %v3637, %v3802
  %v3819 = vpack.c.b16 %v3639, %v3803
  %v3820 = vpack.c.b16 %v3641, %v3804
  %v3821 = vpack.c.b16 %v3643, %v3805
  %v3822 = vpack.c.b16 %v3645, %v3806
  %v3823 = vpack.c.b16 %v3647, %v3807
  %v3824 = vrot.slane %v3808, 1
  %v3825 = vrot.slane %v3809, 1
  %v3826 = vrot.slane %v3810, 1
  %v3827 = vrot.slane %v3811, 1
  %v3828 = vrot.slane %v3812, 1
  %v3829 = vrot.slane %v3813, 1
  %v3830 = vrot.slane %v3814, 1
  %v3831 = vrot.slane %v3815, 1
  %v3832 = vrot.slane %v3816, 1
  %v3833 = vrot.slane %v3817, 1
  %v3834 = vrot.slane %v3818, 1
  %v3835 = vrot.slane %v3819, 1
  %v3836 = vrot.slane %v3820, 1
  %v3837 = vrot.slane %v3821, 1
  %v3838 = vrot.slane %v3822, 1
  %v3839 = vrot.slane %v3823, 1
  %v3840 = vunpack.c.l.b16 %v3158
  %v3841 = vunpack.c.l.b16 %v3312
  %v3842 = vunpack.c.l.b16 %v3414
  %v3843 = vunpack.c.l.b16 %v3568
  %v3844 = vunpack.c.l.b16 %v3670
  %v3845 = vunpack.c.l.b16 %v3824
  %v3846 = vunpack.c.l.b16 %v3165
  %v3847 = vunpack.c.l.b16 %v3313
  %v3848 = vunpack.c.l.b16 %v3421
  %v3849 = vunpack.c.l.b16 %v3569
  %v3850 = vunpack.c.l.b16 %v3677
  %v3851 = vunpack.c.l.b16 %v3825
  %v3852 = vunpack.c.l.b16 %v3172
  %v3853 = vunpack.c.l.b16 %v3314
  %v3854 = vunpack.c.l.b16 %v3428
  %v3855 = vunpack.c.l.b16 %v3570
  %v3856 = vunpack.c.l.b16 %v3684
  %v3857 = vunpack.c.l.b16 %v3826
  %v3858 = vunpack.c.l.b16 %v3179
  %v3859 = vunpack.c.l.b16 %v3315
  %v3860 = vunpack.c.l.b16 %v3435
  %v3861 = vunpack.c.l.b16 %v3571
  %v3862 = vunpack.c.l.b16 %v3691
  %v3863 = vunpack.c.l.b16 %v3827
  %v3864 = vunpack.c.l.b16 %v3186
  %v3865 = vunpack.c.l.b16 %v3316
  %v3866 = vunpack.c.l.b16 %v3442
  %v3867 = vunpack.c.l.b16 %v3572
  %v3868 = vunpack.c.l.b16 %v3698
  %v3869 = vunpack.c.l.b16 %v3828
  %v3870 = vunpack.c.l.b16 %v3193
  %v3871 = vunpack.c.l.b16 %v3317
  %v3872 = vunpack.c.l.b16 %v3449
  %v3873 = vunpack.c.l.b16 %v3573
  %v3874 = vunpack.c.l.b16 %v3705
  %v3875 = vunpack.c.l.b16 %v3829
  %v3876 = vunpack.c.l.b16 %v3200
  %v3877 = vunpack.c.l.b16 %v3318
  %v3878 = vunpack.c.l.b16 %v3456
  %v3879 = vunpack.c.l.b16 %v3574
  %v3880 = vunpack.c.l.b16 %v3712
  %v3881 = vunpack.c.l.b16 %v3830
  %v3882 = vunpack.c.l.b16 %v3207
  %v3883 = vunpack.c.l.b16 %v3319
  %v3884 = vunpack.c.l.b16 %v3463
  %v3885 = vunpack.c.l.b16 %v3575
  %v3886 = vunpack.c.l.b16 %v3719
  %v3887 = vunpack.c.l.b16 %v3831
  %v3888 = vunpack.c.l.b16 %v3214
  %v3889 = vunpack.c.l.b16 %v3320
  %v3890 = vunpack.c.l.b16 %v3470
  %v3891 = vunpack.c.l.b16 %v3576
  %v3892 = vunpack.c.l.b16 %v3726
  %v3893 = vunpack.c.l.b16 %v3832
  %v3894 = vunpack.c.l.b16 %v3221
  %v3895 = vunpack.c.l.b16 %v3321
  %v3896 = vunpack.c.l.b16 %v3477
  %v3897 = vunpack.c.l.b16 %v3577
  %v3898 = vunpack.c.l.b16 %v3733
  %v3899 = vunpack.c.l.b16 %v3833
  %v3900 = vunpack.c.l.b16 %v3228
  %v3901 = vunpack.c.l.b16 %v3322
  %v3902 = vunpack.c.l.b16 %v3484
  %v3903 = vunpack.c.l.b16 %v3578
  %v3904 = vunpack.c.l.b16 %v3740
  %v3905 = vunpack.c.l.b16 %v3834
  %v3906 = vunpack.c.l.b16 %v3235
  %v3907 = vunpack.c.l.b16 %v3323
  %v3908 = vunpack.c.l.b16 %v3491
  %v3909 = vunpack.c.l.b16 %v3579
  %v3910 = vunpack.c.l.b16 %v3747
  %v3911 = vunpack.c.l.b16 %v3835
  %v3912 = vunpack.c.l.b16 %v3242
  %v3913 = vunpack.c.l.b16 %v3324
  %v3914 = vunpack.c.l.b16 %v3498
  %v3915 = vunpack.c.l.b16 %v3580
  %v3916 = vunpack.c.l.b16 %v3754
  %v3917 = vunpack.c.l.b16 %v3836
  %v3918 = vunpack.c.l.b16 %v3249
  %v3919 = vunpack.c.l.b16 %v3325
  %v3920 = vunpack.c.l.b16 %v3505
  %v3921 = vunpack.c.l.b16 %v3581
  %v3922 = vunpack.c.l.b16 %v3761
  %v3923 = vunpack.c.l.b16 %v3837
  %v3924 = vunpack.c.l.b16 %v3256
  %v3925 = vunpack.c.l.b16 %v3326
  %v3926 = vunpack.c.l.b16 %v3512
  %v3927 = vunpack.c.l.b16 %v3582
  %v3928 = vunpack.c.l.b16 %v3768
  %v3929 = vunpack.c.l.b16 %v3838
  %v3930 = vunpack.c.l.b16 %v3263
  %v3931 = vunpack.c.l.b16 %v3327
  %v3932 = vunpack.c.l.b16 %v3519
  %v3933 = vunpack.c.l.b16 %v3583
  %v3934 = vunpack.c.l.b16 %v3775
  %v3935 = vunpack.c.l.b16 %v3839
  %v3936 = vld [vmem:[%s3] sm:$0xf]
  %v3937 = vld [vmem:[%s3 + $0x4] sm:$0xf]
  %v3938 = vld [vmem:[%s3 + $0x8] sm:$0xf]
  %v3939 = vld [vmem:[%s3 + $0xc] sm:$0xf]
  %v3940 = vld [vmem:[%s3 + $0x10] sm:$0xf]
  %v3941 = vld [vmem:[%s3 + $0x14] sm:$0xf]
  %v3942 = vld [vmem:[%s3 + $0x18] sm:$0xf]
  %v3943 = vld [vmem:[%s3 + $0x1c] sm:$0xf]
  %v3944 = vld [vmem:[%s3 + $0x20] sm:$0xf]
  %v3945 = vld [vmem:[%s3 + $0x24] sm:$0xf]
  %v3946 = vld [vmem:[%s3 + $0x28] sm:$0xf]
  %v3947 = vld [vmem:[%s3 + $0x2c] sm:$0xf]
  %v3948 = vld [vmem:[%s3 + $0x30] sm:$0xf]
  %v3949 = vld [vmem:[%s3 + $0x34] sm:$0xf]
  %v3950 = vld [vmem:[%s3 + $0x38] sm:$0xf]
  %v3951 = vld [vmem:[%s3 + $0x3c] sm:$0xf]
  %v3952 = vld [vmem:[%s3 + $0x40] sm:$0xf]
  %v3953 = vld [vmem:[%s3 + $0x44] sm:$0xf]
  %v3954 = vld [vmem:[%s3 + $0x48] sm:$0xf]
  %v3955 = vld [vmem:[%s3 + $0x4c] sm:$0xf]
  %v3956 = vld [vmem:[%s3 + $0x50] sm:$0xf]
  %v3957 = vld [vmem:[%s3 + $0x54] sm:$0xf]
  %v3958 = vld [vmem:[%s3 + $0x58] sm:$0xf]
  %v3959 = vld [vmem:[%s3 + $0x5c] sm:$0xf]
  %v3960 = vld [vmem:[%s3 + $0x60] sm:$0xf]
  %v3961 = vld [vmem:[%s3 + $0x64] sm:$0xf]
  %v3962 = vld [vmem:[%s3 + $0x68] sm:$0xf]
  %v3963 = vld [vmem:[%s3 + $0x6c] sm:$0xf]
  %v3964 = vld [vmem:[%s3 + $0x70] sm:$0xf]
  %v3965 = vld [vmem:[%s3 + $0x74] sm:$0xf]
  %v3966 = vld [vmem:[%s3 + $0x78] sm:$0xf]
  %v3967 = vld [vmem:[%s3 + $0x7c] sm:$0xf]
  %v3968 = vld [vmem:[%s3 + $0x80] sm:$0xf]
  %v3969 = vld [vmem:[%s3 + $0x84] sm:$0xf]
  %v3970 = vld [vmem:[%s3 + $0x88] sm:$0xf]
  %v3971 = vld [vmem:[%s3 + $0x8c] sm:$0xf]
  %v3972 = vld [vmem:[%s3 + $0x90] sm:$0xf]
  %v3973 = vld [vmem:[%s3 + $0x94] sm:$0xf]
  %v3974 = vld [vmem:[%s3 + $0x98] sm:$0xf]
  %v3975 = vld [vmem:[%s3 + $0x9c] sm:$0xf]
  %v3976 = vld [vmem:[%s3 + $0xa0] sm:$0xf]
  %v3977 = vld [vmem:[%s3 + $0xa4] sm:$0xf]
  %v3978 = vld [vmem:[%s3 + $0xa8] sm:$0xf]
  %v3979 = vld [vmem:[%s3 + $0xac] sm:$0xf]
  %v3980 = vld [vmem:[%s3 + $0xb0] sm:$0xf]
  %v3981 = vld [vmem:[%s3 + $0xb4] sm:$0xf]
  %v3982 = vld [vmem:[%s3 + $0xb8] sm:$0xf]
  %v3983 = vld [vmem:[%s3 + $0xbc] sm:$0xf]
  %v3984 = vld [vmem:[%s3 + $0xc0] sm:$0xf]
  %v3985 = vld [vmem:[%s3 + $0xc4] sm:$0xf]
  %v3986 = vld [vmem:[%s3 + $0xc8] sm:$0xf]
  %v3987 = vld [vmem:[%s3 + $0xcc] sm:$0xf]
  %v3988 = vld [vmem:[%s3 + $0xd0] sm:$0xf]
  %v3989 = vld [vmem:[%s3 + $0xd4] sm:$0xf]
  %v3990 = vld [vmem:[%s3 + $0xd8] sm:$0xf]
  %v3991 = vld [vmem:[%s3 + $0xdc] sm:$0xf]
  %v3992 = vld [vmem:[%s3 + $0xe0] sm:$0xf]
  %v3993 = vld [vmem:[%s3 + $0xe4] sm:$0xf]
  %v3994 = vld [vmem:[%s3 + $0xe8] sm:$0xf]
  %v3995 = vld [vmem:[%s3 + $0xec] sm:$0xf]
  %v3996 = vld [vmem:[%s3 + $0xf0] sm:$0xf]
  %v3997 = vld [vmem:[%s3 + $0xf4] sm:$0xf]
  %v3998 = vld [vmem:[%s3 + $0xf8] sm:$0xf]
  %v3999 = vld [vmem:[%s3 + $0xfc] sm:$0xf]
  %v4000 = vld [vmem:[%s3 + $0x100] sm:$0xf]
  %v4001 = vld [vmem:[%s3 + $0x104] sm:$0xf]
  %v4002 = vld [vmem:[%s3 + $0x108] sm:$0xf]
  %v4003 = vld [vmem:[%s3 + $0x10c] sm:$0xf]
  %v4004 = vld [vmem:[%s3 + $0x110] sm:$0xf]
  %v4005 = vld [vmem:[%s3 + $0x114] sm:$0xf]
  %v4006 = vld [vmem:[%s3 + $0x118] sm:$0xf]
  %v4007 = vld [vmem:[%s3 + $0x11c] sm:$0xf]
  %v4008 = vld [vmem:[%s3 + $0x120] sm:$0xf]
  %v4009 = vld [vmem:[%s3 + $0x124] sm:$0xf]
  %v4010 = vld [vmem:[%s3 + $0x128] sm:$0xf]
  %v4011 = vld [vmem:[%s3 + $0x12c] sm:$0xf]
  %v4012 = vld [vmem:[%s3 + $0x130] sm:$0xf]
  %v4013 = vld [vmem:[%s3 + $0x134] sm:$0xf]
  %v4014 = vld [vmem:[%s3 + $0x138] sm:$0xf]
  %v4015 = vld [vmem:[%s3 + $0x13c] sm:$0xf]
  %v4016 = vld [vmem:[%s3 + $0x140] sm:$0xf]
  %v4017 = vld [vmem:[%s3 + $0x144] sm:$0xf]
  %v4018 = vld [vmem:[%s3 + $0x148] sm:$0xf]
  %v4019 = vld [vmem:[%s3 + $0x14c] sm:$0xf]
  %v4020 = vld [vmem:[%s3 + $0x150] sm:$0xf]
  %v4021 = vld [vmem:[%s3 + $0x154] sm:$0xf]
  %v4022 = vld [vmem:[%s3 + $0x158] sm:$0xf]
  %v4023 = vld [vmem:[%s3 + $0x15c] sm:$0xf]
  %v4024 = vld [vmem:[%s3 + $0x160] sm:$0xf]
  %v4025 = vld [vmem:[%s3 + $0x164] sm:$0xf]
  %v4026 = vld [vmem:[%s3 + $0x168] sm:$0xf]
  %v4027 = vld [vmem:[%s3 + $0x16c] sm:$0xf]
  %v4028 = vld [vmem:[%s3 + $0x170] sm:$0xf]
  %v4029 = vld [vmem:[%s3 + $0x174] sm:$0xf]
  %v4030 = vld [vmem:[%s3 + $0x178] sm:$0xf]
  %v4031 = vld [vmem:[%s3 + $0x17c] sm:$0xf]
  %v4032 = vld [vmem:[%s3 + $0x180] sm:$0xf]
  %v4033 = vld [vmem:[%s3 + $0x184] sm:$0xf]
  %v4034 = vld [vmem:[%s3 + $0x188] sm:$0xf]
  %v4035 = vld [vmem:[%s3 + $0x18c] sm:$0xf]
  %v4036 = vld [vmem:[%s3 + $0x190] sm:$0xf]
  %v4037 = vld [vmem:[%s3 + $0x194] sm:$0xf]
  %v4038 = vld [vmem:[%s3 + $0x198] sm:$0xf]
  %v4039 = vld [vmem:[%s3 + $0x19c] sm:$0xf]
  %v4040 = vld [vmem:[%s3 + $0x1a0] sm:$0xf]
  %v4041 = vld [vmem:[%s3 + $0x1a4] sm:$0xf]
  %v4042 = vld [vmem:[%s3 + $0x1a8] sm:$0xf]
  %v4043 = vld [vmem:[%s3 + $0x1ac] sm:$0xf]
  %v4044 = vld [vmem:[%s3 + $0x1b0] sm:$0xf]
  %v4045 = vld [vmem:[%s3 + $0x1b4] sm:$0xf]
  %v4046 = vld [vmem:[%s3 + $0x1b8] sm:$0xf]
  %v4047 = vld [vmem:[%s3 + $0x1bc] sm:$0xf]
  %v4048 = vld [vmem:[%s3 + $0x1c0] sm:$0xf]
  %v4049 = vld [vmem:[%s3 + $0x1c4] sm:$0xf]
  %v4050 = vld [vmem:[%s3 + $0x1c8] sm:$0xf]
  %v4051 = vld [vmem:[%s3 + $0x1cc] sm:$0xf]
  %v4052 = vld [vmem:[%s3 + $0x1d0] sm:$0xf]
  %v4053 = vld [vmem:[%s3 + $0x1d4] sm:$0xf]
  %v4054 = vld [vmem:[%s3 + $0x1d8] sm:$0xf]
  %v4055 = vld [vmem:[%s3 + $0x1dc] sm:$0xf]
  %v4056 = vld [vmem:[%s3 + $0x1e0] sm:$0xf]
  %v4057 = vld [vmem:[%s3 + $0x1e4] sm:$0xf]
  %v4058 = vld [vmem:[%s3 + $0x1e8] sm:$0xf]
  %v4059 = vld [vmem:[%s3 + $0x1ec] sm:$0xf]
  %v4060 = vld [vmem:[%s3 + $0x1f0] sm:$0xf]
  %v4061 = vld [vmem:[%s3 + $0x1f4] sm:$0xf]
  %v4062 = vld [vmem:[%s3 + $0x1f8] sm:$0xf]
  %v4063 = vld [vmem:[%s3 + $0x1fc] sm:$0xf]
  %v4064 = vld [vmem:[%s3 + $0x200] sm:$0xf]
  %v4065 = vld [vmem:[%s3 + $0x204] sm:$0xf]
  %v4066 = vld [vmem:[%s3 + $0x208] sm:$0xf]
  %v4067 = vld [vmem:[%s3 + $0x20c] sm:$0xf]
  %v4068 = vld [vmem:[%s3 + $0x210] sm:$0xf]
  %v4069 = vld [vmem:[%s3 + $0x214] sm:$0xf]
  %v4070 = vld [vmem:[%s3 + $0x218] sm:$0xf]
  %v4071 = vld [vmem:[%s3 + $0x21c] sm:$0xf]
  %v4072 = vld [vmem:[%s3 + $0x220] sm:$0xf]
  %v4073 = vld [vmem:[%s3 + $0x224] sm:$0xf]
  %v4074 = vld [vmem:[%s3 + $0x228] sm:$0xf]
  %v4075 = vld [vmem:[%s3 + $0x22c] sm:$0xf]
  %v4076 = vld [vmem:[%s3 + $0x230] sm:$0xf]
  %v4077 = vld [vmem:[%s3 + $0x234] sm:$0xf]
  %v4078 = vld [vmem:[%s3 + $0x238] sm:$0xf]
  %v4079 = vld [vmem:[%s3 + $0x23c] sm:$0xf]
  %v4080 = vld [vmem:[%s4] sm:$0x1]
  %v4082 = vlaneseq
  %v4083 = vshrl.u32 %v4082, 7
  %v4084 = vsub.s32 0, %v4083
  %v4085 = vrot.slane %v4080, %v4084
  %v4087 = vpack.c.b16 %v3106, %v3104
  %v4088 = vpack.c.b16 %v3846, %v3840
  %v4089 = vpack.c.b16 %v3847, %v3841
  %v4090 = vpack.c.b16 %v3362, %v3360
  %v4091 = vpack.c.b16 %v3848, %v3842
  %v4092 = vpack.c.b16 %v3849, %v3843
  %v4093 = vpack.c.b16 %v3618, %v3616
  %v4094 = vpack.c.b16 %v3850, %v3844
  %v4095 = vpack.c.b16 %v3851, %v3845
  %v4096 = vpack.c.b16 %v3110, %v3108
  %v4097 = vpack.c.b16 %v3858, %v3852
  %v4098 = vpack.c.b16 %v3859, %v3853
  %v4099 = vpack.c.b16 %v3366, %v3364
  %v4100 = vpack.c.b16 %v3860, %v3854
  %v4101 = vpack.c.b16 %v3861, %v3855
  %v4102 = vpack.c.b16 %v3622, %v3620
  %v4103 = vpack.c.b16 %v3862, %v3856
  %v4104 = vpack.c.b16 %v3863, %v3857
  %v4105 = vpack.c.b16 %v3114, %v3112
  %v4106 = vpack.c.b16 %v3870, %v3864
  %v4107 = vpack.c.b16 %v3871, %v3865
  %v4108 = vpack.c.b16 %v3370, %v3368
  %v4109 = vpack.c.b16 %v3872, %v3866
  %v4110 = vpack.c.b16 %v3873, %v3867
  %v4111 = vpack.c.b16 %v3626, %v3624
  %v4112 = vpack.c.b16 %v3874, %v3868
  %v4113 = vpack.c.b16 %v3875, %v3869
  %v4114 = vpack.c.b16 %v3118, %v3116
  %v4115 = vpack.c.b16 %v3882, %v3876
  %v4116 = vpack.c.b16 %v3883, %v3877
  %v4117 = vpack.c.b16 %v3374, %v3372
  %v4118 = vpack.c.b16 %v3884, %v3878
  %v4119 = vpack.c.b16 %v3885, %v3879
  %v4120 = vpack.c.b16 %v3630, %v3628
  %v4121 = vpack.c.b16 %v3886, %v3880
  %v4122 = vpack.c.b16 %v3887, %v3881
  %v4123 = vpack.c.b16 %v3122, %v3120
  %v4124 = vpack.c.b16 %v3894, %v3888
  %v4125 = vpack.c.b16 %v3895, %v3889
  %v4126 = vpack.c.b16 %v3378, %v3376
  %v4127 = vpack.c.b16 %v3896, %v3890
  %v4128 = vpack.c.b16 %v3897, %v3891
  %v4129 = vpack.c.b16 %v3634, %v3632
  %v4130 = vpack.c.b16 %v3898, %v3892
  %v4131 = vpack.c.b16 %v3899, %v3893
  %v4132 = vpack.c.b16 %v3126, %v3124
  %v4133 = vpack.c.b16 %v3906, %v3900
  %v4134 = vpack.c.b16 %v3907, %v3901
  %v4135 = vpack.c.b16 %v3382, %v3380
  %v4136 = vpack.c.b16 %v3908, %v3902
  %v4137 = vpack.c.b16 %v3909, %v3903
  %v4138 = vpack.c.b16 %v3638, %v3636
  %v4139 = vpack.c.b16 %v3910, %v3904
  %v4140 = vpack.c.b16 %v3911, %v3905
  %v4141 = vpack.c.b16 %v3130, %v3128
  %v4142 = vpack.c.b16 %v3918, %v3912
  %v4143 = vpack.c.b16 %v3919, %v3913
  %v4144 = vpack.c.b16 %v3386, %v3384
  %v4145 = vpack.c.b16 %v3920, %v3914
  %v4146 = vpack.c.b16 %v3921, %v3915
  %v4147 = vpack.c.b16 %v3642, %v3640
  %v4148 = vpack.c.b16 %v3922, %v3916
  %v4149 = vpack.c.b16 %v3923, %v3917
  %v4150 = vpack.c.b16 %v3134, %v3132
  %v4151 = vpack.c.b16 %v3930, %v3924
  %v4152 = vpack.c.b16 %v3931, %v3925
  %v4153 = vpack.c.b16 %v3390, %v3388
  %v4154 = vpack.c.b16 %v3932, %v3926
  %v4155 = vpack.c.b16 %v3933, %v3927
  %v4156 = vpack.c.b16 %v3646, %v3644
  %v4157 = vpack.c.b16 %v3934, %v3928
  %v4158 = vpack.c.b16 %v3935, %v3929
  %v4375 = vunpack.c.l.b16 %v3936
  %v4376 = vunpack.c.l.b16 %v3937
  %v4377 = vunpack.c.l.b16 %v3938
  %v4378 = vunpack.c.l.b16 %v3939
  %v4379 = vunpack.c.l.b16 %v3940
  %v4380 = vunpack.c.l.b16 %v3941
  %v4381 = vunpack.c.l.b16 %v3942
  %v4382 = vunpack.c.l.b16 %v3943
  %v4383 = vunpack.c.l.b16 %v3944
  %v4384 = vunpack.c.l.b16 %v3945
  %v4385 = vunpack.c.l.b16 %v3946
  %v4386 = vunpack.c.l.b16 %v3947
  %v4387 = vunpack.c.l.b16 %v3948
  %v4388 = vunpack.c.l.b16 %v3949
  %v4389 = vunpack.c.l.b16 %v3950
  %v4390 = vunpack.c.l.b16 %v3951
  %v4391 = vunpack.c.l.b16 %v3952
  %v4392 = vunpack.c.l.b16 %v3953
  %v4393 = vunpack.c.l.b16 %v3954
  %v4394 = vunpack.c.l.b16 %v3955
  %v4395 = vunpack.c.l.b16 %v3956
  %v4396 = vunpack.c.l.b16 %v3957
  %v4397 = vunpack.c.l.b16 %v3958
  %v4398 = vunpack.c.l.b16 %v3959
  %v4399 = vunpack.c.l.b16 %v3960
  %v4400 = vunpack.c.l.b16 %v3961
  %v4401 = vunpack.c.l.b16 %v3962
  %v4402 = vunpack.c.l.b16 %v3963
  %v4403 = vunpack.c.l.b16 %v3964
  %v4404 = vunpack.c.l.b16 %v3965
  %v4405 = vunpack.c.l.b16 %v3966
  %v4406 = vunpack.c.l.b16 %v3967
  %v4407 = vunpack.c.l.b16 %v3968
  %v4408 = vunpack.c.l.b16 %v3969
  %v4409 = vunpack.c.l.b16 %v3970
  %v4410 = vunpack.c.l.b16 %v3971
  %v4411 = vunpack.c.l.b16 %v3972
  %v4412 = vunpack.c.l.b16 %v3973
  %v4413 = vunpack.c.l.b16 %v3974
  %v4414 = vunpack.c.l.b16 %v3975
  %v4415 = vunpack.c.l.b16 %v3976
  %v4416 = vunpack.c.l.b16 %v3977
  %v4417 = vunpack.c.l.b16 %v3978
  %v4418 = vunpack.c.l.b16 %v3979
  %v4419 = vunpack.c.l.b16 %v3980
  %v4420 = vunpack.c.l.b16 %v3981
  %v4421 = vunpack.c.l.b16 %v3982
  %v4422 = vunpack.c.l.b16 %v3983
  %v4423 = vunpack.c.l.b16 %v3984
  %v4424 = vunpack.c.l.b16 %v3985
  %v4425 = vunpack.c.l.b16 %v3986
  %v4426 = vunpack.c.l.b16 %v3987
  %v4427 = vunpack.c.l.b16 %v3988
  %v4428 = vunpack.c.l.b16 %v3989
  %v4429 = vunpack.c.l.b16 %v3990
  %v4430 = vunpack.c.l.b16 %v3991
  %v4431 = vunpack.c.l.b16 %v3992
  %v4432 = vunpack.c.l.b16 %v3993
  %v4433 = vunpack.c.l.b16 %v3994
  %v4434 = vunpack.c.l.b16 %v3995
  %v4435 = vunpack.c.l.b16 %v3996
  %v4436 = vunpack.c.l.b16 %v3997
  %v4437 = vunpack.c.l.b16 %v3998
  %v4438 = vunpack.c.l.b16 %v3999
  %v4439 = vunpack.c.l.b16 %v4000
  %v4440 = vunpack.c.l.b16 %v4001
  %v4441 = vunpack.c.l.b16 %v4002
  %v4442 = vunpack.c.l.b16 %v4003
  %v4443 = vunpack.c.l.b16 %v4004
  %v4444 = vunpack.c.l.b16 %v4005
  %v4445 = vunpack.c.l.b16 %v4006
  %v4446 = vunpack.c.l.b16 %v4007
  %v4447 = vunpack.c.l.b16 %v4008
  %v4448 = vunpack.c.l.b16 %v4009
  %v4449 = vunpack.c.l.b16 %v4010
  %v4450 = vunpack.c.l.b16 %v4011
  %v4451 = vunpack.c.l.b16 %v4012
  %v4452 = vunpack.c.l.b16 %v4013
  %v4453 = vunpack.c.l.b16 %v4014
  %v4454 = vunpack.c.l.b16 %v4015
  %v4455 = vunpack.c.l.b16 %v4016
  %v4456 = vunpack.c.l.b16 %v4017
  %v4457 = vunpack.c.l.b16 %v4018
  %v4458 = vunpack.c.l.b16 %v4019
  %v4459 = vunpack.c.l.b16 %v4020
  %v4460 = vunpack.c.l.b16 %v4021
  %v4461 = vunpack.c.l.b16 %v4022
  %v4462 = vunpack.c.l.b16 %v4023
  %v4463 = vunpack.c.l.b16 %v4024
  %v4464 = vunpack.c.l.b16 %v4025
  %v4465 = vunpack.c.l.b16 %v4026
  %v4466 = vunpack.c.l.b16 %v4027
  %v4467 = vunpack.c.l.b16 %v4028
  %v4468 = vunpack.c.l.b16 %v4029
  %v4469 = vunpack.c.l.b16 %v4030
  %v4470 = vunpack.c.l.b16 %v4031
  %v4471 = vunpack.c.l.b16 %v4032
  %v4472 = vunpack.c.l.b16 %v4033
  %v4473 = vunpack.c.l.b16 %v4034
  %v4474 = vunpack.c.l.b16 %v4035
  %v4475 = vunpack.c.l.b16 %v4036
  %v4476 = vunpack.c.l.b16 %v4037
  %v4477 = vunpack.c.l.b16 %v4038
  %v4478 = vunpack.c.l.b16 %v4039
  %v4479 = vunpack.c.l.b16 %v4040
  %v4480 = vunpack.c.l.b16 %v4041
  %v4481 = vunpack.c.l.b16 %v4042
  %v4482 = vunpack.c.l.b16 %v4043
  %v4483 = vunpack.c.l.b16 %v4044
  %v4484 = vunpack.c.l.b16 %v4045
  %v4485 = vunpack.c.l.b16 %v4046
  %v4486 = vunpack.c.l.b16 %v4047
  %v4487 = vunpack.c.l.b16 %v4048
  %v4488 = vunpack.c.l.b16 %v4049
  %v4489 = vunpack.c.l.b16 %v4050
  %v4490 = vunpack.c.l.b16 %v4051
  %v4491 = vunpack.c.l.b16 %v4052
  %v4492 = vunpack.c.l.b16 %v4053
  %v4493 = vunpack.c.l.b16 %v4054
  %v4494 = vunpack.c.l.b16 %v4055
  %v4495 = vunpack.c.l.b16 %v4056
  %v4496 = vunpack.c.l.b16 %v4057
  %v4497 = vunpack.c.l.b16 %v4058
  %v4498 = vunpack.c.l.b16 %v4059
  %v4499 = vunpack.c.l.b16 %v4060
  %v4500 = vunpack.c.l.b16 %v4061
  %v4501 = vunpack.c.l.b16 %v4062
  %v4502 = vunpack.c.l.b16 %v4063
  %v4503 = vunpack.c.l.b16 %v4064
  %v4504 = vunpack.c.l.b16 %v4065
  %v4505 = vunpack.c.l.b16 %v4066
  %v4506 = vunpack.c.l.b16 %v4067
  %v4507 = vunpack.c.l.b16 %v4068
  %v4508 = vunpack.c.l.b16 %v4069
  %v4509 = vunpack.c.l.b16 %v4070
  %v4510 = vunpack.c.l.b16 %v4071
  %v4511 = vunpack.c.l.b16 %v4072
  %v4512 = vunpack.c.l.b16 %v4073
  %v4513 = vunpack.c.l.b16 %v4074
  %v4514 = vunpack.c.l.b16 %v4075
  %v4515 = vunpack.c.l.b16 %v4076
  %v4516 = vunpack.c.l.b16 %v4077
  %v4517 = vunpack.c.l.b16 %v4078
  %v4518 = vunpack.c.l.b16 %v4079
  %v4519 = vpack.c.b16 %v4376, %v4375
  %v4520 = vpack.c.b16 %v4378, %v4377
  %v4521 = vpack.c.b16 %v4380, %v4379
  %v4522 = vpack.c.b16 %v4382, %v4381
  %v4523 = vpack.c.b16 %v4384, %v4383
  %v4524 = vpack.c.b16 %v4386, %v4385
  %v4525 = vpack.c.b16 %v4388, %v4387
  %v4526 = vpack.c.b16 %v4390, %v4389
  %v4527 = vpack.c.b16 %v4392, %v4391
  %v4528 = vpack.c.b16 %v4394, %v4393
  %v4529 = vpack.c.b16 %v4396, %v4395
  %v4530 = vpack.c.b16 %v4398, %v4397
  %v4531 = vpack.c.b16 %v4400, %v4399
  %v4532 = vpack.c.b16 %v4402, %v4401
  %v4533 = vpack.c.b16 %v4404, %v4403
  %v4534 = vpack.c.b16 %v4406, %v4405
  %v4535 = vpack.c.b16 %v4408, %v4407
  %v4536 = vpack.c.b16 %v4410, %v4409
  %v4537 = vpack.c.b16 %v4412, %v4411
  %v4538 = vpack.c.b16 %v4414, %v4413
  %v4539 = vpack.c.b16 %v4416, %v4415
  %v4540 = vpack.c.b16 %v4418, %v4417
  %v4541 = vpack.c.b16 %v4420, %v4419
  %v4542 = vpack.c.b16 %v4422, %v4421
  %v4543 = vpack.c.b16 %v4424, %v4423
  %v4544 = vpack.c.b16 %v4426, %v4425
  %v4545 = vpack.c.b16 %v4428, %v4427
  %v4546 = vpack.c.b16 %v4430, %v4429
  %v4547 = vpack.c.b16 %v4432, %v4431
  %v4548 = vpack.c.b16 %v4434, %v4433
  %v4549 = vpack.c.b16 %v4436, %v4435
  %v4550 = vpack.c.b16 %v4438, %v4437
  %v4551 = vpack.c.b16 %v4440, %v4439
  %v4552 = vpack.c.b16 %v4442, %v4441
  %v4553 = vpack.c.b16 %v4444, %v4443
  %v4554 = vpack.c.b16 %v4446, %v4445
  %v4555 = vpack.c.b16 %v4448, %v4447
  %v4556 = vpack.c.b16 %v4450, %v4449
  %v4557 = vpack.c.b16 %v4452, %v4451
  %v4558 = vpack.c.b16 %v4454, %v4453
  %v4559 = vpack.c.b16 %v4456, %v4455
  %v4560 = vpack.c.b16 %v4458, %v4457
  %v4561 = vpack.c.b16 %v4460, %v4459
  %v4562 = vpack.c.b16 %v4462, %v4461
  %v4563 = vpack.c.b16 %v4464, %v4463
  %v4564 = vpack.c.b16 %v4466, %v4465
  %v4565 = vpack.c.b16 %v4468, %v4467
  %v4566 = vpack.c.b16 %v4470, %v4469
  %v4567 = vpack.c.b16 %v4472, %v4471
  %v4568 = vpack.c.b16 %v4474, %v4473
  %v4569 = vpack.c.b16 %v4476, %v4475
  %v4570 = vpack.c.b16 %v4478, %v4477
  %v4571 = vpack.c.b16 %v4480, %v4479
  %v4572 = vpack.c.b16 %v4482, %v4481
  %v4573 = vpack.c.b16 %v4484, %v4483
  %v4574 = vpack.c.b16 %v4486, %v4485
  %v4575 = vpack.c.b16 %v4488, %v4487
  %v4576 = vpack.c.b16 %v4490, %v4489
  %v4577 = vpack.c.b16 %v4492, %v4491
  %v4578 = vpack.c.b16 %v4494, %v4493
  %v4579 = vpack.c.b16 %v4496, %v4495
  %v4580 = vpack.c.b16 %v4498, %v4497
  %v4581 = vpack.c.b16 %v4500, %v4499
  %v4582 = vpack.c.b16 %v4502, %v4501
  %v4583 = vpack.c.b16 %v4504, %v4503
  %v4584 = vpack.c.b16 %v4506, %v4505
  %v4585 = vpack.c.b16 %v4508, %v4507
  %v4586 = vpack.c.b16 %v4510, %v4509
  %v4587 = vpack.c.b16 %v4512, %v4511
  %v4588 = vpack.c.b16 %v4514, %v4513
  %v4589 = vpack.c.b16 %v4516, %v4515
  %v4590 = vpack.c.b16 %v4518, %v4517
  %4663 = vmatprep.subr.bf16.mxu0 0
  %4664 = vmatpush1.bf16.msra.mxu0 %v4526
  %4665 = vmatprep.subr.bf16.mxu0 0
  %4666 = vmatpush1.bf16.msra.mxu0 %v4525
  %4667 = vmatprep.subr.bf16.mxu0 0
  %4668 = vmatpush1.bf16.msra.mxu0 %v4524
  %4669 = vmatprep.subr.bf16.mxu0 0
  %4670 = vmatpush1.bf16.msra.mxu0 %v4523
  %4671 = vmatprep.subr.bf16.mxu0 0
  %4672 = vmatpush1.bf16.msra.mxu0 %v4522
  %4673 = vmatprep.subr.bf16.mxu0 0
  %4674 = vmatpush1.bf16.msra.mxu0 %v4521
  %4675 = vmatprep.subr.bf16.mxu0 0
  %4676 = vmatpush1.bf16.msra.mxu0 %v4520
  %4677 = vmatprep.subr.bf16.mxu0 0
  %4678 = vmatpush1.bf16.msra.mxu0 %v4519
  %4679 = vmatprep.subr.bf16.mxu0 0
  %4680 = vmatpush2.bf16.msra.mxu0 %v4534
  %4681 = vmatprep.subr.bf16.mxu0 0
  %4682 = vmatpush2.bf16.msra.mxu0 %v4533
  %4683 = vmatprep.subr.bf16.mxu0 0
  %4684 = vmatpush2.bf16.msra.mxu0 %v4532
  %4685 = vmatprep.subr.bf16.mxu0 0
  %4686 = vmatpush2.bf16.msra.mxu0 %v4531
  %4687 = vmatprep.subr.bf16.mxu0 0
  %4688 = vmatpush2.bf16.msra.mxu0 %v4530
  %4689 = vmatprep.subr.bf16.mxu0 0
  %4690 = vmatpush2.bf16.msra.mxu0 %v4529
  %4691 = vmatprep.subr.bf16.mxu0 0
  %4692 = vmatpush2.bf16.msra.mxu0 %v4528
  %4693 = vmatprep.subr.bf16.mxu0 0
  %4694 = vmatpush2.bf16.msra.mxu0 %v4527
  %4695 = vmatprep.mubr.bf16.mxu0 %v4088
  %4696 = vmatmul.mubr.bf16.gmra.mxu0 %v4087
  %v4697 = vpop.f32.mrf.mxu0
  %v4698 = vadd.f32 %v4085, %v4697
  %v4699 = vpop.f32.mrf.mxu0
  %v4700 = vpop.f32.mrf.mxu0
  %v4701 = vadd.f32 %v4085, %v4700
  %v4702 = vpop.f32.mrf.mxu0
  %4703 = vmatprep.mubr.bf16.mxu0 %v4097
  %4704 = vmatmul.mubr.bf16.gmra.mxu0 %v4096
  %v4705 = vpop.f32.mrf.mxu0
  %v4706 = vadd.f32 %v4085, %v4705
  %v4707 = vpop.f32.mrf.mxu0
  %v4708 = vpop.f32.mrf.mxu0
  %v4709 = vadd.f32 %v4085, %v4708
  %v4710 = vpop.f32.mrf.mxu0
  %4711 = vmatprep.mubr.bf16.mxu0 %v4106
  %4712 = vmatmul.mubr.bf16.gmra.mxu0 %v4105
  %v4713 = vpop.f32.mrf.mxu0
  %v4714 = vadd.f32 %v4085, %v4713
  %v4715 = vpop.f32.mrf.mxu0
  %v4716 = vpop.f32.mrf.mxu0
  %v4717 = vadd.f32 %v4085, %v4716
  %v4718 = vpop.f32.mrf.mxu0
  %4719 = vmatprep.mubr.bf16.mxu0 %v4115
  %4720 = vmatmul.mubr.bf16.gmra.mxu0 %v4114
  %v4721 = vpop.f32.mrf.mxu0
  %v4722 = vadd.f32 %v4085, %v4721
  %v4723 = vpop.f32.mrf.mxu0
  %v4724 = vpop.f32.mrf.mxu0
  %v4725 = vadd.f32 %v4085, %v4724
  %v4726 = vpop.f32.mrf.mxu0
  %4727 = vmatprep.mubr.bf16.mxu0 %v4124
  %4728 = vmatmul.mubr.bf16.gmra.mxu0 %v4123
  %v4729 = vpop.f32.mrf.mxu0
  %v4730 = vadd.f32 %v4085, %v4729
  %v4731 = vpop.f32.mrf.mxu0
  %v4732 = vpop.f32.mrf.mxu0
  %v4733 = vadd.f32 %v4085, %v4732
  %v4734 = vpop.f32.mrf.mxu0
  %4735 = vmatprep.mubr.bf16.mxu0 %v4133
  %4736 = vmatmul.mubr.bf16.gmra.mxu0 %v4132
  %v4737 = vpop.f32.mrf.mxu0
  %v4738 = vadd.f32 %v4085, %v4737
  %v4739 = vpop.f32.mrf.mxu0
  %v4740 = vpop.f32.mrf.mxu0
  %v4741 = vadd.f32 %v4085, %v4740
  %v4742 = vpop.f32.mrf.mxu0
  %4743 = vmatprep.mubr.bf16.mxu0 %v4142
  %4744 = vmatmul.mubr.bf16.gmra.mxu0 %v4141
  %v4745 = vpop.f32.mrf.mxu0
  %v4746 = vadd.f32 %v4085, %v4745
  %v4747 = vpop.f32.mrf.mxu0
  %v4748 = vpop.f32.mrf.mxu0
  %v4749 = vadd.f32 %v4085, %v4748
  %v4750 = vpop.f32.mrf.mxu0
  %4751 = vmatprep.mubr.bf16.mxu0 %v4151
  %4752 = vmatmul.mubr.bf16.gmra.mxu0 %v4150
  %v4753 = vpop.f32.mrf.mxu0
  %v4754 = vadd.f32 %v4085, %v4753
  %v4755 = vpop.f32.mrf.mxu0
  %v4756 = vpop.f32.mrf.mxu0
  %v4757 = vadd.f32 %v4085, %v4756
  %v4758 = vpop.f32.mrf.mxu0
  %4759 = vdwg.mxu0
  %4760 = vmatprep.subr.bf16.mxu0 0
  %4761 = vmatpush1.bf16.msra.mxu0 %v4542
  %4762 = vmatprep.subr.bf16.mxu0 0
  %4763 = vmatpush1.bf16.msra.mxu0 %v4541
  %4764 = vmatprep.subr.bf16.mxu0 0
  %4765 = vmatpush1.bf16.msra.mxu0 %v4540
  %4766 = vmatprep.subr.bf16.mxu0 0
  %4767 = vmatpush1.bf16.msra.mxu0 %v4539
  %4768 = vmatprep.subr.bf16.mxu0 0
  %4769 = vmatpush1.bf16.msra.mxu0 %v4538
  %4770 = vmatprep.subr.bf16.mxu0 0
  %4771 = vmatpush1.bf16.msra.mxu0 %v4537
  %4772 = vmatprep.subr.bf16.mxu0 0
  %4773 = vmatpush1.bf16.msra.mxu0 %v4536
  %4774 = vmatprep.subr.bf16.mxu0 0
  %4775 = vmatpush1.bf16.msra.mxu0 %v4535
  %4776 = vmatprep.subr.bf16.mxu0 0
  %4777 = vmatpush2.bf16.msra.mxu0 %v4550
  %4778 = vmatprep.subr.bf16.mxu0 0
  %4779 = vmatpush2.bf16.msra.mxu0 %v4549
  %4780 = vmatprep.subr.bf16.mxu0 0
  %4781 = vmatpush2.bf16.msra.mxu0 %v4548
  %4782 = vmatprep.subr.bf16.mxu0 0
  %4783 = vmatpush2.bf16.msra.mxu0 %v4547
  %4784 = vmatprep.subr.bf16.mxu0 0
  %4785 = vmatpush2.bf16.msra.mxu0 %v4546
  %4786 = vmatprep.subr.bf16.mxu0 0
  %4787 = vmatpush2.bf16.msra.mxu0 %v4545
  %4788 = vmatprep.subr.bf16.mxu0 0
  %4789 = vmatpush2.bf16.msra.mxu0 %v4544
  %4790 = vmatprep.subr.bf16.mxu0 0
  %4791 = vmatpush2.bf16.msra.mxu0 %v4543
  %4792 = vmatprep.mubr.bf16.mxu0 %v4090
  %4793 = vmatmul.mubr.bf16.gmra.mxu0 %v4089
  %v4794 = vpop.f32.mrf.mxu0
  %v4795 = vadd.f32 %v4698, %v4794
  %v4796 = vpop.f32.mrf.mxu0
  %v4797 = vpop.f32.mrf.mxu0
  %v4798 = vadd.f32 %v4701, %v4797
  %v4799 = vpop.f32.mrf.mxu0
  %4800 = vmatprep.mubr.bf16.mxu0 %v4099
  %4801 = vmatmul.mubr.bf16.gmra.mxu0 %v4098
  %v4802 = vpop.f32.mrf.mxu0
  %v4803 = vadd.f32 %v4706, %v4802
  %v4804 = vpop.f32.mrf.mxu0
  %v4805 = vpop.f32.mrf.mxu0
  %v4806 = vadd.f32 %v4709, %v4805
  %v4807 = vpop.f32.mrf.mxu0
  %4808 = vmatprep.mubr.bf16.mxu0 %v4108
  %4809 = vmatmul.mubr.bf16.gmra.mxu0 %v4107
  %v4810 = vpop.f32.mrf.mxu0
  %v4811 = vadd.f32 %v4714, %v4810
  %v4812 = vpop.f32.mrf.mxu0
  %v4813 = vpop.f32.mrf.mxu0
  %v4814 = vadd.f32 %v4717, %v4813
  %v4815 = vpop.f32.mrf.mxu0
  %4816 = vmatprep.mubr.bf16.mxu0 %v4117
  %4817 = vmatmul.mubr.bf16.gmra.mxu0 %v4116
  %v4818 = vpop.f32.mrf.mxu0
  %v4819 = vadd.f32 %v4722, %v4818
  %v4820 = vpop.f32.mrf.mxu0
  %v4821 = vpop.f32.mrf.mxu0
  %v4822 = vadd.f32 %v4725, %v4821
  %v4823 = vpop.f32.mrf.mxu0
  %4824 = vmatprep.mubr.bf16.mxu0 %v4126
  %4825 = vmatmul.mubr.bf16.gmra.mxu0 %v4125
  %v4826 = vpop.f32.mrf.mxu0
  %v4827 = vadd.f32 %v4730, %v4826
  %v4828 = vpop.f32.mrf.mxu0
  %v4829 = vpop.f32.mrf.mxu0
  %v4830 = vadd.f32 %v4733, %v4829
  %v4831 = vpop.f32.mrf.mxu0
  %4832 = vmatprep.mubr.bf16.mxu0 %v4135
  %4833 = vmatmul.mubr.bf16.gmra.mxu0 %v4134
  %v4834 = vpop.f32.mrf.mxu0
  %v4835 = vadd.f32 %v4738, %v4834
  %v4836 = vpop.f32.mrf.mxu0
  %v4837 = vpop.f32.mrf.mxu0
  %v4838 = vadd.f32 %v4741, %v4837
  %v4839 = vpop.f32.mrf.mxu0
  %4840 = vmatprep.mubr.bf16.mxu0 %v4144
  %4841 = vmatmul.mubr.bf16.gmra.mxu0 %v4143
  %v4842 = vpop.f32.mrf.mxu0
  %v4843 = vadd.f32 %v4746, %v4842
  %v4844 = vpop.f32.mrf.mxu0
  %v4845 = vpop.f32.mrf.mxu0
  %v4846 = vadd.f32 %v4749, %v4845
  %v4847 = vpop.f32.mrf.mxu0
  %4848 = vmatprep.mubr.bf16.mxu0 %v4153
  %4849 = vmatmul.mubr.bf16.gmra.mxu0 %v4152
  %v4850 = vpop.f32.mrf.mxu0
  %v4851 = vadd.f32 %v4754, %v4850
  %v4852 = vpop.f32.mrf.mxu0
  %v4853 = vpop.f32.mrf.mxu0
  %v4854 = vadd.f32 %v4757, %v4853
  %v4855 = vpop.f32.mrf.mxu0
  %4856 = vdwg.mxu0
  %4857 = vmatprep.subr.bf16.mxu0 0
  %4858 = vmatpush1.bf16.msra.mxu0 %v4558
  %4859 = vmatprep.subr.bf16.mxu0 0
  %4860 = vmatpush1.bf16.msra.mxu0 %v4557
  %4861 = vmatprep.subr.bf16.mxu0 0
  %4862 = vmatpush1.bf16.msra.mxu0 %v4556
  %4863 = vmatprep.subr.bf16.mxu0 0
  %4864 = vmatpush1.bf16.msra.mxu0 %v4555
  %4865 = vmatprep.subr.bf16.mxu0 0
  %4866 = vmatpush1.bf16.msra.mxu0 %v4554
  %4867 = vmatprep.subr.bf16.mxu0 0
  %4868 = vmatpush1.bf16.msra.mxu0 %v4553
  %4869 = vmatprep.subr.bf16.mxu0 0
  %4870 = vmatpush1.bf16.msra.mxu0 %v4552
  %4871 = vmatprep.subr.bf16.mxu0 0
  %4872 = vmatpush1.bf16.msra.mxu0 %v4551
  %4873 = vmatprep.subr.bf16.mxu0 0
  %4874 = vmatpush2.bf16.msra.mxu0 %v4566
  %4875 = vmatprep.subr.bf16.mxu0 0
  %4876 = vmatpush2.bf16.msra.mxu0 %v4565
  %4877 = vmatprep.subr.bf16.mxu0 0
  %4878 = vmatpush2.bf16.msra.mxu0 %v4564
  %4879 = vmatprep.subr.bf16.mxu0 0
  %4880 = vmatpush2.bf16.msra.mxu0 %v4563
  %4881 = vmatprep.subr.bf16.mxu0 0
  %4882 = vmatpush2.bf16.msra.mxu0 %v4562
  %4883 = vmatprep.subr.bf16.mxu0 0
  %4884 = vmatpush2.bf16.msra.mxu0 %v4561
  %4885 = vmatprep.subr.bf16.mxu0 0
  %4886 = vmatpush2.bf16.msra.mxu0 %v4560
  %4887 = vmatprep.subr.bf16.mxu0 0
  %4888 = vmatpush2.bf16.msra.mxu0 %v4559
  %4889 = vmatprep.mubr.bf16.mxu0 %v4092
  %4890 = vmatmul.mubr.bf16.gmra.mxu0 %v4091
  %v4891 = vpop.f32.mrf.mxu0
  %v4892 = vadd.f32 %v4795, %v4891
  %v4893 = vpop.f32.mrf.mxu0
  %v4894 = vpop.f32.mrf.mxu0
  %v4895 = vadd.f32 %v4798, %v4894
  %v4896 = vpop.f32.mrf.mxu0
  %4897 = vmatprep.mubr.bf16.mxu0 %v4101
  %4898 = vmatmul.mubr.bf16.gmra.mxu0 %v4100
  %v4899 = vpop.f32.mrf.mxu0
  %v4900 = vadd.f32 %v4803, %v4899
  %v4901 = vpop.f32.mrf.mxu0
  %v4902 = vpop.f32.mrf.mxu0
  %v4903 = vadd.f32 %v4806, %v4902
  %v4904 = vpop.f32.mrf.mxu0
  %4905 = vmatprep.mubr.bf16.mxu0 %v4110
  %4906 = vmatmul.mubr.bf16.gmra.mxu0 %v4109
  %v4907 = vpop.f32.mrf.mxu0
  %v4908 = vadd.f32 %v4811, %v4907
  %v4909 = vpop.f32.mrf.mxu0
  %v4910 = vpop.f32.mrf.mxu0
  %v4911 = vadd.f32 %v4814, %v4910
  %v4912 = vpop.f32.mrf.mxu0
  %4913 = vmatprep.mubr.bf16.mxu0 %v4119
  %4914 = vmatmul.mubr.bf16.gmra.mxu0 %v4118
  %v4915 = vpop.f32.mrf.mxu0
  %v4916 = vadd.f32 %v4819, %v4915
  %v4917 = vpop.f32.mrf.mxu0
  %v4918 = vpop.f32.mrf.mxu0
  %v4919 = vadd.f32 %v4822, %v4918
  %v4920 = vpop.f32.mrf.mxu0
  %4921 = vmatprep.mubr.bf16.mxu0 %v4128
  %4922 = vmatmul.mubr.bf16.gmra.mxu0 %v4127
  %v4923 = vpop.f32.mrf.mxu0
  %v4924 = vadd.f32 %v4827, %v4923
  %v4925 = vpop.f32.mrf.mxu0
  %v4926 = vpop.f32.mrf.mxu0
  %v4927 = vadd.f32 %v4830, %v4926
  %v4928 = vpop.f32.mrf.mxu0
  %4929 = vmatprep.mubr.bf16.mxu0 %v4137
  %4930 = vmatmul.mubr.bf16.gmra.mxu0 %v4136
  %v4931 = vpop.f32.mrf.mxu0
  %v4932 = vadd.f32 %v4835, %v4931
  %v4933 = vpop.f32.mrf.mxu0
  %v4934 = vpop.f32.mrf.mxu0
  %v4935 = vadd.f32 %v4838, %v4934
  %v4936 = vpop.f32.mrf.mxu0
  %4937 = vmatprep.mubr.bf16.mxu0 %v4146
  %4938 = vmatmul.mubr.bf16.gmra.mxu0 %v4145
  %v4939 = vpop.f32.mrf.mxu0
  %v4940 = vadd.f32 %v4843, %v4939
  %v4941 = vpop.f32.mrf.mxu0
  %v4942 = vpop.f32.mrf.mxu0
  %v4943 = vadd.f32 %v4846, %v4942
  %v4944 = vpop.f32.mrf.mxu0
  %4945 = vmatprep.mubr.bf16.mxu0 %v4155
  %4946 = vmatmul.mubr.bf16.gmra.mxu0 %v4154
  %v4947 = vpop.f32.mrf.mxu0
  %v4948 = vadd.f32 %v4851, %v4947
  %v4949 = vpop.f32.mrf.mxu0
  %v4950 = vpop.f32.mrf.mxu0
  %v4951 = vadd.f32 %v4854, %v4950
  %v4952 = vpop.f32.mrf.mxu0
  %4953 = vdwg.mxu0
  %4954 = vmatprep.subr.bf16.mxu0 0
  %4955 = vmatpush1.bf16.msra.mxu0 %v4574
  %4956 = vmatprep.subr.bf16.mxu0 0
  %4957 = vmatpush1.bf16.msra.mxu0 %v4573
  %4958 = vmatprep.subr.bf16.mxu0 0
  %4959 = vmatpush1.bf16.msra.mxu0 %v4572
  %4960 = vmatprep.subr.bf16.mxu0 0
  %4961 = vmatpush1.bf16.msra.mxu0 %v4571
  %4962 = vmatprep.subr.bf16.mxu0 0
  %4963 = vmatpush1.bf16.msra.mxu0 %v4570
  %4964 = vmatprep.subr.bf16.mxu0 0
  %4965 = vmatpush1.bf16.msra.mxu0 %v4569
  %4966 = vmatprep.subr.bf16.mxu0 0
  %4967 = vmatpush1.bf16.msra.mxu0 %v4568
  %4968 = vmatprep.subr.bf16.mxu0 0
  %4969 = vmatpush1.bf16.msra.mxu0 %v4567
  %4970 = vmatprep.subr.bf16.mxu0 0
  %4971 = vmatpush2.bf16.msra.mxu0 %v4582
  %4972 = vmatprep.subr.bf16.mxu0 0
  %4973 = vmatpush2.bf16.msra.mxu0 %v4581
  %4974 = vmatprep.subr.bf16.mxu0 0
  %4975 = vmatpush2.bf16.msra.mxu0 %v4580
  %4976 = vmatprep.subr.bf16.mxu0 0
  %4977 = vmatpush2.bf16.msra.mxu0 %v4579
  %4978 = vmatprep.subr.bf16.mxu0 0
  %4979 = vmatpush2.bf16.msra.mxu0 %v4578
  %4980 = vmatprep.subr.bf16.mxu0 0
  %4981 = vmatpush2.bf16.msra.mxu0 %v4577
  %4982 = vmatprep.subr.bf16.mxu0 0
  %4983 = vmatpush2.bf16.msra.mxu0 %v4576
  %4984 = vmatprep.subr.bf16.mxu0 0
  %4985 = vmatpush2.bf16.msra.mxu0 %v4575
  %4986 = vmatprep.mubr.bf16.mxu0 %v4094
  %4987 = vmatmul.mubr.bf16.gmra.mxu0 %v4093
  %v4988 = vpop.f32.mrf.mxu0
  %v4989 = vadd.f32 %v4892, %v4988
  %v4990 = vpop.f32.mrf.mxu0
  %v4991 = vpop.f32.mrf.mxu0
  %v4992 = vadd.f32 %v4895, %v4991
  %v4993 = vpop.f32.mrf.mxu0
  %4994 = vmatprep.mubr.bf16.mxu0 %v4103
  %4995 = vmatmul.mubr.bf16.gmra.mxu0 %v4102
  %v4996 = vpop.f32.mrf.mxu0
  %v4997 = vadd.f32 %v4900, %v4996
  %v4998 = vpop.f32.mrf.mxu0
  %v4999 = vpop.f32.mrf.mxu0
  %v5000 = vadd.f32 %v4903, %v4999
  %v5001 = vpop.f32.mrf.mxu0
  %5002 = vmatprep.mubr.bf16.mxu0 %v4112
  %5003 = vmatmul.mubr.bf16.gmra.mxu0 %v4111
  %v5004 = vpop.f32.mrf.mxu0
  %v5005 = vadd.f32 %v4908, %v5004
  %v5006 = vpop.f32.mrf.mxu0
  %v5007 = vpop.f32.mrf.mxu0
  %v5008 = vadd.f32 %v4911, %v5007
  %v5009 = vpop.f32.mrf.mxu0
  %5010 = vmatprep.mubr.bf16.mxu0 %v4121
  %5011 = vmatmul.mubr.bf16.gmra.mxu0 %v4120
  %v5012 = vpop.f32.mrf.mxu0
  %v5013 = vadd.f32 %v4916, %v5012
  %v5014 = vpop.f32.mrf.mxu0
  %v5015 = vpop.f32.mrf.mxu0
  %v5016 = vadd.f32 %v4919, %v5015
  %v5017 = vpop.f32.mrf.mxu0
  %5018 = vmatprep.mubr.bf16.mxu0 %v4130
  %5019 = vmatmul.mubr.bf16.gmra.mxu0 %v4129
  %v5020 = vpop.f32.mrf.mxu0
  %v5021 = vadd.f32 %v4924, %v5020
  %v5022 = vpop.f32.mrf.mxu0
  %v5023 = vpop.f32.mrf.mxu0
  %v5024 = vadd.f32 %v4927, %v5023
  %v5025 = vpop.f32.mrf.mxu0
  %5026 = vmatprep.mubr.bf16.mxu0 %v4139
  %5027 = vmatmul.mubr.bf16.gmra.mxu0 %v4138
  %v5028 = vpop.f32.mrf.mxu0
  %v5029 = vadd.f32 %v4932, %v5028
  %v5030 = vpop.f32.mrf.mxu0
  %v5031 = vpop.f32.mrf.mxu0
  %v5032 = vadd.f32 %v4935, %v5031
  %v5033 = vpop.f32.mrf.mxu0
  %5034 = vmatprep.mubr.bf16.mxu0 %v4148
  %5035 = vmatmul.mubr.bf16.gmra.mxu0 %v4147
  %v5036 = vpop.f32.mrf.mxu0
  %v5037 = vadd.f32 %v4940, %v5036
  %v5038 = vpop.f32.mrf.mxu0
  %v5039 = vpop.f32.mrf.mxu0
  %v5040 = vadd.f32 %v4943, %v5039
  %v5041 = vpop.f32.mrf.mxu0
  %5042 = vmatprep.mubr.bf16.mxu0 %v4157
  %5043 = vmatmul.mubr.bf16.gmra.mxu0 %v4156
  %v5044 = vpop.f32.mrf.mxu0
  %v5045 = vadd.f32 %v4948, %v5044
  %v5046 = vpop.f32.mrf.mxu0
  %v5047 = vpop.f32.mrf.mxu0
  %v5048 = vadd.f32 %v4951, %v5047
  %v5049 = vpop.f32.mrf.mxu0
  %5050 = vdwg.mxu0
  %5051 = vmatprep.subr.bf16.mxu0 0
  %5052 = vmatpush1.bf16.msra.mxu0 %v4590
  %5053 = vmatprep.subr.bf16.mxu0 0
  %5054 = vmatpush1.bf16.msra.mxu0 %v4589
  %5055 = vmatprep.subr.bf16.mxu0 0
  %5056 = vmatpush1.bf16.msra.mxu0 %v4588
  %5057 = vmatprep.subr.bf16.mxu0 0
  %5058 = vmatpush1.bf16.msra.mxu0 %v4587
  %5059 = vmatprep.subr.bf16.mxu0 0
  %5060 = vmatpush1.bf16.msra.mxu0 %v4586
  %5061 = vmatprep.subr.bf16.mxu0 0
  %5062 = vmatpush1.bf16.msra.mxu0 %v4585
  %5063 = vmatprep.subr.bf16.mxu0 0
  %5064 = vmatpush1.bf16.msra.mxu0 %v4584
  %5065 = vmatprep.subr.bf16.mxu0 0
  %5066 = vmatpush1.bf16.msra.mxu0 %v4583
  %5067 = vmatprep.subr.bf16.mxu0 0
  %5068 = vmatpush2.bf16.msra.mxu0 0
  %5069 = vmatprep.subr.bf16.mxu0 0
  %5070 = vmatpush2.bf16.msra.mxu0 0
  %5071 = vmatprep.subr.bf16.mxu0 0
  %5072 = vmatpush2.bf16.msra.mxu0 0
  %5073 = vmatprep.subr.bf16.mxu0 0
  %5074 = vmatpush2.bf16.msra.mxu0 0
  %5075 = vmatprep.subr.bf16.mxu0 0
  %5076 = vmatpush2.bf16.msra.mxu0 0
  %5077 = vmatprep.subr.bf16.mxu0 0
  %5078 = vmatpush2.bf16.msra.mxu0 0
  %5079 = vmatprep.subr.bf16.mxu0 0
  %5080 = vmatpush2.bf16.msra.mxu0 0
  %5081 = vmatprep.subr.bf16.mxu0 0
  %5082 = vmatpush2.bf16.msra.mxu0 0
  %5083 = vmatprep.mubr.bf16.mxu0 0
  %5084 = vmatmul.mubr.bf16.gmra.mxu0 %v4095
  %v5085 = vpop.f32.mrf.mxu0
  %v5086 = vadd.f32 %v4989, %v5085
  %v5087 = vpop.f32.mrf.mxu0
  %v5088 = vpop.f32.mrf.mxu0
  %v5089 = vadd.f32 %v4992, %v5088
  %v5090 = vpop.f32.mrf.mxu0
  %5091 = vmatprep.mubr.bf16.mxu0 0
  %5092 = vmatmul.mubr.bf16.gmra.mxu0 %v4104
  %v5093 = vpop.f32.mrf.mxu0
  %v5094 = vadd.f32 %v4997, %v5093
  %v5095 = vpop.f32.mrf.mxu0
  %v5096 = vpop.f32.mrf.mxu0
  %v5097 = vadd.f32 %v5000, %v5096
  %v5098 = vpop.f32.mrf.mxu0
  %5099 = vmatprep.mubr.bf16.mxu0 0
  %5100 = vmatmul.mubr.bf16.gmra.mxu0 %v4113
  %v5101 = vpop.f32.mrf.mxu0
  %v5102 = vadd.f32 %v5005, %v5101
  %v5103 = vpop.f32.mrf.mxu0
  %v5104 = vpop.f32.mrf.mxu0
  %v5105 = vadd.f32 %v5008, %v5104
  %v5106 = vpop.f32.mrf.mxu0
  %5107 = vmatprep.mubr.bf16.mxu0 0
  %5108 = vmatmul.mubr.bf16.gmra.mxu0 %v4122
  %v5109 = vpop.f32.mrf.mxu0
  %v5110 = vadd.f32 %v5013, %v5109
  %v5111 = vpop.f32.mrf.mxu0
  %v5112 = vpop.f32.mrf.mxu0
  %v5113 = vadd.f32 %v5016, %v5112
  %v5114 = vpop.f32.mrf.mxu0
  %5115 = vmatprep.mubr.bf16.mxu0 0
  %5116 = vmatmul.mubr.bf16.gmra.mxu0 %v4131
  %v5117 = vpop.f32.mrf.mxu0
  %v5118 = vadd.f32 %v5021, %v5117
  %v5119 = vpop.f32.mrf.mxu0
  %v5120 = vpop.f32.mrf.mxu0
  %v5121 = vadd.f32 %v5024, %v5120
  %v5122 = vpop.f32.mrf.mxu0
  %5123 = vmatprep.mubr.bf16.mxu0 0
  %5124 = vmatmul.mubr.bf16.gmra.mxu0 %v4140
  %v5125 = vpop.f32.mrf.mxu0
  %v5126 = vadd.f32 %v5029, %v5125
  %v5127 = vpop.f32.mrf.mxu0
  %v5128 = vpop.f32.mrf.mxu0
  %v5129 = vadd.f32 %v5032, %v5128
  %v5130 = vpop.f32.mrf.mxu0
  %5131 = vmatprep.mubr.bf16.mxu0 0
  %5132 = vmatmul.mubr.bf16.gmra.mxu0 %v4149
  %v5133 = vpop.f32.mrf.mxu0
  %v5134 = vadd.f32 %v5037, %v5133
  %v5135 = vpop.f32.mrf.mxu0
  %v5136 = vpop.f32.mrf.mxu0
  %v5137 = vadd.f32 %v5040, %v5136
  %v5138 = vpop.f32.mrf.mxu0
  %5139 = vmatprep.mubr.bf16.mxu0 0
  %5140 = vmatmul.mubr.bf16.gmra.mxu0 %v4158
  %v5141 = vpop.f32.mrf.mxu0
  %v5142 = vadd.f32 %v5045, %v5141
  %v5143 = vpop.f32.mrf.mxu0
  %v5144 = vpop.f32.mrf.mxu0
  %v5145 = vadd.f32 %v5048, %v5144
  %v5146 = vpop.f32.mrf.mxu0
  %5147 = vdwg.mxu0
  %v5148 = vld [vmem:[%s1014] sm:$0xf]
  %v5149 = vld [vmem:[%s1014 + $0x8] sm:$0xf]
  %v5150 = vld [vmem:[%s1014 + $0x10] sm:$0xf]
  %v5151 = vld [vmem:[%s1014 + $0x18] sm:$0xf]
  %v5152 = vld [vmem:[%s1014 + $0x20] sm:$0xf]
  %v5153 = vld [vmem:[%s1014 + $0x28] sm:$0xf]
  %v5154 = vld [vmem:[%s1014 + $0x30] sm:$0xf]
  %v5155 = vld [vmem:[%s1014 + $0x38] sm:$0xf]
  %v5156 = vld [vmem:[%s1014 + $0x48] sm:$0xf]
  %v5157 = vld [vmem:[%s1014 + $0x50] sm:$0xf]
  %v5158 = vld [vmem:[%s1014 + $0x58] sm:$0xf]
  %v5159 = vld [vmem:[%s1014 + $0x60] sm:$0xf]
  %v5160 = vld [vmem:[%s1014 + $0x68] sm:$0xf]
  %v5161 = vld [vmem:[%s1014 + $0x70] sm:$0xf]
  %v5162 = vld [vmem:[%s1014 + $0x78] sm:$0xf]
  %v5163 = vld [vmem:[%s1014 + $0x80] sm:$0xf]
  %v5164 = vld [vmem:[%s5] sm:$0x3]
  %v5181 = vunpack.c.l.b16 %v5148
  %v5182 = vunpack.c.l.b16 %v5149
  %v5183 = vunpack.c.l.b16 %v5150
  %v5184 = vunpack.c.l.b16 %v5151
  %v5185 = vunpack.c.l.b16 %v5152
  %v5186 = vunpack.c.l.b16 %v5153
  %v5187 = vunpack.c.l.b16 %v5154
  %v5188 = vunpack.c.l.b16 %v5155
  %v5189 = vunpack.c.l.b16 %v5156
  %v5190 = vunpack.c.l.b16 %v5157
  %v5191 = vunpack.c.l.b16 %v5158
  %v5192 = vunpack.c.l.b16 %v5159
  %v5193 = vunpack.c.l.b16 %v5160
  %v5194 = vunpack.c.l.b16 %v5161
  %v5195 = vunpack.c.l.b16 %v5162
  %v5196 = vunpack.c.l.b16 %v5163
  %v5197 = vpack.c.b16 %v5182, %v5181
  %v5198 = vpack.c.b16 %v5184, %v5183
  %v5199 = vpack.c.b16 %v5186, %v5185
  %v5200 = vpack.c.b16 %v5188, %v5187
  %v5201 = vpack.c.b16 %v5190, %v5189
  %v5202 = vpack.c.b16 %v5192, %v5191
  %v5203 = vpack.c.b16 %v5194, %v5193
  %v5204 = vpack.c.b16 %v5196, %v5195
  %v5206 = vsel %vm100, %v5197, 0
  %v5209 = vsel %vm100, %v5198, 0
  %v5212 = vsel %vm100, %v5199, 0
  %v5215 = vsel %vm100, %v5200, 0
  %v5218 = vsel %vm100, %v5201, 0
  %v5221 = vsel %vm100, %v5202, 0
  %v5224 = vsel %vm100, %v5203, 0
  %v5227 = vsel %vm100, %v5204, 0
  %v5230 = vsel %vm125, %v5164, 0
  %5232 = vmatprep.subr.bf16.mxu0 0
  %5233 = vmatpush1.bf16.msra.mxu0 0
  %5234 = vmatprep.subr.bf16.mxu0 0
  %5235 = vmatpush1.bf16.msra.mxu0 0
  %5236 = vmatprep.subr.bf16.mxu0 0
  %5237 = vmatpush1.bf16.msra.mxu0 0
  %5238 = vmatprep.subr.bf16.mxu0 0
  %5239 = vmatpush1.bf16.msra.mxu0 0
  %5240 = vmatprep.subr.bf16.mxu0 0
  %5241 = vmatpush1.bf16.msra.mxu0 0
  %5242 = vmatprep.subr.bf16.mxu0 0
  %5243 = vmatpush1.bf16.msra.mxu0 0
  %5244 = vmatprep.subr.bf16.mxu0 0
  %5245 = vmatpush1.bf16.msra.mxu0 0
  %5246 = vmatprep.subr.bf16.mxu0 0
  %5247 = vmatpush1.bf16.msra.mxu0 %v5230
  %5248 = vmatprep.subr.bf16.mxu0 0
  %5249 = vmatpush2.bf16.msra.mxu0 0
  %5250 = vmatprep.subr.bf16.mxu0 0
  %5251 = vmatpush2.bf16.msra.mxu0 0
  %5252 = vmatprep.subr.bf16.mxu0 0
  %5253 = vmatpush2.bf16.msra.mxu0 0
  %5254 = vmatprep.subr.bf16.mxu0 0
  %5255 = vmatpush2.bf16.msra.mxu0 0
  %5256 = vmatprep.subr.bf16.mxu0 0
  %5257 = vmatpush2.bf16.msra.mxu0 0
  %5258 = vmatprep.subr.bf16.mxu0 0
  %5259 = vmatpush2.bf16.msra.mxu0 0
  %5260 = vmatprep.subr.bf16.mxu0 0
  %5261 = vmatpush2.bf16.msra.mxu0 0
  %5262 = vmatprep.subr.bf16.mxu0 0
  %5263 = vmatpush2.bf16.msra.mxu0 0
  %5264 = vmatprep.mubr.bf16.mxu0 0
  %5265 = vmatmul.mubr.bf16.gmra.mxu0 %v5206
  %v5266 = vpop.f32.mrf.mxu0
  %v5267 = vadd.f32 0.0, %v5266
  %v5268 = vpop.f32.mrf.mxu0
  %v5269 = vpop.f32.mrf.mxu0
  %v5270 = vadd.f32 0.0, %v5269
  %v5271 = vpop.f32.mrf.mxu0
  %5272 = vmatprep.mubr.bf16.mxu0 0
  %5273 = vmatmul.mubr.bf16.gmra.mxu0 %v5209
  %v5274 = vpop.f32.mrf.mxu0
  %v5275 = vadd.f32 0.0, %v5274
  %v5276 = vpop.f32.mrf.mxu0
  %v5277 = vpop.f32.mrf.mxu0
  %v5278 = vadd.f32 0.0, %v5277
  %v5279 = vpop.f32.mrf.mxu0
  %5280 = vmatprep.mubr.bf16.mxu0 0
  %5281 = vmatmul.mubr.bf16.gmra.mxu0 %v5212
  %v5282 = vpop.f32.mrf.mxu0
  %v5283 = vadd.f32 0.0, %v5282
  %v5284 = vpop.f32.mrf.mxu0
  %v5285 = vpop.f32.mrf.mxu0
  %v5286 = vadd.f32 0.0, %v5285
  %v5287 = vpop.f32.mrf.mxu0
  %5288 = vmatprep.mubr.bf16.mxu0 0
  %5289 = vmatmul.mubr.bf16.gmra.mxu0 %v5215
  %v5290 = vpop.f32.mrf.mxu0
  %v5291 = vadd.f32 0.0, %v5290
  %v5292 = vpop.f32.mrf.mxu0
  %v5293 = vpop.f32.mrf.mxu0
  %v5294 = vadd.f32 0.0, %v5293
  %v5295 = vpop.f32.mrf.mxu0
  %5296 = vmatprep.mubr.bf16.mxu0 0
  %5297 = vmatmul.mubr.bf16.gmra.mxu0 %v5218
  %v5298 = vpop.f32.mrf.mxu0
  %v5299 = vadd.f32 0.0, %v5298
  %v5300 = vpop.f32.mrf.mxu0
  %v5301 = vpop.f32.mrf.mxu0
  %v5302 = vadd.f32 0.0, %v5301
  %v5303 = vpop.f32.mrf.mxu0
  %5304 = vmatprep.mubr.bf16.mxu0 0
  %5305 = vmatmul.mubr.bf16.gmra.mxu0 %v5221
  %v5306 = vpop.f32.mrf.mxu0
  %v5307 = vadd.f32 0.0, %v5306
  %v5308 = vpop.f32.mrf.mxu0
  %v5309 = vpop.f32.mrf.mxu0
  %v5310 = vadd.f32 0.0, %v5309
  %v5311 = vpop.f32.mrf.mxu0
  %5312 = vmatprep.mubr.bf16.mxu0 0
  %5313 = vmatmul.mubr.bf16.gmra.mxu0 %v5224
  %v5314 = vpop.f32.mrf.mxu0
  %v5315 = vadd.f32 0.0, %v5314
  %v5316 = vpop.f32.mrf.mxu0
  %v5317 = vpop.f32.mrf.mxu0
  %v5318 = vadd.f32 0.0, %v5317
  %v5319 = vpop.f32.mrf.mxu0
  %5320 = vmatprep.mubr.bf16.mxu0 0
  %5321 = vmatmul.mubr.bf16.gmra.mxu0 %v5227
  %v5322 = vpop.f32.mrf.mxu0
  %v5323 = vadd.f32 0.0, %v5322
  %v5324 = vpop.f32.mrf.mxu0
  %v5325 = vpop.f32.mrf.mxu0
  %v5326 = vadd.f32 0.0, %v5325
  %v5327 = vpop.f32.mrf.mxu0
  %5328 = vdwg.mxu0
  %v5329 = vadd.f32 %v5086, %v5267
  %v5330 = vadd.f32 %v5089, %v5270
  %v5331 = vadd.f32 %v5094, %v5275
  %v5332 = vadd.f32 %v5097, %v5278
  %v5333 = vadd.f32 %v5102, %v5283
  %v5334 = vadd.f32 %v5105, %v5286
  %v5335 = vadd.f32 %v5110, %v5291
  %v5336 = vadd.f32 %v5113, %v5294
  %v5337 = vadd.f32 %v5118, %v5299
  %v5338 = vadd.f32 %v5121, %v5302
  %v5339 = vadd.f32 %v5126, %v5307
  %v5340 = vadd.f32 %v5129, %v5310
  %v5341 = vadd.f32 %v5134, %v5315
  %v5342 = vadd.f32 %v5137, %v5318
  %v5343 = vadd.f32 %v5142, %v5323
  %v5344 = vadd.f32 %v5145, %v5326
  %v5345 = vmax.f32 %v5329, 0.0
  %v5346 = vmax.f32 %v5330, 0.0
  %v5347 = vmax.f32 %v5331, 0.0
  %v5348 = vmax.f32 %v5332, 0.0
  %v5349 = vmax.f32 %v5333, 0.0
  %v5350 = vmax.f32 %v5334, 0.0
  %v5351 = vmax.f32 %v5335, 0.0
  %v5352 = vmax.f32 %v5336, 0.0
  %v5353 = vmax.f32 %v5337, 0.0
  %v5354 = vmax.f32 %v5338, 0.0
  %v5355 = vmax.f32 %v5339, 0.0
  %v5356 = vmax.f32 %v5340, 0.0
  %v5357 = vmax.f32 %v5341, 0.0
  %v5358 = vmax.f32 %v5342, 0.0
  %v5359 = vmax.f32 %v5343, 0.0
  %v5360 = vmax.f32 %v5344, 0.0
  %v5361 = vpack.c.bf16 %v5345, %v5345
  %v5362 = vpack.c.bf16 %v5346, %v5346
  %v5363 = vpack.c.bf16 %v5347, %v5347
  %v5364 = vpack.c.bf16 %v5348, %v5348
  %v5365 = vpack.c.bf16 %v5349, %v5349
  %v5366 = vpack.c.bf16 %v5350, %v5350
  %v5367 = vpack.c.bf16 %v5351, %v5351
  %v5368 = vpack.c.bf16 %v5352, %v5352
  %v5369 = vpack.c.bf16 %v5353, %v5353
  %v5370 = vpack.c.bf16 %v5354, %v5354
  %v5371 = vpack.c.bf16 %v5355, %v5355
  %v5372 = vpack.c.bf16 %v5356, %v5356
  %v5373 = vpack.c.bf16 %v5357, %v5357
  %v5374 = vpack.c.bf16 %v5358, %v5358
  %v5375 = vpack.c.bf16 %v5359, %v5359
  %v5376 = vpack.c.bf16 %v5360, %v5360
  %5377 = vst [vmem:[%s6] sm:$0xf] %v5361
  %5378 = vst [vmem:[%s6 + $0x4] sm:$0xf] %v5362
  %5379 = vst [vmem:[%s6 + $0x8] sm:$0xf] %v5363
  %5380 = vst [vmem:[%s6 + $0xc] sm:$0xf] %v5364
  %5381 = vst [vmem:[%s6 + $0x10] sm:$0xf] %v5365
  %5382 = vst [vmem:[%s6 + $0x14] sm:$0xf] %v5366
  %5383 = vst [vmem:[%s6 + $0x18] sm:$0xf] %v5367
  %5384 = vst [vmem:[%s6 + $0x1c] sm:$0xf] %v5368
  %5385 = vst [vmem:[%s6 + $0x20] sm:$0xf] %v5369
  %5386 = vst [vmem:[%s6 + $0x24] sm:$0xf] %v5370
  %5387 = vst [vmem:[%s6 + $0x28] sm:$0xf] %v5371
  %5388 = vst [vmem:[%s6 + $0x2c] sm:$0xf] %v5372
  %5389 = vst [vmem:[%s6 + $0x30] sm:$0xf] %v5373
  %5390 = vst [vmem:[%s6 + $0x34] sm:$0xf] %v5374
  %5391 = vst [vmem:[%s6 + $0x38] sm:$0xf] %v5375
  %5392 = vst [vmem:[%s6 + $0x3c] sm:$0xf] %v5376
  // Predicated region
  $region26: #{basic_block_forward.1} parent=0 // pred_check
    _
  $region27: #{basic_block_forward.1} parent=0 // pred_check_branch
    %5394 = sbr.rel (0) target = $region29
  $region28: #{basic_block_forward.1} parent=0 // pred_region
    _
  $region29: #{basic_block_forward.1} parent=0 // pred_fallthru
    _
  // Predicated region
  $region30: #{basic_block_forward.1} parent=0 // pred_check
    _
  $region31: #{basic_block_forward.1} parent=0 // pred_check_branch
    %5396 = sbr.rel (0) target = $region33
  $region32: #{basic_block_forward.1} parent=0 // pred_region
    _
  $region33: #{basic_block_forward.1} parent=0 // pred_fallthru
    _

</llo_original>
